<compile_context>
chip_gen: v7x
topology: tpu7x:2x2x1
jax: 0.10.0
libtpu: 0.0.40
codegen_flags: <defaults>
</compile_context>

<pallas_src>
import numpy as np
import jax
import jax.numpy as jnp
from jax.experimental import pallas as pl
from jax.experimental.pallas import tpu as pltpu

H = W = 16
HW = H * W
B = 2
CIN, C1, C2 = 3, 32, 64
EMB_N, EMB_D = 4, 8
HID1, HID2 = 128, 64
N_ACTIONS = 7

K1 = 9 * CIN                   # 27  (conv1 im2col depth)
K1_PAD = 32                    # padded to a multiple of 8 lanes/rows
K2 = 9 * C1                    # 288 (conv2 im2col depth)

GAP = 24                       # zero rows around each image (>= W+1, multiple of 8)
SEG = GAP + HW                 # 280 rows per image segment in the padded h1 buffer


# ---------------------------------------------------------------------------
# Parameter slab: every weight/bias packed into one [P_ROWS, 128] bf16 array.
# ---------------------------------------------------------------------------
def _off_table():
    sections = (("cw1", K1), ("cb1", 1), ("cw2", K2), ("cb2", 1), ("emb", EMB_N),
                ("w1", C2 + EMB_D), ("b1", 1), ("w2", HID1), ("b2", 1),
                ("wh", HID2), ("bh", 1))
    off, r = {}, 0
    for name, rows in sections:
        off[name] = r
        r = ((r + rows + 15) // 16) * 16      # 16-row aligned (bf16 sublane pairs)
    return off, r


P_OFF, P_ROWS = _off_table()
P_LANES = 128


def pack_params(p):
    o = P_OFF
    slab = np.zeros((P_ROWS, P_LANES), np.float32)
    slab[o["cw1"]:o["cw1"] + K1, :C1] = np.asarray(p["cw1"]).reshape(K1, C1)
    slab[o["cb1"], :C1] = np.asarray(p["cb1"])
    slab[o["cw2"]:o["cw2"] + K2, :C2] = np.asarray(p["cw2"]).reshape(K2, C2)
    slab[o["cb2"], :C2] = np.asarray(p["cb2"])
    slab[o["emb"]:o["emb"] + EMB_N, :EMB_D] = np.asarray(p["emb"])
    slab[o["w1"]:o["w1"] + C2 + EMB_D, :HID1] = np.asarray(p["w1"])
    slab[o["b1"], :HID1] = np.asarray(p["b1"])
    slab[o["w2"]:o["w2"] + HID1, :HID2] = np.asarray(p["w2"])
    slab[o["b2"], :HID2] = np.asarray(p["b2"])
    # fused actor/critic head: columns 0..6 = actor logits, column 7 = critic value
    slab[o["wh"]:o["wh"] + HID2, :N_ACTIONS] = np.asarray(p["wa"])
    slab[o["wh"]:o["wh"] + HID2, N_ACTIONS:N_ACTIONS + 1] = np.asarray(p["wc"])
    slab[o["bh"], :N_ACTIONS] = np.asarray(p["ba"])
    slab[o["bh"], N_ACTIONS] = float(np.asarray(p["bc"])[0])
    return jnp.asarray(slab, dtype=jnp.bfloat16)


def init_params(key):
    ks = jax.random.split(key, 8)
    ortho = jax.nn.initializers.orthogonal(0.5)          # nn.init.orthogonal_(w, 0.5)
    return dict(
        cw1=jax.random.normal(ks[0], (9, CIN, C1), jnp.float32) * 0.1,
        cb1=jnp.zeros((C1,), jnp.float32),
        cw2=jax.random.normal(ks[1], (9, C1, C2), jnp.float32) * 0.05,
        cb2=jnp.zeros((C2,), jnp.float32),
        emb=jax.random.normal(ks[2], (EMB_N, EMB_D), jnp.float32),
        w1=ortho(ks[3], (C2 + EMB_D, HID1), jnp.float32),   # Linear(72, 128)
        b1=jnp.zeros((HID1,), jnp.float32),
        w2=ortho(ks[4], (HID1, HID2), jnp.float32),          # Linear(128, 64)
        b2=jnp.zeros((HID2,), jnp.float32),
        wa=ortho(ks[5], (HID2, N_ACTIONS), jnp.float32),     # actor
        ba=jnp.zeros((N_ACTIONS,), jnp.float32),
        wc=ortho(ks[6], (HID2, 1), jnp.float32),             # critic
        bc=jnp.zeros((1,), jnp.float32),
    )


# ---------------------------------------------------------------------------
# Kernel
# ---------------------------------------------------------------------------
def agent_kernel(xcol_ref, dirf_ref, p_ref, out_ref, hpad_ref, col_ref, comb_ref):
    bsz = dirf_ref.shape[0]                    # B (static)
    o = P_OFF
    bf16 = jnp.bfloat16

    # ---- Conv2d(3, 32, 3, pad=1) + ReLU: single bf16 im2col matmul (K padded to 32)
    w1c = p_ref[o["cw1"]:o["cw1"] + K1_PAD, :C1]                         # [32, 32] bf16
    cb1 = p_ref[o["cb1"]:o["cb1"] + 1, :C1]                              # [1, 32]
    h1 = jnp.maximum(
        jnp.dot(xcol_ref[...], w1c, preferred_element_type=jnp.float32) + cb1, 0.0)

    # ---- Build the conv2 im2col scratch -----------------------------------------
    # hpad layout: [GAP zero rows][image-0 rows][GAP zeros][image-1 rows]...[GAP zeros]
    # lane group 0: h1 (for dx=0 taps)
    # lane group 1: h1 with column W-1 zeroed  (safe source for dx=-1 taps)
    # lane group 2: h1 with column 0   zeroed  (safe source for dx=+1 taps)
    # Vertical / inter-image boundaries are implicit via the zero gap rows, so the
    # taps below are plain static slice copies: no per-tap masks, no per-tap matmuls.
    jj = jax.lax.broadcasted_iota(jnp.int32, (HW, 1), 0) % W
    hm_dxm = (jj != W - 1).astype(jnp.float32)       # zero col W-1
    hm_dxp = (jj != 0).astype(jnp.float32)           # zero col 0

    for k in range(bsz + 1):                         # zero all gap rows (8-aligned)
        hpad_ref[k * SEG:k * SEG + GAP, :] = jnp.zeros((GAP, 3 * C1), jnp.float32)
    for b in range(bsz):
        h1b = h1[b * HW:(b + 1) * HW, :]
        ds = b * SEG + GAP
        hpad_ref[ds:ds + HW, 0:C1] = h1b
        hpad_ref[ds:ds + HW, C1:2 * C1] = h1b * hm_dxm
        hpad_ref[ds:ds + HW, 2 * C1:3 * C1] = h1b * hm_dxp

    for t in range(9):                               # 9 taps x B images: slice copies
        dy, dx = t // 3 - 1, t % 3 - 1
        g = 0 if dx == 0 else (1 if dx == -1 else 2)
        off = dy * W + dx
        for b in range(bsz):
            src = b * SEG + GAP + off
            col_ref[b * HW:(b + 1) * HW, t * C1:(t + 1) * C1] = (
                hpad_ref[src:src + HW, g * C1:(g + 1) * C1].astype(bf16))

    # ---- Conv2d(32, 64, 3, pad=1) + ReLU: ONE K=288 bf16 matmul ----
    w2c = p_ref[o["cw2"]:o["cw2"] + K2, :C2]                             # [288, 64] bf16
    cb2 = p_ref[o["cb2"]:o["cb2"] + 1, :C2]
    h2 = jnp.maximum(
        jnp.dot(col_ref[...], w2c, preferred_element_type=jnp.float32) + cb2, 0.0)

    # ---- AdaptiveAvgPool2d((1,1)) + Flatten + cat(direction features) ----
    # per-image sublane reduction (XLU) instead of a K=512 pooling matmul;
    # pooled and dirf are written into one [B, 72] scratch so the shared MLP's
    # first layer is a single matmul.
    inv_hw = 1.0 / HW
    for b in range(bsz):
        comb_ref[b:b + 1, 0:C2] = (
            jnp.sum(h2[b * HW:(b + 1) * HW, :], axis=0, keepdims=True) * inv_hw)
    comb_ref[:, C2:C2 + EMB_D] = dirf_ref[...]       # Embedding gathered in wrapper

    # ---- shared MLP + fused actor/critic head ----
    w1 = p_ref[o["w1"]:o["w1"] + C2 + EMB_D, :HID1]
    b1 = p_ref[o["b1"]:o["b1"] + 1, :HID1]
    s1 = jnp.maximum(
        jnp.dot(comb_ref[...].astype(bf16), w1, preferred_element_type=jnp.float32)
        + b1, 0.0)                                                        # [B, 128]
    w2 = p_ref[o["w2"]:o["w2"] + HID1, :HID2]
    b2 = p_ref[o["b2"]:o["b2"] + 1, :HID2]
    s2 = jnp.maximum(
        jnp.dot(s1.astype(bf16), w2, preferred_element_type=jnp.float32) + b2, 0.0)

    wh = p_ref[o["wh"]:o["wh"] + HID2, :N_ACTIONS + 1]
    bh = p_ref[o["bh"]:o["bh"] + 1, :N_ACTIONS + 1]
    out_ref[...] = jnp.dot(s2.astype(bf16), wh,
                           preferred_element_type=jnp.float32) + bh


# ---------------------------------------------------------------------------
# Wrapper
# ---------------------------------------------------------------------------
def _im2col_image(image):
    """[B, H, W, CIN] NHWC -> [B*H*W, 9*CIN] patches, column = tap*CIN + ci,
    tap = ky*3 + kx (same layout as the packed conv1 weight rows)."""
    b = image.shape[0]
    padded = jnp.pad(image, ((0, 0), (1, 1), (1, 1), (0, 0)))
    cols = [padded[:, dy:dy + H, dx:dx + W, :] for dy in range(3) for dx in range(3)]
    return jnp.concatenate(cols, axis=-1).reshape(b * H * W, 9 * CIN)


def ppo_forward(param_slab, image, direction):
    """Mirrors SimplePPOAgent.forward: returns (action_logits [B, 7], value [B])."""
    image = jnp.asarray(image, jnp.float32)
    if image.ndim == 3:                       # HWC -> add batch dim
        image = image[None]
    direction = jnp.asarray(direction).reshape(-1).astype(jnp.int32)
    b = image.shape[0]
    if direction.shape[0] != b:               # repeat direction features across batch
        direction = jnp.broadcast_to(direction, (b,))
    n = b * HW

    # host-side layout plumbing: conv1 im2col (bf16) + embedding gather
    x_col = _im2col_image(image)                                         # [n, 27]
    x_col = jnp.pad(x_col, ((0, 0), (0, K1_PAD - K1))).astype(jnp.bfloat16)
    emb = param_slab[P_OFF["emb"]:P_OFF["emb"] + EMB_N, :EMB_D].astype(jnp.float32)
    dirf = emb[direction]                                                # [B, 8] f32

    vmem = pl.BlockSpec(memory_space=pltpu.MemorySpace.VMEM)
    out = pl.pallas_call(
        agent_kernel,
        out_shape=jax.ShapeDtypeStruct((b, N_ACTIONS + 1), jnp.float32),
        in_specs=[vmem, vmem, vmem],
        out_specs=vmem,
        scratch_shapes=[
            pltpu.VMEM((b * SEG + GAP, 3 * C1), jnp.float32),  # padded h1 (+2 masked copies)
            pltpu.VMEM((n, K2), jnp.bfloat16),                 # conv2 im2col, K = 288
            pltpu.VMEM((b, C2 + EMB_D), jnp.float32),          # [pooled | dirf]
        ],
        # TODO(synk): for large batches add grid=(b,) with
        # dimension_semantics=("parallel",) to use v7x's 2nd TensorCore.
        compiler_params=pltpu.CompilerParams(vmem_limit_bytes=4 * 1024 * 1024),
    )(x_col, dirf, param_slab)
    return out[:, :N_ACTIONS], out[:, N_ACTIONS]     # value.squeeze(-1)

# TODO(synk): Categorical sampling / log_prob / entropy from get_action_and_value
# are host-side distribution ops and are not part of forward(); not kernelized.


# ---------------------------------------------------------------------------
# Pure-JAX reference (f32, for correctness check of the kernel)
# ---------------------------------------------------------------------------
def ref_forward(params, image, direction):
    x = jnp.asarray(image, jnp.float32)
    if x.ndim == 3:
        x = x[None]
    d = jnp.asarray(direction).reshape(-1).astype(jnp.int32)
    w1c = params["cw1"].reshape(3, 3, CIN, C1)          # [ky, kx, Cin, Cout]
    h = jax.lax.conv_general_dilated(x, w1c, window_strides=(1, 1),
                                     padding=((1, 1), (1, 1)),
                                     dimension_numbers=("NHWC", "HWIO", "NHWC"))
    h = jax.nn.relu(h + params["cb1"])
    w2c = params["cw2"].reshape(3, 3, C1, C2)
    h = jax.lax.conv_general_dilated(h, w2c, window_strides=(1, 1),
                                     padding=((1, 1), (1, 1)),
                                     dimension_numbers=("NHWC", "HWIO", "NHWC"))
    h = jax.nn.relu(h + params["cb2"])
    pooled = h.mean(axis=(1, 2))                        # AdaptiveAvgPool2d((1,1)) + Flatten
    dirf = params["emb"][d]
    comb = jnp.concatenate([pooled, dirf], axis=-1)
    s1 = jax.nn.relu(comb @ params["w1"] + params["b1"])
    s2 = jax.nn.relu(s1 @ params["w2"] + params["b2"])
    logits = s2 @ params["wa"] + params["ba"]
    value = s2 @ params["wc"] + params["bc"]
    return logits, value[:, 0]


if __name__ == "__main__":
    key = jax.random.PRNGKey(0)
    k_img, k_dir, k_par = jax.random.split(key, 3)

    image = jax.random.uniform(k_img, (B, H, W, CIN), jnp.float32)    # NHWC
    direction = jax.random.randint(k_dir, (B,), 0, 4)

    params = init_params(k_par)
    slab = pack_params(params)

    logits, value = ppo_forward(slab, image, direction)
    jax.block_until_ready((logits, value))

    assert logits.shape == (B, N_ACTIONS), logits.shape
    assert value.shape == (B,), value.shape
    assert bool(jnp.all(jnp.isfinite(logits))) and bool(jnp.all(jnp.isfinite(value)))

    ref_logits, ref_value = ref_forward(params, image, direction)
    assert jnp.allclose(logits, ref_logits, rtol=2e-2, atol=2e-2), (logits, ref_logits)
    assert jnp.allclose(value, ref_value, rtol=2e-2, atol=2e-2), (value, ref_value)

    print("KERNEL_OK")
</pallas_src>

<mosaic_0001>
module attributes {stable_mosaic.version = 11 : i64} {
  func.func @agent_kernel(%arg0: memref<512x32xbf16, #tpu.memory_space<vmem>>, %arg1: memref<2x8xf32, #tpu.memory_space<vmem>>, %arg2: memref<688x128xbf16, #tpu.memory_space<vmem>>, %arg3: memref<2x8xf32, #tpu.memory_space<vmem>>, %arg4: memref<584x96xf32, #tpu.memory_space<vmem>>, %arg5: memref<512x288xbf16, #tpu.memory_space<vmem>>, %arg6: memref<2x72xf32, #tpu.memory_space<vmem>>) attributes {dimension_semantics = [], scalar_prefetch = 0 : i64, scratch_operands = 3 : i64, tpu.core_type = #tpu.core_type<tc>} {
    %c0 = arith.constant 0 : index
    %c0_0 = arith.constant 0 : index
    %0 = vector.load %arg2[%c0, %c0_0] : memref<688x128xbf16, #tpu.memory_space<vmem>>, vector<32x32xbf16>
    %c32 = arith.constant 32 : index
    %c0_1 = arith.constant 0 : index
    %1 = vector.load %arg2[%c32, %c0_1] : memref<688x128xbf16, #tpu.memory_space<vmem>>, vector<1x32xbf16>
    %c0_2 = arith.constant 0 : index
    %c0_3 = arith.constant 0 : index
    %2 = vector.load %arg0[%c0_2, %c0_3] : memref<512x32xbf16, #tpu.memory_space<vmem>>, vector<512x32xbf16>
    %cst = arith.constant dense<0.000000e+00> : vector<512x32xf32>
    %3 = tpu.matmul %2, %0, %cst {dimension_numbers = #tpu.dot_dimension_numbers<[1], [0], [0], [1], [0, 0, 1, 1], [], []>} : vector<512x32xbf16>, vector<32x32xbf16>, vector<512x32xf32> -> vector<512x32xf32>
    %4 = arith.extf %1 : vector<1x32xbf16> to vector<1x32xf32>
    %5 = vector.broadcast %4 : vector<1x32xf32> to vector<512x32xf32>
    %6 = arith.addf %3, %5 : vector<512x32xf32>
    %cst_4 = arith.constant 0.000000e+00 : f32
    %7 = vector.broadcast %cst_4 : f32 to vector<512x32xf32>
    %8 = arith.maximumf %6, %7 : vector<512x32xf32>
    %9 = tpu.iota {dimensions = array<i32: 0>} : vector<256x1xi32>
    %c16_i32 = arith.constant 16 : i32
    %c0_i32 = arith.constant 0 : i32
    %10 = arith.cmpi eq, %c16_i32, %c0_i32 : i32
    %c1_i32 = arith.constant 1 : i32
    %11 = arith.select %10, %c1_i32, %c16_i32 : i32
    %12 = vector.broadcast %11 : i32 to vector<256x1xi32>
    %13 = arith.remsi %9, %12 : vector<256x1xi32>
    %c0_i32_5 = arith.constant 0 : i32
    %14 = vector.broadcast %c0_i32_5 : i32 to vector<256x1xi32>
    %15 = arith.cmpi ne, %13, %14 : vector<256x1xi32>
    %c0_i32_6 = arith.constant 0 : i32
    %16 = vector.broadcast %c0_i32_6 : i32 to vector<256x1xi32>
    %17 = arith.cmpi slt, %13, %16 : vector<256x1xi32>
    %c0_i32_7 = arith.constant 0 : i32
    %18 = arith.cmpi slt, %11, %c0_i32_7 : i32
    %19 = vector.broadcast %18 : i1 to vector<256x1xi1>
    %20 = vector.broadcast %19 : vector<256x1xi1> to vector<256x1xi1>
    %21 = arith.xori %17, %20 : vector<256x1xi1>
    %22 = arith.andi %21, %15 : vector<256x1xi1>
    %23 = vector.broadcast %11 : i32 to vector<256x1xi32>
    %24 = arith.addi %13, %23 : vector<256x1xi32>
    %25 = arith.select %22, %24, %13 : vector<256x1xi1>, vector<256x1xi32>
    %c15_i32 = arith.constant 15 : i32
    %26 = vector.broadcast %c15_i32 : i32 to vector<256x1xi32>
    %27 = arith.cmpi ne, %25, %26 : vector<256x1xi32>
    %28 = arith.extui %27 : vector<256x1xi1> to vector<256x1xi32>
    %29 = arith.sitofp %28 : vector<256x1xi32> to vector<256x1xf32>
    %c0_i32_8 = arith.constant 0 : i32
    %30 = vector.broadcast %c0_i32_8 : i32 to vector<256x1xi32>
    %31 = arith.cmpi ne, %25, %30 : vector<256x1xi32>
    %32 = arith.extui %31 : vector<256x1xi1> to vector<256x1xi32>
    %33 = arith.sitofp %32 : vector<256x1xi32> to vector<256x1xf32>
    %cst_9 = arith.constant 0.000000e+00 : f32
    %34 = vector.broadcast %cst_9 : f32 to vector<24x96xf32>
    %c0_10 = arith.constant 0 : index
    %c0_11 = arith.constant 0 : index
    %35 = vector.load %arg4[%c0_10, %c0_11] : memref<584x96xf32, #tpu.memory_space<vmem>>, vector<24x96xf32>
    tpu.vector_store %arg4[%c0_10, %c0_11], %34 {strides = array<i32>} : memref<584x96xf32, #tpu.memory_space<vmem>>, vector<24x96xf32>,
    %cst_12 = arith.constant 0.000000e+00 : f32
    %36 = vector.broadcast %cst_12 : f32 to vector<24x96xf32>
    %c280 = arith.constant 280 : index
    %c0_13 = arith.constant 0 : index
    %37 = vector.load %arg4[%c280, %c0_13] : memref<584x96xf32, #tpu.memory_space<vmem>>, vector<24x96xf32>
    tpu.vector_store %arg4[%c280, %c0_13], %36 {strides = array<i32>} : memref<584x96xf32, #tpu.memory_space<vmem>>, vector<24x96xf32>,
    %cst_14 = arith.constant 0.000000e+00 : f32
    %38 = vector.broadcast %cst_14 : f32 to vector<24x96xf32>
    %c560 = arith.constant 560 : index
    %c0_15 = arith.constant 0 : index
    %39 = vector.load %arg4[%c560, %c0_15] : memref<584x96xf32, #tpu.memory_space<vmem>>, vector<24x96xf32>
    tpu.vector_store %arg4[%c560, %c0_15], %38 {strides = array<i32>} : memref<584x96xf32, #tpu.memory_space<vmem>>, vector<24x96xf32>,
    %40 = vector.extract_strided_slice %8 {offsets = [0, 0], sizes = [256, 32], strides = [1, 1]} : vector<512x32xf32> to vector<256x32xf32>
    %c24 = arith.constant 24 : index
    %c0_16 = arith.constant 0 : index
    %41 = vector.load %arg4[%c24, %c0_16] : memref<584x96xf32, #tpu.memory_space<vmem>>, vector<256x32xf32>
    tpu.vector_store %arg4[%c24, %c0_16], %40 {strides = array<i32>} : memref<584x96xf32, #tpu.memory_space<vmem>>, vector<256x32xf32>,
    %42 = vector.broadcast %29 : vector<256x1xf32> to vector<256x32xf32>
    %43 = arith.mulf %40, %42 : vector<256x32xf32>
    %c24_17 = arith.constant 24 : index
    %c32_18 = arith.constant 32 : index
    %44 = vector.load %arg4[%c24_17, %c32_18] : memref<584x96xf32, #tpu.memory_space<vmem>>, vector<256x32xf32>
    tpu.vector_store %arg4[%c24_17, %c32_18], %43 {strides = array<i32>} : memref<584x96xf32, #tpu.memory_space<vmem>>, vector<256x32xf32>,
    %45 = vector.broadcast %33 : vector<256x1xf32> to vector<256x32xf32>
    %46 = arith.mulf %40, %45 : vector<256x32xf32>
    %c24_19 = arith.constant 24 : index
    %c64 = arith.constant 64 : index
    %47 = vector.load %arg4[%c24_19, %c64] : memref<584x96xf32, #tpu.memory_space<vmem>>, vector<256x32xf32>
    tpu.vector_store %arg4[%c24_19, %c64], %46 {strides = array<i32>} : memref<584x96xf32, #tpu.memory_space<vmem>>, vector<256x32xf32>,
    %48 = vector.extract_strided_slice %8 {offsets = [256, 0], sizes = [256, 32], strides = [1, 1]} : vector<512x32xf32> to vector<256x32xf32>
    %c304 = arith.constant 304 : index
    %c0_20 = arith.constant 0 : index
    %49 = vector.load %arg4[%c304, %c0_20] : memref<584x96xf32, #tpu.memory_space<vmem>>, vector<256x32xf32>
    tpu.vector_store %arg4[%c304, %c0_20], %48 {strides = array<i32>} : memref<584x96xf32, #tpu.memory_space<vmem>>, vector<256x32xf32>,
    %50 = vector.broadcast %29 : vector<256x1xf32> to vector<256x32xf32>
    %51 = arith.mulf %48, %50 : vector<256x32xf32>
    %c304_21 = arith.constant 304 : index
    %c32_22 = arith.constant 32 : index
    %52 = vector.load %arg4[%c304_21, %c32_22] : memref<584x96xf32, #tpu.memory_space<vmem>>, vector<256x32xf32>
    tpu.vector_store %arg4[%c304_21, %c32_22], %51 {strides = array<i32>} : memref<584x96xf32, #tpu.memory_space<vmem>>, vector<256x32xf32>,
    %53 = vector.broadcast %33 : vector<256x1xf32> to vector<256x32xf32>
    %54 = arith.mulf %48, %53 : vector<256x32xf32>
    %c304_23 = arith.constant 304 : index
    %c64_24 = arith.constant 64 : index
    %55 = vector.load %arg4[%c304_23, %c64_24] : memref<584x96xf32, #tpu.memory_space<vmem>>, vector<256x32xf32>
    tpu.vector_store %arg4[%c304_23, %c64_24], %54 {strides = array<i32>} : memref<584x96xf32, #tpu.memory_space<vmem>>, vector<256x32xf32>,
    %c7 = arith.constant 7 : index
    %c32_25 = arith.constant 32 : index
    %56 = vector.load %arg4[%c7, %c32_25] : memref<584x96xf32, #tpu.memory_space<vmem>>, vector<256x32xf32>
    %57 = arith.truncf %56 : vector<256x32xf32> to vector<256x32xbf16>
    %c0_26 = arith.constant 0 : index
    %c0_27 = arith.constant 0 : index
    %58 = vector.load %arg5[%c0_26, %c0_27] : memref<512x288xbf16, #tpu.memory_space<vmem>>, vector<256x32xbf16>
    tpu.vector_store %arg5[%c0_26, %c0_27], %57 {strides = array<i32>} : memref<512x288xbf16, #tpu.memory_space<vmem>>, vector<256x32xbf16>,
    %c287 = arith.constant 287 : index
    %c32_28 = arith.constant 32 : index
    %59 = vector.load %arg4[%c287, %c32_28] : memref<584x96xf32, #tpu.memory_space<vmem>>, vector<256x32xf32>
    %60 = arith.truncf %59 : vector<256x32xf32> to vector<256x32xbf16>
    %c256 = arith.constant 256 : index
    %c0_29 = arith.constant 0 : index
    %61 = vector.load %arg5[%c256, %c0_29] : memref<512x288xbf16, #tpu.memory_space<vmem>>, vector<256x32xbf16>
    tpu.vector_store %arg5[%c256, %c0_29], %60 {strides = array<i32>} : memref<512x288xbf16, #tpu.memory_space<vmem>>, vector<256x32xbf16>,
    %c8 = arith.constant 8 : index
    %c0_30 = arith.constant 0 : index
    %62 = vector.load %arg4[%c8, %c0_30] : memref<584x96xf32, #tpu.memory_space<vmem>>, vector<256x32xf32>
    %63 = arith.truncf %62 : vector<256x32xf32> to vector<256x32xbf16>
    %c0_31 = arith.constant 0 : index
    %c32_32 = arith.constant 32 : index
    %64 = vector.load %arg5[%c0_31, %c32_32] : memref<512x288xbf16, #tpu.memory_space<vmem>>, vector<256x32xbf16>
    tpu.vector_store %arg5[%c0_31, %c32_32], %63 {strides = array<i32>} : memref<512x288xbf16, #tpu.memory_space<vmem>>, vector<256x32xbf16>,
    %c288 = arith.constant 288 : index
    %c0_33 = arith.constant 0 : index
    %65 = vector.load %arg4[%c288, %c0_33] : memref<584x96xf32, #tpu.memory_space<vmem>>, vector<256x32xf32>
    %66 = arith.truncf %65 : vector<256x32xf32> to vector<256x32xbf16>
    %c256_34 = arith.constant 256 : index
    %c32_35 = arith.constant 32 : index
    %67 = vector.load %arg5[%c256_34, %c32_35] : memref<512x288xbf16, #tpu.memory_space<vmem>>, vector<256x32xbf16>
    tpu.vector_store %arg5[%c256_34, %c32_35], %66 {strides = array<i32>} : memref<512x288xbf16, #tpu.memory_space<vmem>>, vector<256x32xbf16>,
    %c9 = arith.constant 9 : index
    %c64_36 = arith.constant 64 : index
    %68 = vector.load %arg4[%c9, %c64_36] : memref<584x96xf32, #tpu.memory_space<vmem>>, vector<256x32xf32>
    %69 = arith.truncf %68 : vector<256x32xf32> to vector<256x32xbf16>
    %c0_37 = arith.constant 0 : index
    %c64_38 = arith.constant 64 : index
    %70 = vector.load %arg5[%c0_37, %c64_38] : memref<512x288xbf16, #tpu.memory_space<vmem>>, vector<256x32xbf16>
    tpu.vector_store %arg5[%c0_37, %c64_38], %69 {strides = array<i32>} : memref<512x288xbf16, #tpu.memory_space<vmem>>, vector<256x32xbf16>,
    %c289 = arith.constant 289 : index
    %c64_39 = arith.constant 64 : index
    %71 = vector.load %arg4[%c289, %c64_39] : memref<584x96xf32, #tpu.memory_space<vmem>>, vector<256x32xf32>
    %72 = arith.truncf %71 : vector<256x32xf32> to vector<256x32xbf16>
    %c256_40 = arith.constant 256 : index
    %c64_41 = arith.constant 64 : index
    %73 = vector.load %arg5[%c256_40, %c64_41] : memref<512x288xbf16, #tpu.memory_space<vmem>>, vector<256x32xbf16>
    tpu.vector_store %arg5[%c256_40, %c64_41], %72 {strides = array<i32>} : memref<512x288xbf16, #tpu.memory_space<vmem>>, vector<256x32xbf16>,
    %c23 = arith.constant 23 : index
    %c32_42 = arith.constant 32 : index
    %74 = vector.load %arg4[%c23, %c32_42] : memref<584x96xf32, #tpu.memory_space<vmem>>, vector<256x32xf32>
    %75 = arith.truncf %74 : vector<256x32xf32> to vector<256x32xbf16>
    %c0_43 = arith.constant 0 : index
    %c96 = arith.constant 96 : index
    %76 = vector.load %arg5[%c0_43, %c96] : memref<512x288xbf16, #tpu.memory_space<vmem>>, vector<256x32xbf16>
    tpu.vector_store %arg5[%c0_43, %c96], %75 {strides = array<i32>} : memref<512x288xbf16, #tpu.memory_space<vmem>>, vector<256x32xbf16>,
    %c303 = arith.constant 303 : index
    %c32_44 = arith.constant 32 : index
    %77 = vector.load %arg4[%c303, %c32_44] : memref<584x96xf32, #tpu.memory_space<vmem>>, vector<256x32xf32>
    %78 = arith.truncf %77 : vector<256x32xf32> to vector<256x32xbf16>
    %c256_45 = arith.constant 256 : index
    %c96_46 = arith.constant 96 : index
    %79 = vector.load %arg5[%c256_45, %c96_46] : memref<512x288xbf16, #tpu.memory_space<vmem>>, vector<256x32xbf16>
    tpu.vector_store %arg5[%c256_45, %c96_46], %78 {strides = array<i32>} : memref<512x288xbf16, #tpu.memory_space<vmem>>, vector<256x32xbf16>,
    %c24_47 = arith.constant 24 : index
    %c0_48 = arith.constant 0 : index
    %80 = vector.load %arg4[%c24_47, %c0_48] : memref<584x96xf32, #tpu.memory_space<vmem>>, vector<256x32xf32>
    %81 = arith.truncf %80 : vector<256x32xf32> to vector<256x32xbf16>
    %c0_49 = arith.constant 0 : index
    %c128 = arith.constant 128 : index
    %82 = vector.load %arg5[%c0_49, %c128] : memref<512x288xbf16, #tpu.memory_space<vmem>>, vector<256x32xbf16>
    tpu.vector_store %arg5[%c0_49, %c128], %81 {strides = array<i32>} : memref<512x288xbf16, #tpu.memory_space<vmem>>, vector<256x32xbf16>,
    %c304_50 = arith.constant 304 : index
    %c0_51 = arith.constant 0 : index
    %83 = vector.load %arg4[%c304_50, %c0_51] : memref<584x96xf32, #tpu.memory_space<vmem>>, vector<256x32xf32>
    %84 = arith.truncf %83 : vector<256x32xf32> to vector<256x32xbf16>
    %c256_52 = arith.constant 256 : index
    %c128_53 = arith.constant 128 : index
    %85 = vector.load %arg5[%c256_52, %c128_53] : memref<512x288xbf16, #tpu.memory_space<vmem>>, vector<256x32xbf16>
    tpu.vector_store %arg5[%c256_52, %c128_53], %84 {strides = array<i32>} : memref<512x288xbf16, #tpu.memory_space<vmem>>, vector<256x32xbf16>,
    %c25 = arith.constant 25 : index
    %c64_54 = arith.constant 64 : index
    %86 = vector.load %arg4[%c25, %c64_54] : memref<584x96xf32, #tpu.memory_space<vmem>>, vector<256x32xf32>
    %87 = arith.truncf %86 : vector<256x32xf32> to vector<256x32xbf16>
    %c0_55 = arith.constant 0 : index
    %c160 = arith.constant 160 : index
    %88 = vector.load %arg5[%c0_55, %c160] : memref<512x288xbf16, #tpu.memory_space<vmem>>, vector<256x32xbf16>
    tpu.vector_store %arg5[%c0_55, %c160], %87 {strides = array<i32>} : memref<512x288xbf16, #tpu.memory_space<vmem>>, vector<256x32xbf16>,
    %c305 = arith.constant 305 : index
    %c64_56 = arith.constant 64 : index
    %89 = vector.load %arg4[%c305, %c64_56] : memref<584x96xf32, #tpu.memory_space<vmem>>, vector<256x32xf32>
    %90 = arith.truncf %89 : vector<256x32xf32> to vector<256x32xbf16>
    %c256_57 = arith.constant 256 : index
    %c160_58 = arith.constant 160 : index
    %91 = vector.load %arg5[%c256_57, %c160_58] : memref<512x288xbf16, #tpu.memory_space<vmem>>, vector<256x32xbf16>
    tpu.vector_store %arg5[%c256_57, %c160_58], %90 {strides = array<i32>} : memref<512x288xbf16, #tpu.memory_space<vmem>>, vector<256x32xbf16>,
    %c39 = arith.constant 39 : index
    %c32_59 = arith.constant 32 : index
    %92 = vector.load %arg4[%c39, %c32_59] : memref<584x96xf32, #tpu.memory_space<vmem>>, vector<256x32xf32>
    %93 = arith.truncf %92 : vector<256x32xf32> to vector<256x32xbf16>
    %c0_60 = arith.constant 0 : index
    %c192 = arith.constant 192 : index
    %94 = vector.load %arg5[%c0_60, %c192] : memref<512x288xbf16, #tpu.memory_space<vmem>>, vector<256x32xbf16>
    tpu.vector_store %arg5[%c0_60, %c192], %93 {strides = array<i32>} : memref<512x288xbf16, #tpu.memory_space<vmem>>, vector<256x32xbf16>,
    %c319 = arith.constant 319 : index
    %c32_61 = arith.constant 32 : index
    %95 = vector.load %arg4[%c319, %c32_61] : memref<584x96xf32, #tpu.memory_space<vmem>>, vector<256x32xf32>
    %96 = arith.truncf %95 : vector<256x32xf32> to vector<256x32xbf16>
    %c256_62 = arith.constant 256 : index
    %c192_63 = arith.constant 192 : index
    %97 = vector.load %arg5[%c256_62, %c192_63] : memref<512x288xbf16, #tpu.memory_space<vmem>>, vector<256x32xbf16>
    tpu.vector_store %arg5[%c256_62, %c192_63], %96 {strides = array<i32>} : memref<512x288xbf16, #tpu.memory_space<vmem>>, vector<256x32xbf16>,
    %c40 = arith.constant 40 : index
    %c0_64 = arith.constant 0 : index
    %98 = vector.load %arg4[%c40, %c0_64] : memref<584x96xf32, #tpu.memory_space<vmem>>, vector<256x32xf32>
    %99 = arith.truncf %98 : vector<256x32xf32> to vector<256x32xbf16>
    %c0_65 = arith.constant 0 : index
    %c224 = arith.constant 224 : index
    %100 = vector.load %arg5[%c0_65, %c224] : memref<512x288xbf16, #tpu.memory_space<vmem>>, vector<256x32xbf16>
    tpu.vector_store %arg5[%c0_65, %c224], %99 {strides = array<i32>} : memref<512x288xbf16, #tpu.memory_space<vmem>>, vector<256x32xbf16>,
    %c320 = arith.constant 320 : index
    %c0_66 = arith.constant 0 : index
    %101 = vector.load %arg4[%c320, %c0_66] : memref<584x96xf32, #tpu.memory_space<vmem>>, vector<256x32xf32>
    %102 = arith.truncf %101 : vector<256x32xf32> to vector<256x32xbf16>
    %c256_67 = arith.constant 256 : index
    %c224_68 = arith.constant 224 : index
    %103 = vector.load %arg5[%c256_67, %c224_68] : memref<512x288xbf16, #tpu.memory_space<vmem>>, vector<256x32xbf16>
    tpu.vector_store %arg5[%c256_67, %c224_68], %102 {strides = array<i32>} : memref<512x288xbf16, #tpu.memory_space<vmem>>, vector<256x32xbf16>,
    %c41 = arith.constant 41 : index
    %c64_69 = arith.constant 64 : index
    %104 = vector.load %arg4[%c41, %c64_69] : memref<584x96xf32, #tpu.memory_space<vmem>>, vector<256x32xf32>
    %105 = arith.truncf %104 : vector<256x32xf32> to vector<256x32xbf16>
    %c0_70 = arith.constant 0 : index
    %c256_71 = arith.constant 256 : index
    %106 = vector.load %arg5[%c0_70, %c256_71] : memref<512x288xbf16, #tpu.memory_space<vmem>>, vector<256x32xbf16>
    tpu.vector_store %arg5[%c0_70, %c256_71], %105 {strides = array<i32>} : memref<512x288xbf16, #tpu.memory_space<vmem>>, vector<256x32xbf16>,
    %c321 = arith.constant 321 : index
    %c64_72 = arith.constant 64 : index
    %107 = vector.load %arg4[%c321, %c64_72] : memref<584x96xf32, #tpu.memory_space<vmem>>, vector<256x32xf32>
    %108 = arith.truncf %107 : vector<256x32xf32> to vector<256x32xbf16>
    %c256_73 = arith.constant 256 : index
    %c256_74 = arith.constant 256 : index
    %109 = vector.load %arg5[%c256_73, %c256_74] : memref<512x288xbf16, #tpu.memory_space<vmem>>, vector<256x32xbf16>
    tpu.vector_store %arg5[%c256_73, %c256_74], %108 {strides = array<i32>} : memref<512x288xbf16, #tpu.memory_space<vmem>>, vector<256x32xbf16>,
    %c48 = arith.constant 48 : index
    %c0_75 = arith.constant 0 : index
    %110 = vector.load %arg2[%c48, %c0_75] : memref<688x128xbf16, #tpu.memory_space<vmem>>, vector<288x64xbf16>
    %c336 = arith.constant 336 : index
    %c0_76 = arith.constant 0 : index
    %111 = vector.load %arg2[%c336, %c0_76] : memref<688x128xbf16, #tpu.memory_space<vmem>>, vector<1x64xbf16>
    %c0_77 = arith.constant 0 : index
    %c0_78 = arith.constant 0 : index
    %112 = vector.load %arg5[%c0_77, %c0_78] : memref<512x288xbf16, #tpu.memory_space<vmem>>, vector<512x288xbf16>
    %cst_79 = arith.constant dense<0.000000e+00> : vector<512x64xf32>
    %113 = tpu.matmul %112, %110, %cst_79 {dimension_numbers = #tpu.dot_dimension_numbers<[1], [0], [0], [1], [0, 0, 1, 1], [], []>} : vector<512x288xbf16>, vector<288x64xbf16>, vector<512x64xf32> -> vector<512x64xf32>
    %114 = arith.extf %111 : vector<1x64xbf16> to vector<1x64xf32>
    %115 = vector.broadcast %114 : vector<1x64xf32> to vector<512x64xf32>
    %116 = arith.addf %113, %115 : vector<512x64xf32>
    %cst_80 = arith.constant 0.000000e+00 : f32
    %117 = vector.broadcast %cst_80 : f32 to vector<512x64xf32>
    %118 = arith.maximumf %116, %117 : vector<512x64xf32>
    %119 = vector.extract_strided_slice %118 {offsets = [0, 0], sizes = [256, 64], strides = [1, 1]} : vector<512x64xf32> to vector<256x64xf32>
    %cst_81 = arith.constant dense<0.000000e+00> : vector<64xf32>
    %120 = vector.multi_reduction <add>, %119, %cst_81 [0] : vector<256x64xf32> to vector<64xf32>
    %121 = vector.shape_cast %120 : vector<64xf32> to vector<1x64xf32>
    %cst_82 = arith.constant 3.906250e-03 : f32
    %122 = vector.broadcast %cst_82 : f32 to vector<1x64xf32>
    %123 = arith.mulf %121, %122 : vector<1x64xf32>
    %c0_83 = arith.constant 0 : index
    %c0_84 = arith.constant 0 : index
    %124 = vector.load %arg6[%c0_83, %c0_84] : memref<2x72xf32, #tpu.memory_space<vmem>>, vector<1x64xf32>
    tpu.vector_store %arg6[%c0_83, %c0_84], %123 {strides = array<i32>} : memref<2x72xf32, #tpu.memory_space<vmem>>, vector<1x64xf32>,
    %125 = vector.extract_strided_slice %118 {offsets = [256, 0], sizes = [256, 64], strides = [1, 1]} : vector<512x64xf32> to vector<256x64xf32>
    %cst_85 = arith.constant dense<0.000000e+00> : vector<64xf32>
    %126 = vector.multi_reduction <add>, %125, %cst_85 [0] : vector<256x64xf32> to vector<64xf32>
    %127 = vector.shape_cast %126 : vector<64xf32> to vector<1x64xf32>
    %cst_86 = arith.constant 3.906250e-03 : f32
    %128 = vector.broadcast %cst_86 : f32 to vector<1x64xf32>
    %129 = arith.mulf %127, %128 : vector<1x64xf32>
    %c1 = arith.constant 1 : index
    %c0_87 = arith.constant 0 : index
    %130 = vector.load %arg6[%c1, %c0_87] : memref<2x72xf32, #tpu.memory_space<vmem>>, vector<1x64xf32>
    tpu.vector_store %arg6[%c1, %c0_87], %129 {strides = array<i32>} : memref<2x72xf32, #tpu.memory_space<vmem>>, vector<1x64xf32>,
    %c0_88 = arith.constant 0 : index
    %c0_89 = arith.constant 0 : index
    %131 = vector.load %arg1[%c0_88, %c0_89] : memref<2x8xf32, #tpu.memory_space<vmem>>, vector<2x8xf32>
    %c0_90 = arith.constant 0 : index
    %c64_91 = arith.constant 64 : index
    %132 = vector.load %arg6[%c0_90, %c64_91] : memref<2x72xf32, #tpu.memory_space<vmem>>, vector<2x8xf32>
    tpu.vector_store %arg6[%c0_90, %c64_91], %131 {strides = array<i32>} : memref<2x72xf32, #tpu.memory_space<vmem>>, vector<2x8xf32>,
    %c368 = arith.constant 368 : index
    %c0_92 = arith.constant 0 : index
    %133 = vector.load %arg2[%c368, %c0_92] : memref<688x128xbf16, #tpu.memory_space<vmem>>, vector<72x128xbf16>
    %c448 = arith.constant 448 : index
    %c0_93 = arith.constant 0 : index
    %134 = vector.load %arg2[%c448, %c0_93] : memref<688x128xbf16, #tpu.memory_space<vmem>>, vector<1x128xbf16>
    %c0_94 = arith.constant 0 : index
    %c0_95 = arith.constant 0 : index
    %135 = vector.load %arg6[%c0_94, %c0_95] : memref<2x72xf32, #tpu.memory_space<vmem>>, vector<2x72xf32>
    %136 = arith.truncf %135 : vector<2x72xf32> to vector<2x72xbf16>
    %cst_96 = arith.constant dense<0.000000e+00> : vector<2x128xf32>
    %137 = tpu.matmul %136, %133, %cst_96 {dimension_numbers = #tpu.dot_dimension_numbers<[1], [0], [0], [1], [0, 0, 1, 1], [], []>} : vector<2x72xbf16>, vector<72x128xbf16>, vector<2x128xf32> -> vector<2x128xf32>
    %138 = arith.extf %134 : vector<1x128xbf16> to vector<1x128xf32>
    %139 = vector.broadcast %138 : vector<1x128xf32> to vector<2x128xf32>
    %140 = arith.addf %137, %139 : vector<2x128xf32>
    %cst_97 = arith.constant 0.000000e+00 : f32
    %141 = vector.broadcast %cst_97 : f32 to vector<2x128xf32>
    %142 = arith.maximumf %140, %141 : vector<2x128xf32>
    %c464 = arith.constant 464 : index
    %c0_98 = arith.constant 0 : index
    %143 = vector.load %arg2[%c464, %c0_98] : memref<688x128xbf16, #tpu.memory_space<vmem>>, vector<128x64xbf16>
    %c592 = arith.constant 592 : index
    %c0_99 = arith.constant 0 : index
    %144 = vector.load %arg2[%c592, %c0_99] : memref<688x128xbf16, #tpu.memory_space<vmem>>, vector<1x64xbf16>
    %145 = arith.truncf %142 : vector<2x128xf32> to vector<2x128xbf16>
    %cst_100 = arith.constant dense<0.000000e+00> : vector<2x64xf32>
    %146 = tpu.matmul %145, %143, %cst_100 {dimension_numbers = #tpu.dot_dimension_numbers<[1], [0], [0], [1], [0, 0, 1, 1], [], []>} : vector<2x128xbf16>, vector<128x64xbf16>, vector<2x64xf32> -> vector<2x64xf32>
    %147 = arith.extf %144 : vector<1x64xbf16> to vector<1x64xf32>
    %148 = vector.broadcast %147 : vector<1x64xf32> to vector<2x64xf32>
    %149 = arith.addf %146, %148 : vector<2x64xf32>
    %cst_101 = arith.constant 0.000000e+00 : f32
    %150 = vector.broadcast %cst_101 : f32 to vector<2x64xf32>
    %151 = arith.maximumf %149, %150 : vector<2x64xf32>
    %c608 = arith.constant 608 : index
    %c0_102 = arith.constant 0 : index
    %152 = vector.load %arg2[%c608, %c0_102] : memref<688x128xbf16, #tpu.memory_space<vmem>>, vector<64x8xbf16>
    %c672 = arith.constant 672 : index
    %c0_103 = arith.constant 0 : index
    %153 = vector.load %arg2[%c672, %c0_103] : memref<688x128xbf16, #tpu.memory_space<vmem>>, vector<1x8xbf16>
    %154 = arith.truncf %151 : vector<2x64xf32> to vector<2x64xbf16>
    %cst_104 = arith.constant dense<0.000000e+00> : vector<2x8xf32>
    %155 = tpu.matmul %154, %152, %cst_104 {dimension_numbers = #tpu.dot_dimension_numbers<[1], [0], [0], [1], [0, 0, 1, 1], [], []>} : vector<2x64xbf16>, vector<64x8xbf16>, vector<2x8xf32> -> vector<2x8xf32>
    %156 = arith.extf %153 : vector<1x8xbf16> to vector<1x8xf32>
    %157 = vector.broadcast %156 : vector<1x8xf32> to vector<2x8xf32>
    %158 = arith.addf %155, %157 : vector<2x8xf32>
    %c0_105 = arith.constant 0 : index
    %c0_106 = arith.constant 0 : index
    %159 = vector.load %arg3[%c0_105, %c0_106] : memref<2x8xf32, #tpu.memory_space<vmem>>, vector<2x8xf32>
    tpu.vector_store %arg3[%c0_105, %c0_106], %158 {strides = array<i32>} : memref<2x8xf32, #tpu.memory_space<vmem>>, vector<2x8xf32>,
    return
  }
}

</mosaic_0001>

<llo_original>
// kernel: tpu_custom_call.1
$region0: #{tpu_custom_call.1}
  #allocation0 [shape = 'u32[]', space=smem, size = 0x4, offset = 0x4, fixed_abs, tag = 'smem constant byte address 0x4 - core index']
  #allocation1 [shape = 'u32[144,128]{1,0:T(1,128)}', space=vmem, size = 0x12000, scoped, tag = 'internal scratch']
  #allocation2 [shape = 'f32[584,96]{1,0:T(8,128)}', space=vmem, size = 0x49000, scoped, tag = 'scratch operand']
  #allocation3 [shape = 'bf16[512,288]{1,0:T(16,128)(2,1)}', space=vmem, size = 0x60000, scoped, tag = 'scratch operand']
  #allocation4 [shape = 'f32[2,72]{1,0:T(2,128)}', space=vmem, size = 0x400, scoped, tag = 'scratch operand']
  %s0 = inlined_call_operand.vmem [shape: bf16[512,32], index: 0, kind: input, shape index: {}]
  %s1 = inlined_call_operand.vmem [shape: f32[2,8], index: 1, kind: input, shape index: {}]
  %s2 = inlined_call_operand.hbm [shape: bf16[688,128], index: 2, kind: input, shape index: {}]
  %s3 = inlined_call_operand.hbm [shape: f32[2,8], index: 3, kind: output, shape index: {}]
  %s4 = sld [smem:[#allocation0]]
  $region26: #{tpu_custom_call.1} parent=0
    _
  %s6 = ssub.s32 1, %s4
  %s7 = scalar_select 0, %s6, %s4
  $region1: #{tpu_custom_call.1} parent=0
    #allocation5 [shape = 'u8[176128]{0}', space=vmem, size = 0x2b000, scoped, tag = 'input window, operand 2, single buffered']
    #allocation6 [shape = 's32[1]{0}', space=sflag, size = 0x4, scoped, tag = 'scoped memory for tpu_custom_call.1']
    #allocation7 [shape = 's32[1]{0}', space=sflag, size = 0x4, scoped, tag = 'scoped memory for tpu_custom_call.1']
    #allocation8 [shape = 'u8[1024]{0}', space=vmem, size = 0x400, scoped, tag = 'output window, operand 0, single buffered']
    %8 = vsyncpa [#allocation6], 0
    %9 = vsyncpa [#allocation7], 0
    // Predicated region
    $region2: #{tpu_custom_call.1} parent=1 // pred_check
      _
    $region3: #{tpu_custom_call.1} parent=1 // pred_check_branch
      %11 = sbr.rel (0) target = $region5
    $region4: #{tpu_custom_call.1} parent=1 // pred_region
      _
    $region5: #{tpu_custom_call.1} parent=1 // pred_fallthru
      _
    // Predicated region
    $region6: #{tpu_custom_call.1} parent=1 // pred_check
      _
    $region7: #{tpu_custom_call.1} parent=1 // pred_check_branch
      %13 = sbr.rel (0) target = $region9
    $region8: #{tpu_custom_call.1} parent=1 // pred_region
      _
    $region9: #{tpu_custom_call.1} parent=1 // pred_fallthru
      _
    // Predicated region
    $region10: #{tpu_custom_call.1} parent=1 // pred_check
      _
    $region11: #{tpu_custom_call.1} parent=1 // pred_check_branch
      %15 = sbr.rel (0) target = $region13
    $region12: #{tpu_custom_call.1} parent=1 // pred_region
      %s17 = ssub.s32 5504, 5504
      %18 = vsyncadd [#allocation6], %s17
      %s19 = sshll.u32 [#allocation5], 4
      %s20 = int_to_ptr.vmem [resolvable:$true] %s19
      %25 = dma.hbm_to_vmem [thread:$0]  %s2, 5504, %s20, [#allocation6], 64, 64, 4
    $region13: #{tpu_custom_call.1} parent=1 // pred_fallthru
      _
    // Predicated region
    $region14: #{tpu_custom_call.1} parent=1 // pred_check
      _
    $region15: #{tpu_custom_call.1} parent=1 // pred_check_branch
      %27 = sbr.rel (0) target = $region17
    $region16: #{tpu_custom_call.1} parent=1 // pred_region
      %28 = dma.done [#allocation6], 5504
    $region17: #{tpu_custom_call.1} parent=1 // pred_fallthru
      _
    %v30 = vld [vmem:[#allocation5] sm:$0xf]
    %v31 = vld [vmem:[#allocation5 + $0x4] sm:$0xf]
    %v32 = vld [vmem:[#allocation5 + $0x8] sm:$0xf]
    %v33 = vld [vmem:[#allocation5 + $0xc] sm:$0xf]
    %v34 = vld [vmem:[#allocation5 + $0x10] sm:$0x1]
    %v35 = vld [vmem:[%s0] sm:$0xf]
    %v36 = vld [vmem:[%s0 + $0x4] sm:$0xf]
    %v37 = vld [vmem:[%s0 + $0x8] sm:$0xf]
    %v38 = vld [vmem:[%s0 + $0xc] sm:$0xf]
    %v39 = vld [vmem:[%s0 + $0x10] sm:$0xf]
    %v40 = vld [vmem:[%s0 + $0x14] sm:$0xf]
    %v41 = vld [vmem:[%s0 + $0x18] sm:$0xf]
    %v42 = vld [vmem:[%s0 + $0x1c] sm:$0xf]
    %v43 = vld [vmem:[%s0 + $0x20] sm:$0xf]
    %v44 = vld [vmem:[%s0 + $0x24] sm:$0xf]
    %v45 = vld [vmem:[%s0 + $0x28] sm:$0xf]
    %v46 = vld [vmem:[%s0 + $0x2c] sm:$0xf]
    %v47 = vld [vmem:[%s0 + $0x30] sm:$0xf]
    %v48 = vld [vmem:[%s0 + $0x34] sm:$0xf]
    %v49 = vld [vmem:[%s0 + $0x38] sm:$0xf]
    %v50 = vld [vmem:[%s0 + $0x3c] sm:$0xf]
    %v51 = vld [vmem:[%s0 + $0x40] sm:$0xf]
    %v52 = vld [vmem:[%s0 + $0x44] sm:$0xf]
    %v53 = vld [vmem:[%s0 + $0x48] sm:$0xf]
    %v54 = vld [vmem:[%s0 + $0x4c] sm:$0xf]
    %v55 = vld [vmem:[%s0 + $0x50] sm:$0xf]
    %v56 = vld [vmem:[%s0 + $0x54] sm:$0xf]
    %v57 = vld [vmem:[%s0 + $0x58] sm:$0xf]
    %v58 = vld [vmem:[%s0 + $0x5c] sm:$0xf]
    %v59 = vld [vmem:[%s0 + $0x60] sm:$0xf]
    %v60 = vld [vmem:[%s0 + $0x64] sm:$0xf]
    %v61 = vld [vmem:[%s0 + $0x68] sm:$0xf]
    %v62 = vld [vmem:[%s0 + $0x6c] sm:$0xf]
    %v63 = vld [vmem:[%s0 + $0x70] sm:$0xf]
    %v64 = vld [vmem:[%s0 + $0x74] sm:$0xf]
    %v65 = vld [vmem:[%s0 + $0x78] sm:$0xf]
    %v66 = vld [vmem:[%s0 + $0x7c] sm:$0xf]
    %v67 = vld [vmem:[%s0 + $0x80] sm:$0xf]
    %v68 = vld [vmem:[%s0 + $0x84] sm:$0xf]
    %v69 = vld [vmem:[%s0 + $0x88] sm:$0xf]
    %v70 = vld [vmem:[%s0 + $0x8c] sm:$0xf]
    %v71 = vld [vmem:[%s0 + $0x90] sm:$0xf]
    %v72 = vld [vmem:[%s0 + $0x94] sm:$0xf]
    %v73 = vld [vmem:[%s0 + $0x98] sm:$0xf]
    %v74 = vld [vmem:[%s0 + $0x9c] sm:$0xf]
    %v75 = vld [vmem:[%s0 + $0xa0] sm:$0xf]
    %v76 = vld [vmem:[%s0 + $0xa4] sm:$0xf]
    %v77 = vld [vmem:[%s0 + $0xa8] sm:$0xf]
    %v78 = vld [vmem:[%s0 + $0xac] sm:$0xf]
    %v79 = vld [vmem:[%s0 + $0xb0] sm:$0xf]
    %v80 = vld [vmem:[%s0 + $0xb4] sm:$0xf]
    %v81 = vld [vmem:[%s0 + $0xb8] sm:$0xf]
    %v82 = vld [vmem:[%s0 + $0xbc] sm:$0xf]
    %v83 = vld [vmem:[%s0 + $0xc0] sm:$0xf]
    %v84 = vld [vmem:[%s0 + $0xc4] sm:$0xf]
    %v85 = vld [vmem:[%s0 + $0xc8] sm:$0xf]
    %v86 = vld [vmem:[%s0 + $0xcc] sm:$0xf]
    %v87 = vld [vmem:[%s0 + $0xd0] sm:$0xf]
    %v88 = vld [vmem:[%s0 + $0xd4] sm:$0xf]
    %v89 = vld [vmem:[%s0 + $0xd8] sm:$0xf]
    %v90 = vld [vmem:[%s0 + $0xdc] sm:$0xf]
    %v91 = vld [vmem:[%s0 + $0xe0] sm:$0xf]
    %v92 = vld [vmem:[%s0 + $0xe4] sm:$0xf]
    %v93 = vld [vmem:[%s0 + $0xe8] sm:$0xf]
    %v94 = vld [vmem:[%s0 + $0xec] sm:$0xf]
    %v95 = vld [vmem:[%s0 + $0xf0] sm:$0xf]
    %v96 = vld [vmem:[%s0 + $0xf4] sm:$0xf]
    %v97 = vld [vmem:[%s0 + $0xf8] sm:$0xf]
    %v98 = vld [vmem:[%s0 + $0xfc] sm:$0xf]
    %v99 = vunpack.c.l.bf16 %v34
    %v100 = vlaneseq
    %v101 = vshrl.u32 %v100, 7
    %v102 = vsub.s32 0, %v101
    %v103 = vrot.slane %v99, %v102
    %v168 = vunpack.c.l.b16 %v35
    %v169 = vunpack.c.l.b16 %v36
    %v170 = vunpack.c.l.b16 %v37
    %v171 = vunpack.c.l.b16 %v38
    %v172 = vunpack.c.l.b16 %v39
    %v173 = vunpack.c.l.b16 %v40
    %v174 = vunpack.c.l.b16 %v41
    %v175 = vunpack.c.l.b16 %v42
    %v176 = vunpack.c.l.b16 %v43
    %v177 = vunpack.c.l.b16 %v44
    %v178 = vunpack.c.l.b16 %v45
    %v179 = vunpack.c.l.b16 %v46
    %v180 = vunpack.c.l.b16 %v47
    %v181 = vunpack.c.l.b16 %v48
    %v182 = vunpack.c.l.b16 %v49
    %v183 = vunpack.c.l.b16 %v50
    %v184 = vunpack.c.l.b16 %v51
    %v185 = vunpack.c.l.b16 %v52
    %v186 = vunpack.c.l.b16 %v53
    %v187 = vunpack.c.l.b16 %v54
    %v188 = vunpack.c.l.b16 %v55
    %v189 = vunpack.c.l.b16 %v56
    %v190 = vunpack.c.l.b16 %v57
    %v191 = vunpack.c.l.b16 %v58
    %v192 = vunpack.c.l.b16 %v59
    %v193 = vunpack.c.l.b16 %v60
    %v194 = vunpack.c.l.b16 %v61
    %v195 = vunpack.c.l.b16 %v62
    %v196 = vunpack.c.l.b16 %v63
    %v197 = vunpack.c.l.b16 %v64
    %v198 = vunpack.c.l.b16 %v65
    %v199 = vunpack.c.l.b16 %v66
    %v200 = vunpack.c.l.b16 %v67
    %v201 = vunpack.c.l.b16 %v68
    %v202 = vunpack.c.l.b16 %v69
    %v203 = vunpack.c.l.b16 %v70
    %v204 = vunpack.c.l.b16 %v71
    %v205 = vunpack.c.l.b16 %v72
    %v206 = vunpack.c.l.b16 %v73
    %v207 = vunpack.c.l.b16 %v74
    %v208 = vunpack.c.l.b16 %v75
    %v209 = vunpack.c.l.b16 %v76
    %v210 = vunpack.c.l.b16 %v77
    %v211 = vunpack.c.l.b16 %v78
    %v212 = vunpack.c.l.b16 %v79
    %v213 = vunpack.c.l.b16 %v80
    %v214 = vunpack.c.l.b16 %v81
    %v215 = vunpack.c.l.b16 %v82
    %v216 = vunpack.c.l.b16 %v83
    %v217 = vunpack.c.l.b16 %v84
    %v218 = vunpack.c.l.b16 %v85
    %v219 = vunpack.c.l.b16 %v86
    %v220 = vunpack.c.l.b16 %v87
    %v221 = vunpack.c.l.b16 %v88
    %v222 = vunpack.c.l.b16 %v89
    %v223 = vunpack.c.l.b16 %v90
    %v224 = vunpack.c.l.b16 %v91
    %v225 = vunpack.c.l.b16 %v92
    %v226 = vunpack.c.l.b16 %v93
    %v227 = vunpack.c.l.b16 %v94
    %v228 = vunpack.c.l.b16 %v95
    %v229 = vunpack.c.l.b16 %v96
    %v230 = vunpack.c.l.b16 %v97
    %v231 = vunpack.c.l.b16 %v98
    %v232 = vpack.c.b16 %v169, %v168
    %v233 = vpack.c.b16 %v171, %v170
    %v234 = vpack.c.b16 %v173, %v172
    %v235 = vpack.c.b16 %v175, %v174
    %v236 = vpack.c.b16 %v177, %v176
    %v237 = vpack.c.b16 %v179, %v178
    %v238 = vpack.c.b16 %v181, %v180
    %v239 = vpack.c.b16 %v183, %v182
    %v240 = vpack.c.b16 %v185, %v184
    %v241 = vpack.c.b16 %v187, %v186
    %v242 = vpack.c.b16 %v189, %v188
    %v243 = vpack.c.b16 %v191, %v190
    %v244 = vpack.c.b16 %v193, %v192
    %v245 = vpack.c.b16 %v195, %v194
    %v246 = vpack.c.b16 %v197, %v196
    %v247 = vpack.c.b16 %v199, %v198
    %v248 = vpack.c.b16 %v201, %v200
    %v249 = vpack.c.b16 %v203, %v202
    %v250 = vpack.c.b16 %v205, %v204
    %v251 = vpack.c.b16 %v207, %v206
    %v252 = vpack.c.b16 %v209, %v208
    %v253 = vpack.c.b16 %v211, %v210
    %v254 = vpack.c.b16 %v213, %v212
    %v255 = vpack.c.b16 %v215, %v214
    %v256 = vpack.c.b16 %v217, %v216
    %v257 = vpack.c.b16 %v219, %v218
    %v258 = vpack.c.b16 %v221, %v220
    %v259 = vpack.c.b16 %v223, %v222
    %v260 = vpack.c.b16 %v225, %v224
    %v261 = vpack.c.b16 %v227, %v226
    %v262 = vpack.c.b16 %v229, %v228
    %v263 = vpack.c.b16 %v231, %v230
    %v268 = vunpack.c.l.b16 %v30
    %v269 = vunpack.c.l.b16 %v31
    %v270 = vunpack.c.l.b16 %v32
    %v271 = vunpack.c.l.b16 %v33
    %v272 = vpack.c.b16 %v269, %v268
    %v273 = vpack.c.b16 %v271, %v270
    %vm276 = vcmask 261120
    %v278 = vsel %vm276, %v232, 0
    %v281 = vsel %vm276, %v233, 0
    %v284 = vsel %vm276, %v234, 0
    %v287 = vsel %vm276, %v235, 0
    %v290 = vsel %vm276, %v236, 0
    %v293 = vsel %vm276, %v237, 0
    %v296 = vsel %vm276, %v238, 0
    %v299 = vsel %vm276, %v239, 0
    %v302 = vsel %vm276, %v240, 0
    %v305 = vsel %vm276, %v241, 0
    %v308 = vsel %vm276, %v242, 0
    %v311 = vsel %vm276, %v243, 0
    %v314 = vsel %vm276, %v244, 0
    %v317 = vsel %vm276, %v245, 0
    %v320 = vsel %vm276, %v246, 0
    %v323 = vsel %vm276, %v247, 0
    %v326 = vsel %vm276, %v248, 0
    %v329 = vsel %vm276, %v249, 0
    %v332 = vsel %vm276, %v250, 0
    %v335 = vsel %vm276, %v251, 0
    %v338 = vsel %vm276, %v252, 0
    %v341 = vsel %vm276, %v253, 0
    %v344 = vsel %vm276, %v254, 0
    %v347 = vsel %vm276, %v255, 0
    %v350 = vsel %vm276, %v256, 0
    %v353 = vsel %vm276, %v257, 0
    %v356 = vsel %vm276, %v258, 0
    %v359 = vsel %vm276, %v259, 0
    %v362 = vsel %vm276, %v260, 0
    %v365 = vsel %vm276, %v261, 0
    %v368 = vsel %vm276, %v262, 0
    %v371 = vsel %vm276, %v263, 0
    %373 = vmatprep.subr.bf16.mxu0 0
    %374 = vmatpush1.bf16.msra.mxu0 %v272
    %375 = vmatprep.subr.bf16.mxu0 0
    %376 = vmatpush1.bf16.msra.mxu0 %v273
    %377 = vmatprep.subr.bf16.mxu0 0
    %378 = vmatpush1.bf16.msra.mxu0 0
    %379 = vmatprep.subr.bf16.mxu0 0
    %380 = vmatpush1.bf16.msra.mxu0 0
    %381 = vmatprep.subr.bf16.mxu0 0
    %382 = vmatpush1.bf16.msra.mxu0 0
    %383 = vmatprep.subr.bf16.mxu0 0
    %384 = vmatpush1.bf16.msra.mxu0 0
    %385 = vmatprep.subr.bf16.mxu0 0
    %386 = vmatpush1.bf16.msra.mxu0 0
    %387 = vmatprep.subr.bf16.mxu0 0
    %388 = vmatpush1.bf16.msra.mxu0 0
    %389 = vmatprep.subr.bf16.mxu0 0
    %390 = vmatpush1.bf16.msra.mxu0 0
    %391 = vmatprep.subr.bf16.mxu0 0
    %392 = vmatpush1.bf16.msra.mxu0 0
    %393 = vmatprep.subr.bf16.mxu0 0
    %394 = vmatpush1.bf16.msra.mxu0 0
    %395 = vmatprep.subr.bf16.mxu0 0
    %396 = vmatpush1.bf16.msra.mxu0 0
    %397 = vmatprep.subr.bf16.mxu0 0
    %398 = vmatpush1.bf16.msra.mxu0 0
    %399 = vmatprep.subr.bf16.mxu0 0
    %400 = vmatpush1.bf16.msra.mxu0 0
    %401 = vmatprep.subr.bf16.mxu0 0
    %402 = vmatpush1.bf16.msra.mxu0 0
    %403 = vmatprep.subr.bf16.mxu0 0
    %404 = vmatpush1.bf16.msra.mxu0 0
    %405 = vmatprep.mubr.bf16.mxu0 0
    %406 = vmatmul.mubr.bf16.gmra.mrb[0].mxu0 %v278
    %v407 = vpop.f32.mrb[0].mxu0
    %v408 = vadd.f32 %v103, %v407
    %v409 = vpop.f32.mrb[0].mxu0
    %v410 = vpop.f32.mrb[0].mxu0
    %v411 = vadd.f32 %v103, %v410
    %v412 = vpop.f32.mrb[0].mxu0
    %413 = vmatprep.mubr.bf16.mxu0 0
    %414 = vmatmul.mubr.bf16.gmra.mrb[0].mxu0 %v281
    %v415 = vpop.f32.mrb[0].mxu0
    %v416 = vadd.f32 %v103, %v415
    %v417 = vpop.f32.mrb[0].mxu0
    %v418 = vpop.f32.mrb[0].mxu0
    %v419 = vadd.f32 %v103, %v418
    %v420 = vpop.f32.mrb[0].mxu0
    %421 = vmatprep.mubr.bf16.mxu0 0
    %422 = vmatmul.mubr.bf16.gmra.mrb[0].mxu0 %v284
    %v423 = vpop.f32.mrb[0].mxu0
    %v424 = vadd.f32 %v103, %v423
    %v425 = vpop.f32.mrb[0].mxu0
    %v426 = vpop.f32.mrb[0].mxu0
    %v427 = vadd.f32 %v103, %v426
    %v428 = vpop.f32.mrb[0].mxu0
    %429 = vmatprep.mubr.bf16.mxu0 0
    %430 = vmatmul.mubr.bf16.gmra.mrb[0].mxu0 %v287
    %v431 = vpop.f32.mrb[0].mxu0
    %v432 = vadd.f32 %v103, %v431
    %v433 = vpop.f32.mrb[0].mxu0
    %v434 = vpop.f32.mrb[0].mxu0
    %v435 = vadd.f32 %v103, %v434
    %v436 = vpop.f32.mrb[0].mxu0
    %437 = vmatprep.mubr.bf16.mxu0 0
    %438 = vmatmul.mubr.bf16.gmra.mrb[0].mxu0 %v290
    %v439 = vpop.f32.mrb[0].mxu0
    %v440 = vadd.f32 %v103, %v439
    %v441 = vpop.f32.mrb[0].mxu0
    %v442 = vpop.f32.mrb[0].mxu0
    %v443 = vadd.f32 %v103, %v442
    %v444 = vpop.f32.mrb[0].mxu0
    %445 = vmatprep.mubr.bf16.mxu0 0
    %446 = vmatmul.mubr.bf16.gmra.mrb[0].mxu0 %v293
    %v447 = vpop.f32.mrb[0].mxu0
    %v448 = vadd.f32 %v103, %v447
    %v449 = vpop.f32.mrb[0].mxu0
    %v450 = vpop.f32.mrb[0].mxu0
    %v451 = vadd.f32 %v103, %v450
    %v452 = vpop.f32.mrb[0].mxu0
    %453 = vmatprep.mubr.bf16.mxu0 0
    %454 = vmatmul.mubr.bf16.gmra.mrb[0].mxu0 %v296
    %v455 = vpop.f32.mrb[0].mxu0
    %v456 = vadd.f32 %v103, %v455
    %v457 = vpop.f32.mrb[0].mxu0
    %v458 = vpop.f32.mrb[0].mxu0
    %v459 = vadd.f32 %v103, %v458
    %v460 = vpop.f32.mrb[0].mxu0
    %461 = vmatprep.mubr.bf16.mxu0 0
    %462 = vmatmul.mubr.bf16.gmra.mrb[0].mxu0 %v299
    %v463 = vpop.f32.mrb[0].mxu0
    %v464 = vadd.f32 %v103, %v463
    %v465 = vpop.f32.mrb[0].mxu0
    %v466 = vpop.f32.mrb[0].mxu0
    %v467 = vadd.f32 %v103, %v466
    %v468 = vpop.f32.mrb[0].mxu0
    %469 = vmatprep.mubr.bf16.mxu0 0
    %470 = vmatmul.mubr.bf16.gmra.mrb[0].mxu0 %v302
    %v471 = vpop.f32.mrb[0].mxu0
    %v472 = vadd.f32 %v103, %v471
    %v473 = vpop.f32.mrb[0].mxu0
    %v474 = vpop.f32.mrb[0].mxu0
    %v475 = vadd.f32 %v103, %v474
    %v476 = vpop.f32.mrb[0].mxu0
    %477 = vmatprep.mubr.bf16.mxu0 0
    %478 = vmatmul.mubr.bf16.gmra.mrb[0].mxu0 %v305
    %v479 = vpop.f32.mrb[0].mxu0
    %v480 = vadd.f32 %v103, %v479
    %v481 = vpop.f32.mrb[0].mxu0
    %v482 = vpop.f32.mrb[0].mxu0
    %v483 = vadd.f32 %v103, %v482
    %v484 = vpop.f32.mrb[0].mxu0
    %485 = vmatprep.mubr.bf16.mxu0 0
    %486 = vmatmul.mubr.bf16.gmra.mrb[0].mxu0 %v308
    %v487 = vpop.f32.mrb[0].mxu0
    %v488 = vadd.f32 %v103, %v487
    %v489 = vpop.f32.mrb[0].mxu0
    %v490 = vpop.f32.mrb[0].mxu0
    %v491 = vadd.f32 %v103, %v490
    %v492 = vpop.f32.mrb[0].mxu0
    %493 = vmatprep.mubr.bf16.mxu0 0
    %494 = vmatmul.mubr.bf16.gmra.mrb[0].mxu0 %v311
    %v495 = vpop.f32.mrb[0].mxu0
    %v496 = vadd.f32 %v103, %v495
    %v497 = vpop.f32.mrb[0].mxu0
    %v498 = vpop.f32.mrb[0].mxu0
    %v499 = vadd.f32 %v103, %v498
    %v500 = vpop.f32.mrb[0].mxu0
    %501 = vmatprep.mubr.bf16.mxu0 0
    %502 = vmatmul.mubr.bf16.gmra.mrb[0].mxu0 %v314
    %v503 = vpop.f32.mrb[0].mxu0
    %v504 = vadd.f32 %v103, %v503
    %v505 = vpop.f32.mrb[0].mxu0
    %v506 = vpop.f32.mrb[0].mxu0
    %v507 = vadd.f32 %v103, %v506
    %v508 = vpop.f32.mrb[0].mxu0
    %509 = vmatprep.mubr.bf16.mxu0 0
    %510 = vmatmul.mubr.bf16.gmra.mrb[0].mxu0 %v317
    %v511 = vpop.f32.mrb[0].mxu0
    %v512 = vadd.f32 %v103, %v511
    %v513 = vpop.f32.mrb[0].mxu0
    %v514 = vpop.f32.mrb[0].mxu0
    %v515 = vadd.f32 %v103, %v514
    %v516 = vpop.f32.mrb[0].mxu0
    %517 = vmatprep.mubr.bf16.mxu0 0
    %518 = vmatmul.mubr.bf16.gmra.mrb[0].mxu0 %v320
    %v519 = vpop.f32.mrb[0].mxu0
    %v520 = vadd.f32 %v103, %v519
    %v521 = vpop.f32.mrb[0].mxu0
    %v522 = vpop.f32.mrb[0].mxu0
    %v523 = vadd.f32 %v103, %v522
    %v524 = vpop.f32.mrb[0].mxu0
    %525 = vmatprep.mubr.bf16.mxu0 0
    %526 = vmatmul.mubr.bf16.gmra.mrb[0].mxu0 %v323
    %v527 = vpop.f32.mrb[0].mxu0
    %v528 = vadd.f32 %v103, %v527
    %v529 = vpop.f32.mrb[0].mxu0
    %v530 = vpop.f32.mrb[0].mxu0
    %v531 = vadd.f32 %v103, %v530
    %v532 = vpop.f32.mrb[0].mxu0
    %533 = vmatprep.mubr.bf16.mxu0 0
    %534 = vmatmul.mubr.bf16.gmra.mrb[0].mxu0 %v326
    %v535 = vpop.f32.mrb[0].mxu0
    %v536 = vadd.f32 %v103, %v535
    %v537 = vpop.f32.mrb[0].mxu0
    %v538 = vpop.f32.mrb[0].mxu0
    %v539 = vadd.f32 %v103, %v538
    %v540 = vpop.f32.mrb[0].mxu0
    %541 = vmatprep.mubr.bf16.mxu0 0
    %542 = vmatmul.mubr.bf16.gmra.mrb[0].mxu0 %v329
    %v543 = vpop.f32.mrb[0].mxu0
    %v544 = vadd.f32 %v103, %v543
    %v545 = vpop.f32.mrb[0].mxu0
    %v546 = vpop.f32.mrb[0].mxu0
    %v547 = vadd.f32 %v103, %v546
    %v548 = vpop.f32.mrb[0].mxu0
    %549 = vmatprep.mubr.bf16.mxu0 0
    %550 = vmatmul.mubr.bf16.gmra.mrb[0].mxu0 %v332
    %v551 = vpop.f32.mrb[0].mxu0
    %v552 = vadd.f32 %v103, %v551
    %v553 = vpop.f32.mrb[0].mxu0
    %v554 = vpop.f32.mrb[0].mxu0
    %v555 = vadd.f32 %v103, %v554
    %v556 = vpop.f32.mrb[0].mxu0
    %557 = vmatprep.mubr.bf16.mxu0 0
    %558 = vmatmul.mubr.bf16.gmra.mrb[0].mxu0 %v335
    %v559 = vpop.f32.mrb[0].mxu0
    %v560 = vadd.f32 %v103, %v559
    %v561 = vpop.f32.mrb[0].mxu0
    %v562 = vpop.f32.mrb[0].mxu0
    %v563 = vadd.f32 %v103, %v562
    %v564 = vpop.f32.mrb[0].mxu0
    %565 = vmatprep.mubr.bf16.mxu0 0
    %566 = vmatmul.mubr.bf16.gmra.mrb[0].mxu0 %v338
    %v567 = vpop.f32.mrb[0].mxu0
    %v568 = vadd.f32 %v103, %v567
    %v569 = vpop.f32.mrb[0].mxu0
    %v570 = vpop.f32.mrb[0].mxu0
    %v571 = vadd.f32 %v103, %v570
    %v572 = vpop.f32.mrb[0].mxu0
    %573 = vmatprep.mubr.bf16.mxu0 0
    %574 = vmatmul.mubr.bf16.gmra.mrb[0].mxu0 %v341
    %v575 = vpop.f32.mrb[0].mxu0
    %v576 = vadd.f32 %v103, %v575
    %v577 = vpop.f32.mrb[0].mxu0
    %v578 = vpop.f32.mrb[0].mxu0
    %v579 = vadd.f32 %v103, %v578
    %v580 = vpop.f32.mrb[0].mxu0
    %581 = vmatprep.mubr.bf16.mxu0 0
    %582 = vmatmul.mubr.bf16.gmra.mrb[0].mxu0 %v344
    %v583 = vpop.f32.mrb[0].mxu0
    %v584 = vadd.f32 %v103, %v583
    %v585 = vpop.f32.mrb[0].mxu0
    %v586 = vpop.f32.mrb[0].mxu0
    %v587 = vadd.f32 %v103, %v586
    %v588 = vpop.f32.mrb[0].mxu0
    %589 = vmatprep.mubr.bf16.mxu0 0
    %590 = vmatmul.mubr.bf16.gmra.mrb[0].mxu0 %v347
    %v591 = vpop.f32.mrb[0].mxu0
    %v592 = vadd.f32 %v103, %v591
    %v593 = vpop.f32.mrb[0].mxu0
    %v594 = vpop.f32.mrb[0].mxu0
    %v595 = vadd.f32 %v103, %v594
    %v596 = vpop.f32.mrb[0].mxu0
    %597 = vmatprep.mubr.bf16.mxu0 0
    %598 = vmatmul.mubr.bf16.gmra.mrb[0].mxu0 %v350
    %v599 = vpop.f32.mrb[0].mxu0
    %v600 = vadd.f32 %v103, %v599
    %v601 = vpop.f32.mrb[0].mxu0
    %v602 = vpop.f32.mrb[0].mxu0
    %v603 = vadd.f32 %v103, %v602
    %v604 = vpop.f32.mrb[0].mxu0
    %605 = vmatprep.mubr.bf16.mxu0 0
    %606 = vmatmul.mubr.bf16.gmra.mrb[0].mxu0 %v353
    %v607 = vpop.f32.mrb[0].mxu0
    %v608 = vadd.f32 %v103, %v607
    %v609 = vpop.f32.mrb[0].mxu0
    %v610 = vpop.f32.mrb[0].mxu0
    %v611 = vadd.f32 %v103, %v610
    %v612 = vpop.f32.mrb[0].mxu0
    %613 = vmatprep.mubr.bf16.mxu0 0
    %614 = vmatmul.mubr.bf16.gmra.mrb[0].mxu0 %v356
    %v615 = vpop.f32.mrb[0].mxu0
    %v616 = vadd.f32 %v103, %v615
    %v617 = vpop.f32.mrb[0].mxu0
    %v618 = vpop.f32.mrb[0].mxu0
    %v619 = vadd.f32 %v103, %v618
    %v620 = vpop.f32.mrb[0].mxu0
    %621 = vmatprep.mubr.bf16.mxu0 0
    %622 = vmatmul.mubr.bf16.gmra.mrb[0].mxu0 %v359
    %v623 = vpop.f32.mrb[0].mxu0
    %v624 = vadd.f32 %v103, %v623
    %v625 = vpop.f32.mrb[0].mxu0
    %v626 = vpop.f32.mrb[0].mxu0
    %v627 = vadd.f32 %v103, %v626
    %v628 = vpop.f32.mrb[0].mxu0
    %629 = vmatprep.mubr.bf16.mxu0 0
    %630 = vmatmul.mubr.bf16.gmra.mrb[0].mxu0 %v362
    %v631 = vpop.f32.mrb[0].mxu0
    %v632 = vadd.f32 %v103, %v631
    %v633 = vpop.f32.mrb[0].mxu0
    %v634 = vpop.f32.mrb[0].mxu0
    %v635 = vadd.f32 %v103, %v634
    %v636 = vpop.f32.mrb[0].mxu0
    %637 = vmatprep.mubr.bf16.mxu0 0
    %638 = vmatmul.mubr.bf16.gmra.mrb[0].mxu0 %v365
    %v639 = vpop.f32.mrb[0].mxu0
    %v640 = vadd.f32 %v103, %v639
    %v641 = vpop.f32.mrb[0].mxu0
    %v642 = vpop.f32.mrb[0].mxu0
    %v643 = vadd.f32 %v103, %v642
    %v644 = vpop.f32.mrb[0].mxu0
    %645 = vmatprep.mubr.bf16.mxu0 0
    %646 = vmatmul.mubr.bf16.gmra.mrb[0].mxu0 %v368
    %v647 = vpop.f32.mrb[0].mxu0
    %v648 = vadd.f32 %v103, %v647
    %v649 = vpop.f32.mrb[0].mxu0
    %v650 = vpop.f32.mrb[0].mxu0
    %v651 = vadd.f32 %v103, %v650
    %v652 = vpop.f32.mrb[0].mxu0
    %653 = vmatprep.mubr.bf16.mxu0 0
    %654 = vmatmul.mubr.bf16.gmra.mrb[0].mxu0 %v371
    %v655 = vpop.f32.mrb[0].mxu0
    %v656 = vadd.f32 %v103, %v655
    %v657 = vpop.f32.mrb[0].mxu0
    %v658 = vpop.f32.mrb[0].mxu0
    %v659 = vadd.f32 %v103, %v658
    %v660 = vpop.f32.mrb[0].mxu0
    %661 = vdwg.mxu0
    %v662 = vmax.f32 %v408, 0.0
    %v663 = vmax.f32 %v411, 0.0
    %v664 = vmax.f32 %v416, 0.0
    %v665 = vmax.f32 %v419, 0.0
    %v666 = vmax.f32 %v424, 0.0
    %v667 = vmax.f32 %v427, 0.0
    %v668 = vmax.f32 %v432, 0.0
    %v669 = vmax.f32 %v435, 0.0
    %v670 = vmax.f32 %v440, 0.0
    %v671 = vmax.f32 %v443, 0.0
    %v672 = vmax.f32 %v448, 0.0
    %v673 = vmax.f32 %v451, 0.0
    %v674 = vmax.f32 %v456, 0.0
    %v675 = vmax.f32 %v459, 0.0
    %v676 = vmax.f32 %v464, 0.0
    %v677 = vmax.f32 %v467, 0.0
    %v678 = vmax.f32 %v472, 0.0
    %v679 = vmax.f32 %v475, 0.0
    %v680 = vmax.f32 %v480, 0.0
    %v681 = vmax.f32 %v483, 0.0
    %v682 = vmax.f32 %v488, 0.0
    %v683 = vmax.f32 %v491, 0.0
    %v684 = vmax.f32 %v496, 0.0
    %v685 = vmax.f32 %v499, 0.0
    %v686 = vmax.f32 %v504, 0.0
    %v687 = vmax.f32 %v507, 0.0
    %v688 = vmax.f32 %v512, 0.0
    %v689 = vmax.f32 %v515, 0.0
    %v690 = vmax.f32 %v520, 0.0
    %v691 = vmax.f32 %v523, 0.0
    %v692 = vmax.f32 %v528, 0.0
    %v693 = vmax.f32 %v531, 0.0
    %v694 = vmax.f32 %v536, 0.0
    %v695 = vmax.f32 %v539, 0.0
    %v696 = vmax.f32 %v544, 0.0
    %v697 = vmax.f32 %v547, 0.0
    %v698 = vmax.f32 %v552, 0.0
    %v699 = vmax.f32 %v555, 0.0
    %v700 = vmax.f32 %v560, 0.0
    %v701 = vmax.f32 %v563, 0.0
    %v702 = vmax.f32 %v568, 0.0
    %v703 = vmax.f32 %v571, 0.0
    %v704 = vmax.f32 %v576, 0.0
    %v705 = vmax.f32 %v579, 0.0
    %v706 = vmax.f32 %v584, 0.0
    %v707 = vmax.f32 %v587, 0.0
    %v708 = vmax.f32 %v592, 0.0
    %v709 = vmax.f32 %v595, 0.0
    %v710 = vmax.f32 %v600, 0.0
    %v711 = vmax.f32 %v603, 0.0
    %v712 = vmax.f32 %v608, 0.0
    %v713 = vmax.f32 %v611, 0.0
    %v714 = vmax.f32 %v616, 0.0
    %v715 = vmax.f32 %v619, 0.0
    %v716 = vmax.f32 %v624, 0.0
    %v717 = vmax.f32 %v627, 0.0
    %v718 = vmax.f32 %v632, 0.0
    %v719 = vmax.f32 %v635, 0.0
    %v720 = vmax.f32 %v640, 0.0
    %v721 = vmax.f32 %v643, 0.0
    %v722 = vmax.f32 %v648, 0.0
    %v723 = vmax.f32 %v651, 0.0
    %v724 = vmax.f32 %v656, 0.0
    %v725 = vmax.f32 %v659, 0.0
    %v726 = vlaneseq
    %v727 = vshrl.u32 %v726, 7
    %v728 = vadd.s32 %v727, 8
    %v729 = vadd.s32 %v727, 16
    %v730 = vadd.s32 %v727, 24
    %v731 = vadd.s32 %v727, 32
    %v732 = vadd.s32 %v727, 40
    %v733 = vadd.s32 %v727, 48
    %v734 = vadd.s32 %v727, 56
    %v735 = vadd.s32 %v727, 64
    %v736 = vadd.s32 %v727, 72
    %v737 = vadd.s32 %v727, 80
    %v738 = vadd.s32 %v727, 88
    %v739 = vadd.s32 %v727, 96
    %v740 = vadd.s32 %v727, 104
    %v741 = vadd.s32 %v727, 112
    %v742 = vadd.s32 %v727, 120
    %v743 = vadd.s32 %v727, 128
    %v744 = vadd.s32 %v727, 136
    %v745 = vadd.s32 %v727, 144
    %v746 = vadd.s32 %v727, 152
    %v747 = vadd.s32 %v727, 160
    %v748 = vadd.s32 %v727, 168
    %v749 = vadd.s32 %v727, 176
    %v750 = vadd.s32 %v727, 184
    %v751 = vadd.s32 %v727, 192
    %v752 = vadd.s32 %v727, 200
    %v753 = vadd.s32 %v727, 208
    %v754 = vadd.s32 %v727, 216
    %v755 = vadd.s32 %v727, 224
    %v756 = vadd.s32 %v727, 232
    %v757 = vadd.s32 %v727, 240
    %v758 = vadd.s32 %v727, 248
    %vm759 = vcmp.lt.s32.totalorder %v727, 0
    %v760 = vsub.s32 0, %v727
    %v761 = vsel %vm759, %v760, %v727
    %v762 = vshrl.u32 %v761, 4
    %v763 = vand.u32 %v761, 15
    %v764 = vsub.s32 0, %v763
    %v765 = vsel %vm759, %v764, %v763
    %vm766 = vcmp.lt.s32.totalorder %v728, 0
    %v767 = vsub.s32 0, %v728
    %v768 = vsel %vm766, %v767, %v728
    %v769 = vshrl.u32 %v768, 4
    %v770 = vand.u32 %v768, 15
    %v771 = vsub.s32 0, %v770
    %v772 = vsel %vm766, %v771, %v770
    %vm773 = vcmp.lt.s32.totalorder %v729, 0
    %v774 = vsub.s32 0, %v729
    %v775 = vsel %vm773, %v774, %v729
    %v776 = vshrl.u32 %v775, 4
    %v777 = vand.u32 %v775, 15
    %v778 = vsub.s32 0, %v777
    %v779 = vsel %vm773, %v778, %v777
    %vm780 = vcmp.lt.s32.totalorder %v730, 0
    %v781 = vsub.s32 0, %v730
    %v782 = vsel %vm780, %v781, %v730
    %v783 = vshrl.u32 %v782, 4
    %v784 = vand.u32 %v782, 15
    %v785 = vsub.s32 0, %v784
    %v786 = vsel %vm780, %v785, %v784
    %vm787 = vcmp.lt.s32.totalorder %v731, 0
    %v788 = vsub.s32 0, %v731
    %v789 = vsel %vm787, %v788, %v731
    %v790 = vshrl.u32 %v789, 4
    %v791 = vand.u32 %v789, 15
    %v792 = vsub.s32 0, %v791
    %v793 = vsel %vm787, %v792, %v791
    %vm794 = vcmp.lt.s32.totalorder %v732, 0
    %v795 = vsub.s32 0, %v732
    %v796 = vsel %vm794, %v795, %v732
    %v797 = vshrl.u32 %v796, 4
    %v798 = vand.u32 %v796, 15
    %v799 = vsub.s32 0, %v798
    %v800 = vsel %vm794, %v799, %v798
    %vm801 = vcmp.lt.s32.totalorder %v733, 0
    %v802 = vsub.s32 0, %v733
    %v803 = vsel %vm801, %v802, %v733
    %v804 = vshrl.u32 %v803, 4
    %v805 = vand.u32 %v803, 15
    %v806 = vsub.s32 0, %v805
    %v807 = vsel %vm801, %v806, %v805
    %vm808 = vcmp.lt.s32.totalorder %v734, 0
    %v809 = vsub.s32 0, %v734
    %v810 = vsel %vm808, %v809, %v734
    %v811 = vshrl.u32 %v810, 4
    %v812 = vand.u32 %v810, 15
    %v813 = vsub.s32 0, %v812
    %v814 = vsel %vm808, %v813, %v812
    %vm815 = vcmp.lt.s32.totalorder %v735, 0
    %v816 = vsub.s32 0, %v735
    %v817 = vsel %vm815, %v816, %v735
    %v818 = vshrl.u32 %v817, 4
    %v819 = vand.u32 %v817, 15
    %v820 = vsub.s32 0, %v819
    %v821 = vsel %vm815, %v820, %v819
    %vm822 = vcmp.lt.s32.totalorder %v736, 0
    %v823 = vsub.s32 0, %v736
    %v824 = vsel %vm822, %v823, %v736
    %v825 = vshrl.u32 %v824, 4
    %v826 = vand.u32 %v824, 15
    %v827 = vsub.s32 0, %v826
    %v828 = vsel %vm822, %v827, %v826
    %vm829 = vcmp.lt.s32.totalorder %v737, 0
    %v830 = vsub.s32 0, %v737
    %v831 = vsel %vm829, %v830, %v737
    %v832 = vshrl.u32 %v831, 4
    %v833 = vand.u32 %v831, 15
    %v834 = vsub.s32 0, %v833
    %v835 = vsel %vm829, %v834, %v833
    %vm836 = vcmp.lt.s32.totalorder %v738, 0
    %v837 = vsub.s32 0, %v738
    %v838 = vsel %vm836, %v837, %v738
    %v839 = vshrl.u32 %v838, 4
    %v840 = vand.u32 %v838, 15
    %v841 = vsub.s32 0, %v840
    %v842 = vsel %vm836, %v841, %v840
    %vm843 = vcmp.lt.s32.totalorder %v739, 0
    %v844 = vsub.s32 0, %v739
    %v845 = vsel %vm843, %v844, %v739
    %v846 = vshrl.u32 %v845, 4
    %v847 = vand.u32 %v845, 15
    %v848 = vsub.s32 0, %v847
    %v849 = vsel %vm843, %v848, %v847
    %vm850 = vcmp.lt.s32.totalorder %v740, 0
    %v851 = vsub.s32 0, %v740
    %v852 = vsel %vm850, %v851, %v740
    %v853 = vshrl.u32 %v852, 4
    %v854 = vand.u32 %v852, 15
    %v855 = vsub.s32 0, %v854
    %v856 = vsel %vm850, %v855, %v854
    %vm857 = vcmp.lt.s32.totalorder %v741, 0
    %v858 = vsub.s32 0, %v741
    %v859 = vsel %vm857, %v858, %v741
    %v860 = vshrl.u32 %v859, 4
    %v861 = vand.u32 %v859, 15
    %v862 = vsub.s32 0, %v861
    %v863 = vsel %vm857, %v862, %v861
    %vm864 = vcmp.lt.s32.totalorder %v742, 0
    %v865 = vsub.s32 0, %v742
    %v866 = vsel %vm864, %v865, %v742
    %v867 = vshrl.u32 %v866, 4
    %v868 = vand.u32 %v866, 15
    %v869 = vsub.s32 0, %v868
    %v870 = vsel %vm864, %v869, %v868
    %vm871 = vcmp.lt.s32.totalorder %v743, 0
    %v872 = vsub.s32 0, %v743
    %v873 = vsel %vm871, %v872, %v743
    %v874 = vshrl.u32 %v873, 4
    %v875 = vand.u32 %v873, 15
    %v876 = vsub.s32 0, %v875
    %v877 = vsel %vm871, %v876, %v875
    %vm878 = vcmp.lt.s32.totalorder %v744, 0
    %v879 = vsub.s32 0, %v744
    %v880 = vsel %vm878, %v879, %v744
    %v881 = vshrl.u32 %v880, 4
    %v882 = vand.u32 %v880, 15
    %v883 = vsub.s32 0, %v882
    %v884 = vsel %vm878, %v883, %v882
    %vm885 = vcmp.lt.s32.totalorder %v745, 0
    %v886 = vsub.s32 0, %v745
    %v887 = vsel %vm885, %v886, %v745
    %v888 = vshrl.u32 %v887, 4
    %v889 = vand.u32 %v887, 15
    %v890 = vsub.s32 0, %v889
    %v891 = vsel %vm885, %v890, %v889
    %vm892 = vcmp.lt.s32.totalorder %v746, 0
    %v893 = vsub.s32 0, %v746
    %v894 = vsel %vm892, %v893, %v746
    %v895 = vshrl.u32 %v894, 4
    %v896 = vand.u32 %v894, 15
    %v897 = vsub.s32 0, %v896
    %v898 = vsel %vm892, %v897, %v896
    %vm899 = vcmp.lt.s32.totalorder %v747, 0
    %v900 = vsub.s32 0, %v747
    %v901 = vsel %vm899, %v900, %v747
    %v902 = vshrl.u32 %v901, 4
    %v903 = vand.u32 %v901, 15
    %v904 = vsub.s32 0, %v903
    %v905 = vsel %vm899, %v904, %v903
    %vm906 = vcmp.lt.s32.totalorder %v748, 0
    %v907 = vsub.s32 0, %v748
    %v908 = vsel %vm906, %v907, %v748
    %v909 = vshrl.u32 %v908, 4
    %v910 = vand.u32 %v908, 15
    %v911 = vsub.s32 0, %v910
    %v912 = vsel %vm906, %v911, %v910
    %vm913 = vcmp.lt.s32.totalorder %v749, 0
    %v914 = vsub.s32 0, %v749
    %v915 = vsel %vm913, %v914, %v749
    %v916 = vshrl.u32 %v915, 4
    %v917 = vand.u32 %v915, 15
    %v918 = vsub.s32 0, %v917
    %v919 = vsel %vm913, %v918, %v917
    %vm920 = vcmp.lt.s32.totalorder %v750, 0
    %v921 = vsub.s32 0, %v750
    %v922 = vsel %vm920, %v921, %v750
    %v923 = vshrl.u32 %v922, 4
    %v924 = vand.u32 %v922, 15
    %v925 = vsub.s32 0, %v924
    %v926 = vsel %vm920, %v925, %v924
    %vm927 = vcmp.lt.s32.totalorder %v751, 0
    %v928 = vsub.s32 0, %v751
    %v929 = vsel %vm927, %v928, %v751
    %v930 = vshrl.u32 %v929, 4
    %v931 = vand.u32 %v929, 15
    %v932 = vsub.s32 0, %v931
    %v933 = vsel %vm927, %v932, %v931
    %vm934 = vcmp.lt.s32.totalorder %v752, 0
    %v935 = vsub.s32 0, %v752
    %v936 = vsel %vm934, %v935, %v752
    %v937 = vshrl.u32 %v936, 4
    %v938 = vand.u32 %v936, 15
    %v939 = vsub.s32 0, %v938
    %v940 = vsel %vm934, %v939, %v938
    %vm941 = vcmp.lt.s32.totalorder %v753, 0
    %v942 = vsub.s32 0, %v753
    %v943 = vsel %vm941, %v942, %v753
    %v944 = vshrl.u32 %v943, 4
    %v945 = vand.u32 %v943, 15
    %v946 = vsub.s32 0, %v945
    %v947 = vsel %vm941, %v946, %v945
    %vm948 = vcmp.lt.s32.totalorder %v754, 0
    %v949 = vsub.s32 0, %v754
    %v950 = vsel %vm948, %v949, %v754
    %v951 = vshrl.u32 %v950, 4
    %v952 = vand.u32 %v950, 15
    %v953 = vsub.s32 0, %v952
    %v954 = vsel %vm948, %v953, %v952
    %vm955 = vcmp.lt.s32.totalorder %v755, 0
    %v956 = vsub.s32 0, %v755
    %v957 = vsel %vm955, %v956, %v755
    %v958 = vshrl.u32 %v957, 4
    %v959 = vand.u32 %v957, 15
    %v960 = vsub.s32 0, %v959
    %v961 = vsel %vm955, %v960, %v959
    %vm962 = vcmp.lt.s32.totalorder %v756, 0
    %v963 = vsub.s32 0, %v756
    %v964 = vsel %vm962, %v963, %v756
    %v965 = vshrl.u32 %v964, 4
    %v966 = vand.u32 %v964, 15
    %v967 = vsub.s32 0, %v966
    %v968 = vsel %vm962, %v967, %v966
    %vm969 = vcmp.lt.s32.totalorder %v757, 0
    %v970 = vsub.s32 0, %v757
    %v971 = vsel %vm969, %v970, %v757
    %v972 = vshrl.u32 %v971, 4
    %v973 = vand.u32 %v971, 15
    %v974 = vsub.s32 0, %v973
    %v975 = vsel %vm969, %v974, %v973
    %vm976 = vcmp.lt.s32.totalorder %v758, 0
    %v977 = vsub.s32 0, %v758
    %v978 = vsel %vm976, %v977, %v758
    %v979 = vshrl.u32 %v978, 4
    %v980 = vand.u32 %v978, 15
    %v981 = vsub.s32 0, %v980
    %v982 = vsel %vm976, %v981, %v980
    %vm983 = vcmp.ne.s32.totalorder %v765, 0
    %vm984 = vcmp.ne.s32.totalorder %v772, 0
    %vm985 = vcmp.ne.s32.totalorder %v779, 0
    %vm986 = vcmp.ne.s32.totalorder %v786, 0
    %vm987 = vcmp.ne.s32.totalorder %v793, 0
    %vm988 = vcmp.ne.s32.totalorder %v800, 0
    %vm989 = vcmp.ne.s32.totalorder %v807, 0
    %vm990 = vcmp.ne.s32.totalorder %v814, 0
    %vm991 = vcmp.ne.s32.totalorder %v821, 0
    %vm992 = vcmp.ne.s32.totalorder %v828, 0
    %vm993 = vcmp.ne.s32.totalorder %v835, 0
    %vm994 = vcmp.ne.s32.totalorder %v842, 0
    %vm995 = vcmp.ne.s32.totalorder %v849, 0
    %vm996 = vcmp.ne.s32.totalorder %v856, 0
    %vm997 = vcmp.ne.s32.totalorder %v863, 0
    %vm998 = vcmp.ne.s32.totalorder %v870, 0
    %vm999 = vcmp.ne.s32.totalorder %v877, 0
    %vm1000 = vcmp.ne.s32.totalorder %v884, 0
    %vm1001 = vcmp.ne.s32.totalorder %v891, 0
    %vm1002 = vcmp.ne.s32.totalorder %v898, 0
    %vm1003 = vcmp.ne.s32.totalorder %v905, 0
    %vm1004 = vcmp.ne.s32.totalorder %v912, 0
    %vm1005 = vcmp.ne.s32.totalorder %v919, 0
    %vm1006 = vcmp.ne.s32.totalorder %v926, 0
    %vm1007 = vcmp.ne.s32.totalorder %v933, 0
    %vm1008 = vcmp.ne.s32.totalorder %v940, 0
    %vm1009 = vcmp.ne.s32.totalorder %v947, 0
    %vm1010 = vcmp.ne.s32.totalorder %v954, 0
    %vm1011 = vcmp.ne.s32.totalorder %v961, 0
    %vm1012 = vcmp.ne.s32.totalorder %v968, 0
    %vm1013 = vcmp.ne.s32.totalorder %v975, 0
    %vm1014 = vcmp.ne.s32.totalorder %v982, 0
    %vm1015 = vcmp.lt.s32.totalorder %v765, 0
    %vm1016 = vcmp.lt.s32.totalorder %v772, 0
    %vm1017 = vcmp.lt.s32.totalorder %v779, 0
    %vm1018 = vcmp.lt.s32.totalorder %v786, 0
    %vm1019 = vcmp.lt.s32.totalorder %v793, 0
    %vm1020 = vcmp.lt.s32.totalorder %v800, 0
    %vm1021 = vcmp.lt.s32.totalorder %v807, 0
    %vm1022 = vcmp.lt.s32.totalorder %v814, 0
    %vm1023 = vcmp.lt.s32.totalorder %v821, 0
    %vm1024 = vcmp.lt.s32.totalorder %v828, 0
    %vm1025 = vcmp.lt.s32.totalorder %v835, 0
    %vm1026 = vcmp.lt.s32.totalorder %v842, 0
    %vm1027 = vcmp.lt.s32.totalorder %v849, 0
    %vm1028 = vcmp.lt.s32.totalorder %v856, 0
    %vm1029 = vcmp.lt.s32.totalorder %v863, 0
    %vm1030 = vcmp.lt.s32.totalorder %v870, 0
    %vm1031 = vcmp.lt.s32.totalorder %v877, 0
    %vm1032 = vcmp.lt.s32.totalorder %v884, 0
    %vm1033 = vcmp.lt.s32.totalorder %v891, 0
    %vm1034 = vcmp.lt.s32.totalorder %v898, 0
    %vm1035 = vcmp.lt.s32.totalorder %v905, 0
    %vm1036 = vcmp.lt.s32.totalorder %v912, 0
    %vm1037 = vcmp.lt.s32.totalorder %v919, 0
    %vm1038 = vcmp.lt.s32.totalorder %v926, 0
    %vm1039 = vcmp.lt.s32.totalorder %v933, 0
    %vm1040 = vcmp.lt.s32.totalorder %v940, 0
    %vm1041 = vcmp.lt.s32.totalorder %v947, 0
    %vm1042 = vcmp.lt.s32.totalorder %v954, 0
    %vm1043 = vcmp.lt.s32.totalorder %v961, 0
    %vm1044 = vcmp.lt.s32.totalorder %v968, 0
    %vm1045 = vcmp.lt.s32.totalorder %v975, 0
    %vm1046 = vcmp.lt.s32.totalorder %v982, 0
    %vm1047 = vmand %vm1015, %vm983
    %vm1048 = vmand %vm1016, %vm984
    %vm1049 = vmand %vm1017, %vm985
    %vm1050 = vmand %vm1018, %vm986
    %vm1051 = vmand %vm1019, %vm987
    %vm1052 = vmand %vm1020, %vm988
    %vm1053 = vmand %vm1021, %vm989
    %vm1054 = vmand %vm1022, %vm990
    %vm1055 = vmand %vm1023, %vm991
    %vm1056 = vmand %vm1024, %vm992
    %vm1057 = vmand %vm1025, %vm993
    %vm1058 = vmand %vm1026, %vm994
    %vm1059 = vmand %vm1027, %vm995
    %vm1060 = vmand %vm1028, %vm996
    %vm1061 = vmand %vm1029, %vm997
    %vm1062 = vmand %vm1030, %vm998
    %vm1063 = vmand %vm1031, %vm999
    %vm1064 = vmand %vm1032, %vm1000
    %vm1065 = vmand %vm1033, %vm1001
    %vm1066 = vmand %vm1034, %vm1002
    %vm1067 = vmand %vm1035, %vm1003
    %vm1068 = vmand %vm1036, %vm1004
    %vm1069 = vmand %vm1037, %vm1005
    %vm1070 = vmand %vm1038, %vm1006
    %vm1071 = vmand %vm1039, %vm1007
    %vm1072 = vmand %vm1040, %vm1008
    %vm1073 = vmand %vm1041, %vm1009
    %vm1074 = vmand %vm1042, %vm1010
    %vm1075 = vmand %vm1043, %vm1011
    %vm1076 = vmand %vm1044, %vm1012
    %vm1077 = vmand %vm1045, %vm1013
    %vm1078 = vmand %vm1046, %vm1014
    %v1079 = vadd.s32 %v765, 16
    %v1080 = vadd.s32 %v772, 16
    %v1081 = vadd.s32 %v779, 16
    %v1082 = vadd.s32 %v786, 16
    %v1083 = vadd.s32 %v793, 16
    %v1084 = vadd.s32 %v800, 16
    %v1085 = vadd.s32 %v807, 16
    %v1086 = vadd.s32 %v814, 16
    %v1087 = vadd.s32 %v821, 16
    %v1088 = vadd.s32 %v828, 16
    %v1089 = vadd.s32 %v835, 16
    %v1090 = vadd.s32 %v842, 16
    %v1091 = vadd.s32 %v849, 16
    %v1092 = vadd.s32 %v856, 16
    %v1093 = vadd.s32 %v863, 16
    %v1094 = vadd.s32 %v870, 16
    %v1095 = vadd.s32 %v877, 16
    %v1096 = vadd.s32 %v884, 16
    %v1097 = vadd.s32 %v891, 16
    %v1098 = vadd.s32 %v898, 16
    %v1099 = vadd.s32 %v905, 16
    %v1100 = vadd.s32 %v912, 16
    %v1101 = vadd.s32 %v919, 16
    %v1102 = vadd.s32 %v926, 16
    %v1103 = vadd.s32 %v933, 16
    %v1104 = vadd.s32 %v940, 16
    %v1105 = vadd.s32 %v947, 16
    %v1106 = vadd.s32 %v954, 16
    %v1107 = vadd.s32 %v961, 16
    %v1108 = vadd.s32 %v968, 16
    %v1109 = vadd.s32 %v975, 16
    %v1110 = vadd.s32 %v982, 16
    %v1111 = vsel %vm1047, %v1079, %v765
    %v1112 = vsel %vm1048, %v1080, %v772
    %v1113 = vsel %vm1049, %v1081, %v779
    %v1114 = vsel %vm1050, %v1082, %v786
    %v1115 = vsel %vm1051, %v1083, %v793
    %v1116 = vsel %vm1052, %v1084, %v800
    %v1117 = vsel %vm1053, %v1085, %v807
    %v1118 = vsel %vm1054, %v1086, %v814
    %v1119 = vsel %vm1055, %v1087, %v821
    %v1120 = vsel %vm1056, %v1088, %v828
    %v1121 = vsel %vm1057, %v1089, %v835
    %v1122 = vsel %vm1058, %v1090, %v842
    %v1123 = vsel %vm1059, %v1091, %v849
    %v1124 = vsel %vm1060, %v1092, %v856
    %v1125 = vsel %vm1061, %v1093, %v863
    %v1126 = vsel %vm1062, %v1094, %v870
    %v1127 = vsel %vm1063, %v1095, %v877
    %v1128 = vsel %vm1064, %v1096, %v884
    %v1129 = vsel %vm1065, %v1097, %v891
    %v1130 = vsel %vm1066, %v1098, %v898
    %v1131 = vsel %vm1067, %v1099, %v905
    %v1132 = vsel %vm1068, %v1100, %v912
    %v1133 = vsel %vm1069, %v1101, %v919
    %v1134 = vsel %vm1070, %v1102, %v926
    %v1135 = vsel %vm1071, %v1103, %v933
    %v1136 = vsel %vm1072, %v1104, %v940
    %v1137 = vsel %vm1073, %v1105, %v947
    %v1138 = vsel %vm1074, %v1106, %v954
    %v1139 = vsel %vm1075, %v1107, %v961
    %v1140 = vsel %vm1076, %v1108, %v968
    %v1141 = vsel %vm1077, %v1109, %v975
    %v1142 = vsel %vm1078, %v1110, %v982
    %vm1143 = vcmp.ne.s32.totalorder %v1111, 15
    %vm1144 = vcmp.ne.s32.totalorder %v1112, 15
    %vm1145 = vcmp.ne.s32.totalorder %v1113, 15
    %vm1146 = vcmp.ne.s32.totalorder %v1114, 15
    %vm1147 = vcmp.ne.s32.totalorder %v1115, 15
    %vm1148 = vcmp.ne.s32.totalorder %v1116, 15
    %vm1149 = vcmp.ne.s32.totalorder %v1117, 15
    %vm1150 = vcmp.ne.s32.totalorder %v1118, 15
    %vm1151 = vcmp.ne.s32.totalorder %v1119, 15
    %vm1152 = vcmp.ne.s32.totalorder %v1120, 15
    %vm1153 = vcmp.ne.s32.totalorder %v1121, 15
    %vm1154 = vcmp.ne.s32.totalorder %v1122, 15
    %vm1155 = vcmp.ne.s32.totalorder %v1123, 15
    %vm1156 = vcmp.ne.s32.totalorder %v1124, 15
    %vm1157 = vcmp.ne.s32.totalorder %v1125, 15
    %vm1158 = vcmp.ne.s32.totalorder %v1126, 15
    %vm1159 = vcmp.ne.s32.totalorder %v1127, 15
    %vm1160 = vcmp.ne.s32.totalorder %v1128, 15
    %vm1161 = vcmp.ne.s32.totalorder %v1129, 15
    %vm1162 = vcmp.ne.s32.totalorder %v1130, 15
    %vm1163 = vcmp.ne.s32.totalorder %v1131, 15
    %vm1164 = vcmp.ne.s32.totalorder %v1132, 15
    %vm1165 = vcmp.ne.s32.totalorder %v1133, 15
    %vm1166 = vcmp.ne.s32.totalorder %v1134, 15
    %vm1167 = vcmp.ne.s32.totalorder %v1135, 15
    %vm1168 = vcmp.ne.s32.totalorder %v1136, 15
    %vm1169 = vcmp.ne.s32.totalorder %v1137, 15
    %vm1170 = vcmp.ne.s32.totalorder %v1138, 15
    %vm1171 = vcmp.ne.s32.totalorder %v1139, 15
    %vm1172 = vcmp.ne.s32.totalorder %v1140, 15
    %vm1173 = vcmp.ne.s32.totalorder %v1141, 15
    %vm1174 = vcmp.ne.s32.totalorder %v1142, 15
    %v1175 = vsel %vm1143, 1, 0
    %v1176 = vsel %vm1144, 1, 0
    %v1177 = vsel %vm1145, 1, 0
    %v1178 = vsel %vm1146, 1, 0
    %v1179 = vsel %vm1147, 1, 0
    %v1180 = vsel %vm1148, 1, 0
    %v1181 = vsel %vm1149, 1, 0
    %v1182 = vsel %vm1150, 1, 0
    %v1183 = vsel %vm1151, 1, 0
    %v1184 = vsel %vm1152, 1, 0
    %v1185 = vsel %vm1153, 1, 0
    %v1186 = vsel %vm1154, 1, 0
    %v1187 = vsel %vm1155, 1, 0
    %v1188 = vsel %vm1156, 1, 0
    %v1189 = vsel %vm1157, 1, 0
    %v1190 = vsel %vm1158, 1, 0
    %v1191 = vsel %vm1159, 1, 0
    %v1192 = vsel %vm1160, 1, 0
    %v1193 = vsel %vm1161, 1, 0
    %v1194 = vsel %vm1162, 1, 0
    %v1195 = vsel %vm1163, 1, 0
    %v1196 = vsel %vm1164, 1, 0
    %v1197 = vsel %vm1165, 1, 0
    %v1198 = vsel %vm1166, 1, 0
    %v1199 = vsel %vm1167, 1, 0
    %v1200 = vsel %vm1168, 1, 0
    %v1201 = vsel %vm1169, 1, 0
    %v1202 = vsel %vm1170, 1, 0
    %v1203 = vsel %vm1171, 1, 0
    %v1204 = vsel %vm1172, 1, 0
    %v1205 = vsel %vm1173, 1, 0
    %v1206 = vsel %vm1174, 1, 0
    %v1207 = vcvt.s32.f32 %v1175
    %v1208 = vcvt.s32.f32 %v1176
    %v1209 = vcvt.s32.f32 %v1177
    %v1210 = vcvt.s32.f32 %v1178
    %v1211 = vcvt.s32.f32 %v1179
    %v1212 = vcvt.s32.f32 %v1180
    %v1213 = vcvt.s32.f32 %v1181
    %v1214 = vcvt.s32.f32 %v1182
    %v1215 = vcvt.s32.f32 %v1183
    %v1216 = vcvt.s32.f32 %v1184
    %v1217 = vcvt.s32.f32 %v1185
    %v1218 = vcvt.s32.f32 %v1186
    %v1219 = vcvt.s32.f32 %v1187
    %v1220 = vcvt.s32.f32 %v1188
    %v1221 = vcvt.s32.f32 %v1189
    %v1222 = vcvt.s32.f32 %v1190
    %v1223 = vcvt.s32.f32 %v1191
    %v1224 = vcvt.s32.f32 %v1192
    %v1225 = vcvt.s32.f32 %v1193
    %v1226 = vcvt.s32.f32 %v1194
    %v1227 = vcvt.s32.f32 %v1195
    %v1228 = vcvt.s32.f32 %v1196
    %v1229 = vcvt.s32.f32 %v1197
    %v1230 = vcvt.s32.f32 %v1198
    %v1231 = vcvt.s32.f32 %v1199
    %v1232 = vcvt.s32.f32 %v1200
    %v1233 = vcvt.s32.f32 %v1201
    %v1234 = vcvt.s32.f32 %v1202
    %v1235 = vcvt.s32.f32 %v1203
    %v1236 = vcvt.s32.f32 %v1204
    %v1237 = vcvt.s32.f32 %v1205
    %v1238 = vcvt.s32.f32 %v1206
    %vm1239 = vcmp.ne.s32.totalorder %v1111, 0
    %vm1240 = vcmp.ne.s32.totalorder %v1112, 0
    %vm1241 = vcmp.ne.s32.totalorder %v1113, 0
    %vm1242 = vcmp.ne.s32.totalorder %v1114, 0
    %vm1243 = vcmp.ne.s32.totalorder %v1115, 0
    %vm1244 = vcmp.ne.s32.totalorder %v1116, 0
    %vm1245 = vcmp.ne.s32.totalorder %v1117, 0
    %vm1246 = vcmp.ne.s32.totalorder %v1118, 0
    %vm1247 = vcmp.ne.s32.totalorder %v1119, 0
    %vm1248 = vcmp.ne.s32.totalorder %v1120, 0
    %vm1249 = vcmp.ne.s32.totalorder %v1121, 0
    %vm1250 = vcmp.ne.s32.totalorder %v1122, 0
    %vm1251 = vcmp.ne.s32.totalorder %v1123, 0
    %vm1252 = vcmp.ne.s32.totalorder %v1124, 0
    %vm1253 = vcmp.ne.s32.totalorder %v1125, 0
    %vm1254 = vcmp.ne.s32.totalorder %v1126, 0
    %vm1255 = vcmp.ne.s32.totalorder %v1127, 0
    %vm1256 = vcmp.ne.s32.totalorder %v1128, 0
    %vm1257 = vcmp.ne.s32.totalorder %v1129, 0
    %vm1258 = vcmp.ne.s32.totalorder %v1130, 0
    %vm1259 = vcmp.ne.s32.totalorder %v1131, 0
    %vm1260 = vcmp.ne.s32.totalorder %v1132, 0
    %vm1261 = vcmp.ne.s32.totalorder %v1133, 0
    %vm1262 = vcmp.ne.s32.totalorder %v1134, 0
    %vm1263 = vcmp.ne.s32.totalorder %v1135, 0
    %vm1264 = vcmp.ne.s32.totalorder %v1136, 0
    %vm1265 = vcmp.ne.s32.totalorder %v1137, 0
    %vm1266 = vcmp.ne.s32.totalorder %v1138, 0
    %vm1267 = vcmp.ne.s32.totalorder %v1139, 0
    %vm1268 = vcmp.ne.s32.totalorder %v1140, 0
    %vm1269 = vcmp.ne.s32.totalorder %v1141, 0
    %vm1270 = vcmp.ne.s32.totalorder %v1142, 0
    %v1271 = vsel %vm1239, 1, 0
    %v1272 = vsel %vm1240, 1, 0
    %v1273 = vsel %vm1241, 1, 0
    %v1274 = vsel %vm1242, 1, 0
    %v1275 = vsel %vm1243, 1, 0
    %v1276 = vsel %vm1244, 1, 0
    %v1277 = vsel %vm1245, 1, 0
    %v1278 = vsel %vm1246, 1, 0
    %v1279 = vsel %vm1247, 1, 0
    %v1280 = vsel %vm1248, 1, 0
    %v1281 = vsel %vm1249, 1, 0
    %v1282 = vsel %vm1250, 1, 0
    %v1283 = vsel %vm1251, 1, 0
    %v1284 = vsel %vm1252, 1, 0
    %v1285 = vsel %vm1253, 1, 0
    %v1286 = vsel %vm1254, 1, 0
    %v1287 = vsel %vm1255, 1, 0
    %v1288 = vsel %vm1256, 1, 0
    %v1289 = vsel %vm1257, 1, 0
    %v1290 = vsel %vm1258, 1, 0
    %v1291 = vsel %vm1259, 1, 0
    %v1292 = vsel %vm1260, 1, 0
    %v1293 = vsel %vm1261, 1, 0
    %v1294 = vsel %vm1262, 1, 0
    %v1295 = vsel %vm1263, 1, 0
    %v1296 = vsel %vm1264, 1, 0
    %v1297 = vsel %vm1265, 1, 0
    %v1298 = vsel %vm1266, 1, 0
    %v1299 = vsel %vm1267, 1, 0
    %v1300 = vsel %vm1268, 1, 0
    %v1301 = vsel %vm1269, 1, 0
    %v1302 = vsel %vm1270, 1, 0
    %v1303 = vcvt.s32.f32 %v1271
    %v1304 = vcvt.s32.f32 %v1272
    %v1305 = vcvt.s32.f32 %v1273
    %v1306 = vcvt.s32.f32 %v1274
    %v1307 = vcvt.s32.f32 %v1275
    %v1308 = vcvt.s32.f32 %v1276
    %v1309 = vcvt.s32.f32 %v1277
    %v1310 = vcvt.s32.f32 %v1278
    %v1311 = vcvt.s32.f32 %v1279
    %v1312 = vcvt.s32.f32 %v1280
    %v1313 = vcvt.s32.f32 %v1281
    %v1314 = vcvt.s32.f32 %v1282
    %v1315 = vcvt.s32.f32 %v1283
    %v1316 = vcvt.s32.f32 %v1284
    %v1317 = vcvt.s32.f32 %v1285
    %v1318 = vcvt.s32.f32 %v1286
    %v1319 = vcvt.s32.f32 %v1287
    %v1320 = vcvt.s32.f32 %v1288
    %v1321 = vcvt.s32.f32 %v1289
    %v1322 = vcvt.s32.f32 %v1290
    %v1323 = vcvt.s32.f32 %v1291
    %v1324 = vcvt.s32.f32 %v1292
    %v1325 = vcvt.s32.f32 %v1293
    %v1326 = vcvt.s32.f32 %v1294
    %v1327 = vcvt.s32.f32 %v1295
    %v1328 = vcvt.s32.f32 %v1296
    %v1329 = vcvt.s32.f32 %v1297
    %v1330 = vcvt.s32.f32 %v1298
    %v1331 = vcvt.s32.f32 %v1299
    %v1332 = vcvt.s32.f32 %v1300
    %v1333 = vcvt.s32.f32 %v1301
    %v1334 = vcvt.s32.f32 %v1302
    %vm1335 = vcmask 785408
    %1336 = vst.msk [vmem:[#allocation2] sm:$0xff] %vm1335, 0.0
    %1337 = vst.msk [vmem:[#allocation2 + $0x8] sm:$0xff] %vm1335, 0.0
    %1338 = vst.msk [vmem:[#allocation2 + $0x10] sm:$0xff] %vm1335, 0.0
    %1339 = vst.msk [vmem:[#allocation2 + $0x118] sm:$0xff] %vm1335, 0.0
    %1340 = vst.msk [vmem:[#allocation2 + $0x120] sm:$0xff] %vm1335, 0.0
    %1341 = vst.msk [vmem:[#allocation2 + $0x128] sm:$0xff] %vm1335, 0.0
    %1342 = vst.msk [vmem:[#allocation2 + $0x230] sm:$0xff] %vm1335, 0.0
    %1343 = vst.msk [vmem:[#allocation2 + $0x238] sm:$0xff] %vm1335, 0.0
    %1344 = vst.msk [vmem:[#allocation2 + $0x240] sm:$0xff] %vm1335, 0.0
    %1345 = vst.msk [vmem:[#allocation2 + $0x18] sm:$0xff] %vm276, %v662
    %1346 = vst.msk [vmem:[#allocation2 + $0x20] sm:$0xff] %vm276, %v663
    %1347 = vst.msk [vmem:[#allocation2 + $0x28] sm:$0xff] %vm276, %v664
    %1348 = vst.msk [vmem:[#allocation2 + $0x30] sm:$0xff] %vm276, %v665
    %1349 = vst.msk [vmem:[#allocation2 + $0x38] sm:$0xff] %vm276, %v666
    %1350 = vst.msk [vmem:[#allocation2 + $0x40] sm:$0xff] %vm276, %v667
    %1351 = vst.msk [vmem:[#allocation2 + $0x48] sm:$0xff] %vm276, %v668
    %1352 = vst.msk [vmem:[#allocation2 + $0x50] sm:$0xff] %vm276, %v669
    %1353 = vst.msk [vmem:[#allocation2 + $0x58] sm:$0xff] %vm276, %v670
    %1354 = vst.msk [vmem:[#allocation2 + $0x60] sm:$0xff] %vm276, %v671
    %1355 = vst.msk [vmem:[#allocation2 + $0x68] sm:$0xff] %vm276, %v672
    %1356 = vst.msk [vmem:[#allocation2 + $0x70] sm:$0xff] %vm276, %v673
    %1357 = vst.msk [vmem:[#allocation2 + $0x78] sm:$0xff] %vm276, %v674
    %1358 = vst.msk [vmem:[#allocation2 + $0x80] sm:$0xff] %vm276, %v675
    %1359 = vst.msk [vmem:[#allocation2 + $0x88] sm:$0xff] %vm276, %v676
    %1360 = vst.msk [vmem:[#allocation2 + $0x90] sm:$0xff] %vm276, %v677
    %1361 = vst.msk [vmem:[#allocation2 + $0x98] sm:$0xff] %vm276, %v678
    %1362 = vst.msk [vmem:[#allocation2 + $0xa0] sm:$0xff] %vm276, %v679
    %1363 = vst.msk [vmem:[#allocation2 + $0xa8] sm:$0xff] %vm276, %v680
    %1364 = vst.msk [vmem:[#allocation2 + $0xb0] sm:$0xff] %vm276, %v681
    %1365 = vst.msk [vmem:[#allocation2 + $0xb8] sm:$0xff] %vm276, %v682
    %1366 = vst.msk [vmem:[#allocation2 + $0xc0] sm:$0xff] %vm276, %v683
    %1367 = vst.msk [vmem:[#allocation2 + $0xc8] sm:$0xff] %vm276, %v684
    %1368 = vst.msk [vmem:[#allocation2 + $0xd0] sm:$0xff] %vm276, %v685
    %1369 = vst.msk [vmem:[#allocation2 + $0xd8] sm:$0xff] %vm276, %v686
    %1370 = vst.msk [vmem:[#allocation2 + $0xe0] sm:$0xff] %vm276, %v687
    %1371 = vst.msk [vmem:[#allocation2 + $0xe8] sm:$0xff] %vm276, %v688
    %1372 = vst.msk [vmem:[#allocation2 + $0xf0] sm:$0xff] %vm276, %v689
    %1373 = vst.msk [vmem:[#allocation2 + $0xf8] sm:$0xff] %vm276, %v690
    %1374 = vst.msk [vmem:[#allocation2 + $0x100] sm:$0xff] %vm276, %v691
    %1375 = vst.msk [vmem:[#allocation2 + $0x108] sm:$0xff] %vm276, %v692
    %1376 = vst.msk [vmem:[#allocation2 + $0x110] sm:$0xff] %vm276, %v693
    %v1377 = vmul.f32 %v662, %v1207
    %v1378 = vmul.f32 %v663, %v1208
    %v1379 = vmul.f32 %v664, %v1209
    %v1380 = vmul.f32 %v665, %v1210
    %v1381 = vmul.f32 %v666, %v1211
    %v1382 = vmul.f32 %v667, %v1212
    %v1383 = vmul.f32 %v668, %v1213
    %v1384 = vmul.f32 %v669, %v1214
    %v1385 = vmul.f32 %v670, %v1215
    %v1386 = vmul.f32 %v671, %v1216
    %v1387 = vmul.f32 %v672, %v1217
    %v1388 = vmul.f32 %v673, %v1218
    %v1389 = vmul.f32 %v674, %v1219
    %v1390 = vmul.f32 %v675, %v1220
    %v1391 = vmul.f32 %v676, %v1221
    %v1392 = vmul.f32 %v677, %v1222
    %v1393 = vmul.f32 %v678, %v1223
    %v1394 = vmul.f32 %v679, %v1224
    %v1395 = vmul.f32 %v680, %v1225
    %v1396 = vmul.f32 %v681, %v1226
    %v1397 = vmul.f32 %v682, %v1227
    %v1398 = vmul.f32 %v683, %v1228
    %v1399 = vmul.f32 %v684, %v1229
    %v1400 = vmul.f32 %v685, %v1230
    %v1401 = vmul.f32 %v686, %v1231
    %v1402 = vmul.f32 %v687, %v1232
    %v1403 = vmul.f32 %v688, %v1233
    %v1404 = vmul.f32 %v689, %v1234
    %v1405 = vmul.f32 %v690, %v1235
    %v1406 = vmul.f32 %v691, %v1236
    %v1407 = vmul.f32 %v692, %v1237
    %v1408 = vmul.f32 %v693, %v1238
    %1441 = vrot.lane.b32.xlu0 %v1377, 32
    %v1442 = vpop.permute.xlu0 %1441
    %1443 = vrot.lane.b32.xlu0 %v1378, 32
    %v1444 = vpop.permute.xlu0 %1443
    %1445 = vrot.lane.b32.xlu0 %v1379, 32
    %v1446 = vpop.permute.xlu0 %1445
    %1447 = vrot.lane.b32.xlu0 %v1380, 32
    %v1448 = vpop.permute.xlu0 %1447
    %1449 = vrot.lane.b32.xlu0 %v1381, 32
    %v1450 = vpop.permute.xlu0 %1449
    %1451 = vrot.lane.b32.xlu0 %v1382, 32
    %v1452 = vpop.permute.xlu0 %1451
    %1453 = vrot.lane.b32.xlu0 %v1383, 32
    %v1454 = vpop.permute.xlu0 %1453
    %1455 = vrot.lane.b32.xlu0 %v1384, 32
    %v1456 = vpop.permute.xlu0 %1455
    %1457 = vrot.lane.b32.xlu0 %v1385, 32
    %v1458 = vpop.permute.xlu0 %1457
    %1459 = vrot.lane.b32.xlu0 %v1386, 32
    %v1460 = vpop.permute.xlu0 %1459
    %1461 = vrot.lane.b32.xlu0 %v1387, 32
    %v1462 = vpop.permute.xlu0 %1461
    %1463 = vrot.lane.b32.xlu0 %v1388, 32
    %v1464 = vpop.permute.xlu0 %1463
    %1465 = vrot.lane.b32.xlu0 %v1389, 32
    %v1466 = vpop.permute.xlu0 %1465
    %1467 = vrot.lane.b32.xlu0 %v1390, 32
    %v1468 = vpop.permute.xlu0 %1467
    %1469 = vrot.lane.b32.xlu0 %v1391, 32
    %v1470 = vpop.permute.xlu0 %1469
    %1471 = vrot.lane.b32.xlu0 %v1392, 32
    %v1472 = vpop.permute.xlu0 %1471
    %1473 = vrot.lane.b32.xlu0 %v1393, 32
    %v1474 = vpop.permute.xlu0 %1473
    %1475 = vrot.lane.b32.xlu0 %v1394, 32
    %v1476 = vpop.permute.xlu0 %1475
    %1477 = vrot.lane.b32.xlu0 %v1395, 32
    %v1478 = vpop.permute.xlu0 %1477
    %1479 = vrot.lane.b32.xlu0 %v1396, 32
    %v1480 = vpop.permute.xlu0 %1479
    %1481 = vrot.lane.b32.xlu0 %v1397, 32
    %v1482 = vpop.permute.xlu0 %1481
    %1483 = vrot.lane.b32.xlu0 %v1398, 32
    %v1484 = vpop.permute.xlu0 %1483
    %1485 = vrot.lane.b32.xlu0 %v1399, 32
    %v1486 = vpop.permute.xlu0 %1485
    %1487 = vrot.lane.b32.xlu0 %v1400, 32
    %v1488 = vpop.permute.xlu0 %1487
    %1489 = vrot.lane.b32.xlu0 %v1401, 32
    %v1490 = vpop.permute.xlu0 %1489
    %1491 = vrot.lane.b32.xlu0 %v1402, 32
    %v1492 = vpop.permute.xlu0 %1491
    %1493 = vrot.lane.b32.xlu0 %v1403, 32
    %v1494 = vpop.permute.xlu0 %1493
    %1495 = vrot.lane.b32.xlu0 %v1404, 32
    %v1496 = vpop.permute.xlu0 %1495
    %1497 = vrot.lane.b32.xlu0 %v1405, 32
    %v1498 = vpop.permute.xlu0 %1497
    %1499 = vrot.lane.b32.xlu0 %v1406, 32
    %v1500 = vpop.permute.xlu0 %1499
    %1501 = vrot.lane.b32.xlu0 %v1407, 32
    %v1502 = vpop.permute.xlu0 %1501
    %1503 = vrot.lane.b32.xlu0 %v1408, 32
    %v1504 = vpop.permute.xlu0 %1503
    %vm1537 = vcmask 523520
    %1538 = vst.msk [vmem:[#allocation2 + $0x18] sm:$0xff] %vm1537, %v1442
    %1539 = vst.msk [vmem:[#allocation2 + $0x20] sm:$0xff] %vm1537, %v1444
    %1540 = vst.msk [vmem:[#allocation2 + $0x28] sm:$0xff] %vm1537, %v1446
    %1541 = vst.msk [vmem:[#allocation2 + $0x30] sm:$0xff] %vm1537, %v1448
    %1542 = vst.msk [vmem:[#allocation2 + $0x38] sm:$0xff] %vm1537, %v1450
    %1543 = vst.msk [vmem:[#allocation2 + $0x40] sm:$0xff] %vm1537, %v1452
    %1544 = vst.msk [vmem:[#allocation2 + $0x48] sm:$0xff] %vm1537, %v1454
    %1545 = vst.msk [vmem:[#allocation2 + $0x50] sm:$0xff] %vm1537, %v1456
    %1546 = vst.msk [vmem:[#allocation2 + $0x58] sm:$0xff] %vm1537, %v1458
    %1547 = vst.msk [vmem:[#allocation2 + $0x60] sm:$0xff] %vm1537, %v1460
    %1548 = vst.msk [vmem:[#allocation2 + $0x68] sm:$0xff] %vm1537, %v1462
    %1549 = vst.msk [vmem:[#allocation2 + $0x70] sm:$0xff] %vm1537, %v1464
    %1550 = vst.msk [vmem:[#allocation2 + $0x78] sm:$0xff] %vm1537, %v1466
    %1551 = vst.msk [vmem:[#allocation2 + $0x80] sm:$0xff] %vm1537, %v1468
    %1552 = vst.msk [vmem:[#allocation2 + $0x88] sm:$0xff] %vm1537, %v1470
    %1553 = vst.msk [vmem:[#allocation2 + $0x90] sm:$0xff] %vm1537, %v1472
    %1554 = vst.msk [vmem:[#allocation2 + $0x98] sm:$0xff] %vm1537, %v1474
    %1555 = vst.msk [vmem:[#allocation2 + $0xa0] sm:$0xff] %vm1537, %v1476
    %1556 = vst.msk [vmem:[#allocation2 + $0xa8] sm:$0xff] %vm1537, %v1478
    %1557 = vst.msk [vmem:[#allocation2 + $0xb0] sm:$0xff] %vm1537, %v1480
    %1558 = vst.msk [vmem:[#allocation2 + $0xb8] sm:$0xff] %vm1537, %v1482
    %1559 = vst.msk [vmem:[#allocation2 + $0xc0] sm:$0xff] %vm1537, %v1484
    %1560 = vst.msk [vmem:[#allocation2 + $0xc8] sm:$0xff] %vm1537, %v1486
    %1561 = vst.msk [vmem:[#allocation2 + $0xd0] sm:$0xff] %vm1537, %v1488
    %1562 = vst.msk [vmem:[#allocation2 + $0xd8] sm:$0xff] %vm1537, %v1490
    %1563 = vst.msk [vmem:[#allocation2 + $0xe0] sm:$0xff] %vm1537, %v1492
    %1564 = vst.msk [vmem:[#allocation2 + $0xe8] sm:$0xff] %vm1537, %v1494
    %1565 = vst.msk [vmem:[#allocation2 + $0xf0] sm:$0xff] %vm1537, %v1496
    %1566 = vst.msk [vmem:[#allocation2 + $0xf8] sm:$0xff] %vm1537, %v1498
    %1567 = vst.msk [vmem:[#allocation2 + $0x100] sm:$0xff] %vm1537, %v1500
    %1568 = vst.msk [vmem:[#allocation2 + $0x108] sm:$0xff] %vm1537, %v1502
    %1569 = vst.msk [vmem:[#allocation2 + $0x110] sm:$0xff] %vm1537, %v1504
    %v1570 = vmul.f32 %v662, %v1303
    %v1571 = vmul.f32 %v663, %v1304
    %v1572 = vmul.f32 %v664, %v1305
    %v1573 = vmul.f32 %v665, %v1306
    %v1574 = vmul.f32 %v666, %v1307
    %v1575 = vmul.f32 %v667, %v1308
    %v1576 = vmul.f32 %v668, %v1309
    %v1577 = vmul.f32 %v669, %v1310
    %v1578 = vmul.f32 %v670, %v1311
    %v1579 = vmul.f32 %v671, %v1312
    %v1580 = vmul.f32 %v672, %v1313
    %v1581 = vmul.f32 %v673, %v1314
    %v1582 = vmul.f32 %v674, %v1315
    %v1583 = vmul.f32 %v675, %v1316
    %v1584 = vmul.f32 %v676, %v1317
    %v1585 = vmul.f32 %v677, %v1318
    %v1586 = vmul.f32 %v678, %v1319
    %v1587 = vmul.f32 %v679, %v1320
    %v1588 = vmul.f32 %v680, %v1321
    %v1589 = vmul.f32 %v681, %v1322
    %v1590 = vmul.f32 %v682, %v1323
    %v1591 = vmul.f32 %v683, %v1324
    %v1592 = vmul.f32 %v684, %v1325
    %v1593 = vmul.f32 %v685, %v1326
    %v1594 = vmul.f32 %v686, %v1327
    %v1595 = vmul.f32 %v687, %v1328
    %v1596 = vmul.f32 %v688, %v1329
    %v1597 = vmul.f32 %v689, %v1330
    %v1598 = vmul.f32 %v690, %v1331
    %v1599 = vmul.f32 %v691, %v1332
    %v1600 = vmul.f32 %v692, %v1333
    %v1601 = vmul.f32 %v693, %v1334
    %1634 = vrot.lane.b32.xlu0 %v1570, 64
    %v1635 = vpop.permute.xlu0 %1634
    %1636 = vrot.lane.b32.xlu0 %v1571, 64
    %v1637 = vpop.permute.xlu0 %1636
    %1638 = vrot.lane.b32.xlu0 %v1572, 64
    %v1639 = vpop.permute.xlu0 %1638
    %1640 = vrot.lane.b32.xlu0 %v1573, 64
    %v1641 = vpop.permute.xlu0 %1640
    %1642 = vrot.lane.b32.xlu0 %v1574, 64
    %v1643 = vpop.permute.xlu0 %1642
    %1644 = vrot.lane.b32.xlu0 %v1575, 64
    %v1645 = vpop.permute.xlu0 %1644
    %1646 = vrot.lane.b32.xlu0 %v1576, 64
    %v1647 = vpop.permute.xlu0 %1646
    %1648 = vrot.lane.b32.xlu0 %v1577, 64
    %v1649 = vpop.permute.xlu0 %1648
    %1650 = vrot.lane.b32.xlu0 %v1578, 64
    %v1651 = vpop.permute.xlu0 %1650
    %1652 = vrot.lane.b32.xlu0 %v1579, 64
    %v1653 = vpop.permute.xlu0 %1652
    %1654 = vrot.lane.b32.xlu0 %v1580, 64
    %v1655 = vpop.permute.xlu0 %1654
    %1656 = vrot.lane.b32.xlu0 %v1581, 64
    %v1657 = vpop.permute.xlu0 %1656
    %1658 = vrot.lane.b32.xlu0 %v1582, 64
    %v1659 = vpop.permute.xlu0 %1658
    %1660 = vrot.lane.b32.xlu0 %v1583, 64
    %v1661 = vpop.permute.xlu0 %1660
    %1662 = vrot.lane.b32.xlu0 %v1584, 64
    %v1663 = vpop.permute.xlu0 %1662
    %1664 = vrot.lane.b32.xlu0 %v1585, 64
    %v1665 = vpop.permute.xlu0 %1664
    %1666 = vrot.lane.b32.xlu0 %v1586, 64
    %v1667 = vpop.permute.xlu0 %1666
    %1668 = vrot.lane.b32.xlu0 %v1587, 64
    %v1669 = vpop.permute.xlu0 %1668
    %1670 = vrot.lane.b32.xlu0 %v1588, 64
    %v1671 = vpop.permute.xlu0 %1670
    %1672 = vrot.lane.b32.xlu0 %v1589, 64
    %v1673 = vpop.permute.xlu0 %1672
    %1674 = vrot.lane.b32.xlu0 %v1590, 64
    %v1675 = vpop.permute.xlu0 %1674
    %1676 = vrot.lane.b32.xlu0 %v1591, 64
    %v1677 = vpop.permute.xlu0 %1676
    %1678 = vrot.lane.b32.xlu0 %v1592, 64
    %v1679 = vpop.permute.xlu0 %1678
    %1680 = vrot.lane.b32.xlu0 %v1593, 64
    %v1681 = vpop.permute.xlu0 %1680
    %1682 = vrot.lane.b32.xlu0 %v1594, 64
    %v1683 = vpop.permute.xlu0 %1682
    %1684 = vrot.lane.b32.xlu0 %v1595, 64
    %v1685 = vpop.permute.xlu0 %1684
    %1686 = vrot.lane.b32.xlu0 %v1596, 64
    %v1687 = vpop.permute.xlu0 %1686
    %1688 = vrot.lane.b32.xlu0 %v1597, 64
    %v1689 = vpop.permute.xlu0 %1688
    %1690 = vrot.lane.b32.xlu0 %v1598, 64
    %v1691 = vpop.permute.xlu0 %1690
    %1692 = vrot.lane.b32.xlu0 %v1599, 64
    %v1693 = vpop.permute.xlu0 %1692
    %1694 = vrot.lane.b32.xlu0 %v1600, 64
    %v1695 = vpop.permute.xlu0 %1694
    %1696 = vrot.lane.b32.xlu0 %v1601, 64
    %v1697 = vpop.permute.xlu0 %1696
    %vm1730 = vcmask 785920
    %1731 = vst.msk [vmem:[#allocation2 + $0x18] sm:$0xff] %vm1730, %v1635
    %1732 = vst.msk [vmem:[#allocation2 + $0x20] sm:$0xff] %vm1730, %v1637
    %1733 = vst.msk [vmem:[#allocation2 + $0x28] sm:$0xff] %vm1730, %v1639
    %1734 = vst.msk [vmem:[#allocation2 + $0x30] sm:$0xff] %vm1730, %v1641
    %1735 = vst.msk [vmem:[#allocation2 + $0x38] sm:$0xff] %vm1730, %v1643
    %1736 = vst.msk [vmem:[#allocation2 + $0x40] sm:$0xff] %vm1730, %v1645
    %1737 = vst.msk [vmem:[#allocation2 + $0x48] sm:$0xff] %vm1730, %v1647
    %1738 = vst.msk [vmem:[#allocation2 + $0x50] sm:$0xff] %vm1730, %v1649
    %1739 = vst.msk [vmem:[#allocation2 + $0x58] sm:$0xff] %vm1730, %v1651
    %1740 = vst.msk [vmem:[#allocation2 + $0x60] sm:$0xff] %vm1730, %v1653
    %1741 = vst.msk [vmem:[#allocation2 + $0x68] sm:$0xff] %vm1730, %v1655
    %1742 = vst.msk [vmem:[#allocation2 + $0x70] sm:$0xff] %vm1730, %v1657
    %1743 = vst.msk [vmem:[#allocation2 + $0x78] sm:$0xff] %vm1730, %v1659
    %1744 = vst.msk [vmem:[#allocation2 + $0x80] sm:$0xff] %vm1730, %v1661
    %1745 = vst.msk [vmem:[#allocation2 + $0x88] sm:$0xff] %vm1730, %v1663
    %1746 = vst.msk [vmem:[#allocation2 + $0x90] sm:$0xff] %vm1730, %v1665
    %1747 = vst.msk [vmem:[#allocation2 + $0x98] sm:$0xff] %vm1730, %v1667
    %1748 = vst.msk [vmem:[#allocation2 + $0xa0] sm:$0xff] %vm1730, %v1669
    %1749 = vst.msk [vmem:[#allocation2 + $0xa8] sm:$0xff] %vm1730, %v1671
    %1750 = vst.msk [vmem:[#allocation2 + $0xb0] sm:$0xff] %vm1730, %v1673
    %1751 = vst.msk [vmem:[#allocation2 + $0xb8] sm:$0xff] %vm1730, %v1675
    %1752 = vst.msk [vmem:[#allocation2 + $0xc0] sm:$0xff] %vm1730, %v1677
    %1753 = vst.msk [vmem:[#allocation2 + $0xc8] sm:$0xff] %vm1730, %v1679
    %1754 = vst.msk [vmem:[#allocation2 + $0xd0] sm:$0xff] %vm1730, %v1681
    %1755 = vst.msk [vmem:[#allocation2 + $0xd8] sm:$0xff] %vm1730, %v1683
    %1756 = vst.msk [vmem:[#allocation2 + $0xe0] sm:$0xff] %vm1730, %v1685
    %1757 = vst.msk [vmem:[#allocation2 + $0xe8] sm:$0xff] %vm1730, %v1687
    %1758 = vst.msk [vmem:[#allocation2 + $0xf0] sm:$0xff] %vm1730, %v1689
    %1759 = vst.msk [vmem:[#allocation2 + $0xf8] sm:$0xff] %vm1730, %v1691
    %1760 = vst.msk [vmem:[#allocation2 + $0x100] sm:$0xff] %vm1730, %v1693
    %1761 = vst.msk [vmem:[#allocation2 + $0x108] sm:$0xff] %vm1730, %v1695
    %1762 = vst.msk [vmem:[#allocation2 + $0x110] sm:$0xff] %vm1730, %v1697
    %1763 = vst.msk [vmem:[#allocation2 + $0x130] sm:$0xff] %vm276, %v694
    %1764 = vst.msk [vmem:[#allocation2 + $0x138] sm:$0xff] %vm276, %v695
    %1765 = vst.msk [vmem:[#allocation2 + $0x140] sm:$0xff] %vm276, %v696
    %1766 = vst.msk [vmem:[#allocation2 + $0x148] sm:$0xff] %vm276, %v697
    %1767 = vst.msk [vmem:[#allocation2 + $0x150] sm:$0xff] %vm276, %v698
    %1768 = vst.msk [vmem:[#allocation2 + $0x158] sm:$0xff] %vm276, %v699
    %1769 = vst.msk [vmem:[#allocation2 + $0x160] sm:$0xff] %vm276, %v700
    %1770 = vst.msk [vmem:[#allocation2 + $0x168] sm:$0xff] %vm276, %v701
    %1771 = vst.msk [vmem:[#allocation2 + $0x170] sm:$0xff] %vm276, %v702
    %1772 = vst.msk [vmem:[#allocation2 + $0x178] sm:$0xff] %vm276, %v703
    %1773 = vst.msk [vmem:[#allocation2 + $0x180] sm:$0xff] %vm276, %v704
    %1774 = vst.msk [vmem:[#allocation2 + $0x188] sm:$0xff] %vm276, %v705
    %1775 = vst.msk [vmem:[#allocation2 + $0x190] sm:$0xff] %vm276, %v706
    %1776 = vst.msk [vmem:[#allocation2 + $0x198] sm:$0xff] %vm276, %v707
    %1777 = vst.msk [vmem:[#allocation2 + $0x1a0] sm:$0xff] %vm276, %v708
    %1778 = vst.msk [vmem:[#allocation2 + $0x1a8] sm:$0xff] %vm276, %v709
    %1779 = vst.msk [vmem:[#allocation2 + $0x1b0] sm:$0xff] %vm276, %v710
    %1780 = vst.msk [vmem:[#allocation2 + $0x1b8] sm:$0xff] %vm276, %v711
    %1781 = vst.msk [vmem:[#allocation2 + $0x1c0] sm:$0xff] %vm276, %v712
    %1782 = vst.msk [vmem:[#allocation2 + $0x1c8] sm:$0xff] %vm276, %v713
    %1783 = vst.msk [vmem:[#allocation2 + $0x1d0] sm:$0xff] %vm276, %v714
    %1784 = vst.msk [vmem:[#allocation2 + $0x1d8] sm:$0xff] %vm276, %v715
    %1785 = vst.msk [vmem:[#allocation2 + $0x1e0] sm:$0xff] %vm276, %v716
    %1786 = vst.msk [vmem:[#allocation2 + $0x1e8] sm:$0xff] %vm276, %v717
    %1787 = vst.msk [vmem:[#allocation2 + $0x1f0] sm:$0xff] %vm276, %v718
    %1788 = vst.msk [vmem:[#allocation2 + $0x1f8] sm:$0xff] %vm276, %v719
    %1789 = vst.msk [vmem:[#allocation2 + $0x200] sm:$0xff] %vm276, %v720
    %1790 = vst.msk [vmem:[#allocation2 + $0x208] sm:$0xff] %vm276, %v721
    %1791 = vst.msk [vmem:[#allocation2 + $0x210] sm:$0xff] %vm276, %v722
    %1792 = vst.msk [vmem:[#allocation2 + $0x218] sm:$0xff] %vm276, %v723
    %1793 = vst.msk [vmem:[#allocation2 + $0x220] sm:$0xff] %vm276, %v724
    %1794 = vst.msk [vmem:[#allocation2 + $0x228] sm:$0xff] %vm276, %v725
    %v1795 = vmul.f32 %v694, %v1207
    %v1796 = vmul.f32 %v695, %v1208
    %v1797 = vmul.f32 %v696, %v1209
    %v1798 = vmul.f32 %v697, %v1210
    %v1799 = vmul.f32 %v698, %v1211
    %v1800 = vmul.f32 %v699, %v1212
    %v1801 = vmul.f32 %v700, %v1213
    %v1802 = vmul.f32 %v701, %v1214
    %v1803 = vmul.f32 %v702, %v1215
    %v1804 = vmul.f32 %v703, %v1216
    %v1805 = vmul.f32 %v704, %v1217
    %v1806 = vmul.f32 %v705, %v1218
    %v1807 = vmul.f32 %v706, %v1219
    %v1808 = vmul.f32 %v707, %v1220
    %v1809 = vmul.f32 %v708, %v1221
    %v1810 = vmul.f32 %v709, %v1222
    %v1811 = vmul.f32 %v710, %v1223
    %v1812 = vmul.f32 %v711, %v1224
    %v1813 = vmul.f32 %v712, %v1225
    %v1814 = vmul.f32 %v713, %v1226
    %v1815 = vmul.f32 %v714, %v1227
    %v1816 = vmul.f32 %v715, %v1228
    %v1817 = vmul.f32 %v716, %v1229
    %v1818 = vmul.f32 %v717, %v1230
    %v1819 = vmul.f32 %v718, %v1231
    %v1820 = vmul.f32 %v719, %v1232
    %v1821 = vmul.f32 %v720, %v1233
    %v1822 = vmul.f32 %v721, %v1234
    %v1823 = vmul.f32 %v722, %v1235
    %v1824 = vmul.f32 %v723, %v1236
    %v1825 = vmul.f32 %v724, %v1237
    %v1826 = vmul.f32 %v725, %v1238
    %1859 = vrot.lane.b32.xlu0 %v1795, 32
    %v1860 = vpop.permute.xlu0 %1859
    %1861 = vrot.lane.b32.xlu0 %v1796, 32
    %v1862 = vpop.permute.xlu0 %1861
    %1863 = vrot.lane.b32.xlu0 %v1797, 32
    %v1864 = vpop.permute.xlu0 %1863
    %1865 = vrot.lane.b32.xlu0 %v1798, 32
    %v1866 = vpop.permute.xlu0 %1865
    %1867 = vrot.lane.b32.xlu0 %v1799, 32
    %v1868 = vpop.permute.xlu0 %1867
    %1869 = vrot.lane.b32.xlu0 %v1800, 32
    %v1870 = vpop.permute.xlu0 %1869
    %1871 = vrot.lane.b32.xlu0 %v1801, 32
    %v1872 = vpop.permute.xlu0 %1871
    %1873 = vrot.lane.b32.xlu0 %v1802, 32
    %v1874 = vpop.permute.xlu0 %1873
    %1875 = vrot.lane.b32.xlu0 %v1803, 32
    %v1876 = vpop.permute.xlu0 %1875
    %1877 = vrot.lane.b32.xlu0 %v1804, 32
    %v1878 = vpop.permute.xlu0 %1877
    %1879 = vrot.lane.b32.xlu0 %v1805, 32
    %v1880 = vpop.permute.xlu0 %1879
    %1881 = vrot.lane.b32.xlu0 %v1806, 32
    %v1882 = vpop.permute.xlu0 %1881
    %1883 = vrot.lane.b32.xlu0 %v1807, 32
    %v1884 = vpop.permute.xlu0 %1883
    %1885 = vrot.lane.b32.xlu0 %v1808, 32
    %v1886 = vpop.permute.xlu0 %1885
    %1887 = vrot.lane.b32.xlu0 %v1809, 32
    %v1888 = vpop.permute.xlu0 %1887
    %1889 = vrot.lane.b32.xlu0 %v1810, 32
    %v1890 = vpop.permute.xlu0 %1889
    %1891 = vrot.lane.b32.xlu0 %v1811, 32
    %v1892 = vpop.permute.xlu0 %1891
    %1893 = vrot.lane.b32.xlu0 %v1812, 32
    %v1894 = vpop.permute.xlu0 %1893
    %1895 = vrot.lane.b32.xlu0 %v1813, 32
    %v1896 = vpop.permute.xlu0 %1895
    %1897 = vrot.lane.b32.xlu0 %v1814, 32
    %v1898 = vpop.permute.xlu0 %1897
    %1899 = vrot.lane.b32.xlu0 %v1815, 32
    %v1900 = vpop.permute.xlu0 %1899
    %1901 = vrot.lane.b32.xlu0 %v1816, 32
    %v1902 = vpop.permute.xlu0 %1901
    %1903 = vrot.lane.b32.xlu0 %v1817, 32
    %v1904 = vpop.permute.xlu0 %1903
    %1905 = vrot.lane.b32.xlu0 %v1818, 32
    %v1906 = vpop.permute.xlu0 %1905
    %1907 = vrot.lane.b32.xlu0 %v1819, 32
    %v1908 = vpop.permute.xlu0 %1907
    %1909 = vrot.lane.b32.xlu0 %v1820, 32
    %v1910 = vpop.permute.xlu0 %1909
    %1911 = vrot.lane.b32.xlu0 %v1821, 32
    %v1912 = vpop.permute.xlu0 %1911
    %1913 = vrot.lane.b32.xlu0 %v1822, 32
    %v1914 = vpop.permute.xlu0 %1913
    %1915 = vrot.lane.b32.xlu0 %v1823, 32
    %v1916 = vpop.permute.xlu0 %1915
    %1917 = vrot.lane.b32.xlu0 %v1824, 32
    %v1918 = vpop.permute.xlu0 %1917
    %1919 = vrot.lane.b32.xlu0 %v1825, 32
    %v1920 = vpop.permute.xlu0 %1919
    %1921 = vrot.lane.b32.xlu0 %v1826, 32
    %v1922 = vpop.permute.xlu0 %1921
    %1955 = vst.msk [vmem:[#allocation2 + $0x130] sm:$0xff] %vm1537, %v1860
    %1956 = vst.msk [vmem:[#allocation2 + $0x138] sm:$0xff] %vm1537, %v1862
    %1957 = vst.msk [vmem:[#allocation2 + $0x140] sm:$0xff] %vm1537, %v1864
    %1958 = vst.msk [vmem:[#allocation2 + $0x148] sm:$0xff] %vm1537, %v1866
    %1959 = vst.msk [vmem:[#allocation2 + $0x150] sm:$0xff] %vm1537, %v1868
    %1960 = vst.msk [vmem:[#allocation2 + $0x158] sm:$0xff] %vm1537, %v1870
    %1961 = vst.msk [vmem:[#allocation2 + $0x160] sm:$0xff] %vm1537, %v1872
    %1962 = vst.msk [vmem:[#allocation2 + $0x168] sm:$0xff] %vm1537, %v1874
    %1963 = vst.msk [vmem:[#allocation2 + $0x170] sm:$0xff] %vm1537, %v1876
    %1964 = vst.msk [vmem:[#allocation2 + $0x178] sm:$0xff] %vm1537, %v1878
    %1965 = vst.msk [vmem:[#allocation2 + $0x180] sm:$0xff] %vm1537, %v1880
    %1966 = vst.msk [vmem:[#allocation2 + $0x188] sm:$0xff] %vm1537, %v1882
    %1967 = vst.msk [vmem:[#allocation2 + $0x190] sm:$0xff] %vm1537, %v1884
    %1968 = vst.msk [vmem:[#allocation2 + $0x198] sm:$0xff] %vm1537, %v1886
    %1969 = vst.msk [vmem:[#allocation2 + $0x1a0] sm:$0xff] %vm1537, %v1888
    %1970 = vst.msk [vmem:[#allocation2 + $0x1a8] sm:$0xff] %vm1537, %v1890
    %1971 = vst.msk [vmem:[#allocation2 + $0x1b0] sm:$0xff] %vm1537, %v1892
    %1972 = vst.msk [vmem:[#allocation2 + $0x1b8] sm:$0xff] %vm1537, %v1894
    %1973 = vst.msk [vmem:[#allocation2 + $0x1c0] sm:$0xff] %vm1537, %v1896
    %1974 = vst.msk [vmem:[#allocation2 + $0x1c8] sm:$0xff] %vm1537, %v1898
    %1975 = vst.msk [vmem:[#allocation2 + $0x1d0] sm:$0xff] %vm1537, %v1900
    %1976 = vst.msk [vmem:[#allocation2 + $0x1d8] sm:$0xff] %vm1537, %v1902
    %1977 = vst.msk [vmem:[#allocation2 + $0x1e0] sm:$0xff] %vm1537, %v1904
    %1978 = vst.msk [vmem:[#allocation2 + $0x1e8] sm:$0xff] %vm1537, %v1906
    %1979 = vst.msk [vmem:[#allocation2 + $0x1f0] sm:$0xff] %vm1537, %v1908
    %1980 = vst.msk [vmem:[#allocation2 + $0x1f8] sm:$0xff] %vm1537, %v1910
    %1981 = vst.msk [vmem:[#allocation2 + $0x200] sm:$0xff] %vm1537, %v1912
    %1982 = vst.msk [vmem:[#allocation2 + $0x208] sm:$0xff] %vm1537, %v1914
    %1983 = vst.msk [vmem:[#allocation2 + $0x210] sm:$0xff] %vm1537, %v1916
    %1984 = vst.msk [vmem:[#allocation2 + $0x218] sm:$0xff] %vm1537, %v1918
    %1985 = vst.msk [vmem:[#allocation2 + $0x220] sm:$0xff] %vm1537, %v1920
    %1986 = vst.msk [vmem:[#allocation2 + $0x228] sm:$0xff] %vm1537, %v1922
    %v1987 = vmul.f32 %v694, %v1303
    %v1988 = vmul.f32 %v695, %v1304
    %v1989 = vmul.f32 %v696, %v1305
    %v1990 = vmul.f32 %v697, %v1306
    %v1991 = vmul.f32 %v698, %v1307
    %v1992 = vmul.f32 %v699, %v1308
    %v1993 = vmul.f32 %v700, %v1309
    %v1994 = vmul.f32 %v701, %v1310
    %v1995 = vmul.f32 %v702, %v1311
    %v1996 = vmul.f32 %v703, %v1312
    %v1997 = vmul.f32 %v704, %v1313
    %v1998 = vmul.f32 %v705, %v1314
    %v1999 = vmul.f32 %v706, %v1315
    %v2000 = vmul.f32 %v707, %v1316
    %v2001 = vmul.f32 %v708, %v1317
    %v2002 = vmul.f32 %v709, %v1318
    %v2003 = vmul.f32 %v710, %v1319
    %v2004 = vmul.f32 %v711, %v1320
    %v2005 = vmul.f32 %v712, %v1321
    %v2006 = vmul.f32 %v713, %v1322
    %v2007 = vmul.f32 %v714, %v1323
    %v2008 = vmul.f32 %v715, %v1324
    %v2009 = vmul.f32 %v716, %v1325
    %v2010 = vmul.f32 %v717, %v1326
    %v2011 = vmul.f32 %v718, %v1327
    %v2012 = vmul.f32 %v719, %v1328
    %v2013 = vmul.f32 %v720, %v1329
    %v2014 = vmul.f32 %v721, %v1330
    %v2015 = vmul.f32 %v722, %v1331
    %v2016 = vmul.f32 %v723, %v1332
    %v2017 = vmul.f32 %v724, %v1333
    %v2018 = vmul.f32 %v725, %v1334
    %2051 = vrot.lane.b32.xlu0 %v1987, 64
    %v2052 = vpop.permute.xlu0 %2051
    %2053 = vrot.lane.b32.xlu0 %v1988, 64
    %v2054 = vpop.permute.xlu0 %2053
    %2055 = vrot.lane.b32.xlu0 %v1989, 64
    %v2056 = vpop.permute.xlu0 %2055
    %2057 = vrot.lane.b32.xlu0 %v1990, 64
    %v2058 = vpop.permute.xlu0 %2057
    %2059 = vrot.lane.b32.xlu0 %v1991, 64
    %v2060 = vpop.permute.xlu0 %2059
    %2061 = vrot.lane.b32.xlu0 %v1992, 64
    %v2062 = vpop.permute.xlu0 %2061
    %2063 = vrot.lane.b32.xlu0 %v1993, 64
    %v2064 = vpop.permute.xlu0 %2063
    %2065 = vrot.lane.b32.xlu0 %v1994, 64
    %v2066 = vpop.permute.xlu0 %2065
    %2067 = vrot.lane.b32.xlu0 %v1995, 64
    %v2068 = vpop.permute.xlu0 %2067
    %2069 = vrot.lane.b32.xlu0 %v1996, 64
    %v2070 = vpop.permute.xlu0 %2069
    %2071 = vrot.lane.b32.xlu0 %v1997, 64
    %v2072 = vpop.permute.xlu0 %2071
    %2073 = vrot.lane.b32.xlu0 %v1998, 64
    %v2074 = vpop.permute.xlu0 %2073
    %2075 = vrot.lane.b32.xlu0 %v1999, 64
    %v2076 = vpop.permute.xlu0 %2075
    %2077 = vrot.lane.b32.xlu0 %v2000, 64
    %v2078 = vpop.permute.xlu0 %2077
    %2079 = vrot.lane.b32.xlu0 %v2001, 64
    %v2080 = vpop.permute.xlu0 %2079
    %2081 = vrot.lane.b32.xlu0 %v2002, 64
    %v2082 = vpop.permute.xlu0 %2081
    %2083 = vrot.lane.b32.xlu0 %v2003, 64
    %v2084 = vpop.permute.xlu0 %2083
    %2085 = vrot.lane.b32.xlu0 %v2004, 64
    %v2086 = vpop.permute.xlu0 %2085
    %2087 = vrot.lane.b32.xlu0 %v2005, 64
    %v2088 = vpop.permute.xlu0 %2087
    %2089 = vrot.lane.b32.xlu0 %v2006, 64
    %v2090 = vpop.permute.xlu0 %2089
    %2091 = vrot.lane.b32.xlu0 %v2007, 64
    %v2092 = vpop.permute.xlu0 %2091
    %2093 = vrot.lane.b32.xlu0 %v2008, 64
    %v2094 = vpop.permute.xlu0 %2093
    %2095 = vrot.lane.b32.xlu0 %v2009, 64
    %v2096 = vpop.permute.xlu0 %2095
    %2097 = vrot.lane.b32.xlu0 %v2010, 64
    %v2098 = vpop.permute.xlu0 %2097
    %2099 = vrot.lane.b32.xlu0 %v2011, 64
    %v2100 = vpop.permute.xlu0 %2099
    %2101 = vrot.lane.b32.xlu0 %v2012, 64
    %v2102 = vpop.permute.xlu0 %2101
    %2103 = vrot.lane.b32.xlu0 %v2013, 64
    %v2104 = vpop.permute.xlu0 %2103
    %2105 = vrot.lane.b32.xlu0 %v2014, 64
    %v2106 = vpop.permute.xlu0 %2105
    %2107 = vrot.lane.b32.xlu0 %v2015, 64
    %v2108 = vpop.permute.xlu0 %2107
    %2109 = vrot.lane.b32.xlu0 %v2016, 64
    %v2110 = vpop.permute.xlu0 %2109
    %2111 = vrot.lane.b32.xlu0 %v2017, 64
    %v2112 = vpop.permute.xlu0 %2111
    %2113 = vrot.lane.b32.xlu0 %v2018, 64
    %v2114 = vpop.permute.xlu0 %2113
    %2147 = vst.msk [vmem:[#allocation2 + $0x130] sm:$0xff] %vm1730, %v2052
    %2148 = vst.msk [vmem:[#allocation2 + $0x138] sm:$0xff] %vm1730, %v2054
    %2149 = vst.msk [vmem:[#allocation2 + $0x140] sm:$0xff] %vm1730, %v2056
    %2150 = vst.msk [vmem:[#allocation2 + $0x148] sm:$0xff] %vm1730, %v2058
    %2151 = vst.msk [vmem:[#allocation2 + $0x150] sm:$0xff] %vm1730, %v2060
    %2152 = vst.msk [vmem:[#allocation2 + $0x158] sm:$0xff] %vm1730, %v2062
    %2153 = vst.msk [vmem:[#allocation2 + $0x160] sm:$0xff] %vm1730, %v2064
    %2154 = vst.msk [vmem:[#allocation2 + $0x168] sm:$0xff] %vm1730, %v2066
    %2155 = vst.msk [vmem:[#allocation2 + $0x170] sm:$0xff] %vm1730, %v2068
    %2156 = vst.msk [vmem:[#allocation2 + $0x178] sm:$0xff] %vm1730, %v2070
    %2157 = vst.msk [vmem:[#allocation2 + $0x180] sm:$0xff] %vm1730, %v2072
    %2158 = vst.msk [vmem:[#allocation2 + $0x188] sm:$0xff] %vm1730, %v2074
    %2159 = vst.msk [vmem:[#allocation2 + $0x190] sm:$0xff] %vm1730, %v2076
    %2160 = vst.msk [vmem:[#allocation2 + $0x198] sm:$0xff] %vm1730, %v2078
    %2161 = vst.msk [vmem:[#allocation2 + $0x1a0] sm:$0xff] %vm1730, %v2080
    %2162 = vst.msk [vmem:[#allocation2 + $0x1a8] sm:$0xff] %vm1730, %v2082
    %2163 = vst.msk [vmem:[#allocation2 + $0x1b0] sm:$0xff] %vm1730, %v2084
    %2164 = vst.msk [vmem:[#allocation2 + $0x1b8] sm:$0xff] %vm1730, %v2086
    %2165 = vst.msk [vmem:[#allocation2 + $0x1c0] sm:$0xff] %vm1730, %v2088
    %2166 = vst.msk [vmem:[#allocation2 + $0x1c8] sm:$0xff] %vm1730, %v2090
    %2167 = vst.msk [vmem:[#allocation2 + $0x1d0] sm:$0xff] %vm1730, %v2092
    %2168 = vst.msk [vmem:[#allocation2 + $0x1d8] sm:$0xff] %vm1730, %v2094
    %2169 = vst.msk [vmem:[#allocation2 + $0x1e0] sm:$0xff] %vm1730, %v2096
    %2170 = vst.msk [vmem:[#allocation2 + $0x1e8] sm:$0xff] %vm1730, %v2098
    %2171 = vst.msk [vmem:[#allocation2 + $0x1f0] sm:$0xff] %vm1730, %v2100
    %2172 = vst.msk [vmem:[#allocation2 + $0x1f8] sm:$0xff] %vm1730, %v2102
    %2173 = vst.msk [vmem:[#allocation2 + $0x200] sm:$0xff] %vm1730, %v2104
    %2174 = vst.msk [vmem:[#allocation2 + $0x208] sm:$0xff] %vm1730, %v2106
    %2175 = vst.msk [vmem:[#allocation2 + $0x210] sm:$0xff] %vm1730, %v2108
    %2176 = vst.msk [vmem:[#allocation2 + $0x218] sm:$0xff] %vm1730, %v2110
    %2177 = vst.msk [vmem:[#allocation2 + $0x220] sm:$0xff] %vm1730, %v2112
    %2178 = vst.msk [vmem:[#allocation2 + $0x228] sm:$0xff] %vm1730, %v2114
    %v2179 = vld [vmem:[#allocation2 + $0x7] sm:$0xff]
    %v2180 = vld [vmem:[#allocation2 + $0xf] sm:$0xff]
    %v2181 = vld [vmem:[#allocation2 + $0x17] sm:$0xff]
    %v2182 = vld [vmem:[#allocation2 + $0x1f] sm:$0xff]
    %v2183 = vld [vmem:[#allocation2 + $0x27] sm:$0xff]
    %v2184 = vld [vmem:[#allocation2 + $0x2f] sm:$0xff]
    %v2185 = vld [vmem:[#allocation2 + $0x37] sm:$0xff]
    %v2186 = vld [vmem:[#allocation2 + $0x3f] sm:$0xff]
    %v2187 = vld [vmem:[#allocation2 + $0x47] sm:$0xff]
    %v2188 = vld [vmem:[#allocation2 + $0x4f] sm:$0xff]
    %v2189 = vld [vmem:[#allocation2 + $0x57] sm:$0xff]
    %v2190 = vld [vmem:[#allocation2 + $0x5f] sm:$0xff]
    %v2191 = vld [vmem:[#allocation2 + $0x67] sm:$0xff]
    %v2192 = vld [vmem:[#allocation2 + $0x6f] sm:$0xff]
    %v2193 = vld [vmem:[#allocation2 + $0x77] sm:$0xff]
    %v2194 = vld [vmem:[#allocation2 + $0x7f] sm:$0xff]
    %v2195 = vld [vmem:[#allocation2 + $0x87] sm:$0xff]
    %v2196 = vld [vmem:[#allocation2 + $0x8f] sm:$0xff]
    %v2197 = vld [vmem:[#allocation2 + $0x97] sm:$0xff]
    %v2198 = vld [vmem:[#allocation2 + $0x9f] sm:$0xff]
    %v2199 = vld [vmem:[#allocation2 + $0xa7] sm:$0xff]
    %v2200 = vld [vmem:[#allocation2 + $0xaf] sm:$0xff]
    %v2201 = vld [vmem:[#allocation2 + $0xb7] sm:$0xff]
    %v2202 = vld [vmem:[#allocation2 + $0xbf] sm:$0xff]
    %v2203 = vld [vmem:[#allocation2 + $0xc7] sm:$0xff]
    %v2204 = vld [vmem:[#allocation2 + $0xcf] sm:$0xff]
    %v2205 = vld [vmem:[#allocation2 + $0xd7] sm:$0xff]
    %v2206 = vld [vmem:[#allocation2 + $0xdf] sm:$0xff]
    %v2207 = vld [vmem:[#allocation2 + $0xe7] sm:$0xff]
    %v2208 = vld [vmem:[#allocation2 + $0xef] sm:$0xff]
    %v2209 = vld [vmem:[#allocation2 + $0xf7] sm:$0xff]
    %v2210 = vld [vmem:[#allocation2 + $0xff] sm:$0xff]
    %v2211 = vpack.c.bf16 %v2180, %v2179
    %v2212 = vpack.c.bf16 %v2182, %v2181
    %v2213 = vpack.c.bf16 %v2184, %v2183
    %v2214 = vpack.c.bf16 %v2186, %v2185
    %v2215 = vpack.c.bf16 %v2188, %v2187
    %v2216 = vpack.c.bf16 %v2190, %v2189
    %v2217 = vpack.c.bf16 %v2192, %v2191
    %v2218 = vpack.c.bf16 %v2194, %v2193
    %v2219 = vpack.c.bf16 %v2196, %v2195
    %v2220 = vpack.c.bf16 %v2198, %v2197
    %v2221 = vpack.c.bf16 %v2200, %v2199
    %v2222 = vpack.c.bf16 %v2202, %v2201
    %v2223 = vpack.c.bf16 %v2204, %v2203
    %v2224 = vpack.c.bf16 %v2206, %v2205
    %v2225 = vpack.c.bf16 %v2208, %v2207
    %v2226 = vpack.c.bf16 %v2210, %v2209
    %2243 = vrot.lane.b32.xlu0 %v2211, 96
    %v2244 = vpop.permute.xlu0 %2243
    %2245 = vrot.lane.b32.xlu0 %v2212, 96
    %v2246 = vpop.permute.xlu0 %2245
    %2247 = vrot.lane.b32.xlu0 %v2213, 96
    %v2248 = vpop.permute.xlu0 %2247
    %2249 = vrot.lane.b32.xlu0 %v2214, 96
    %v2250 = vpop.permute.xlu0 %2249
    %2251 = vrot.lane.b32.xlu0 %v2215, 96
    %v2252 = vpop.permute.xlu0 %2251
    %2253 = vrot.lane.b32.xlu0 %v2216, 96
    %v2254 = vpop.permute.xlu0 %2253
    %2255 = vrot.lane.b32.xlu0 %v2217, 96
    %v2256 = vpop.permute.xlu0 %2255
    %2257 = vrot.lane.b32.xlu0 %v2218, 96
    %v2258 = vpop.permute.xlu0 %2257
    %2259 = vrot.lane.b32.xlu0 %v2219, 96
    %v2260 = vpop.permute.xlu0 %2259
    %2261 = vrot.lane.b32.xlu0 %v2220, 96
    %v2262 = vpop.permute.xlu0 %2261
    %2263 = vrot.lane.b32.xlu0 %v2221, 96
    %v2264 = vpop.permute.xlu0 %2263
    %2265 = vrot.lane.b32.xlu0 %v2222, 96
    %v2266 = vpop.permute.xlu0 %2265
    %2267 = vrot.lane.b32.xlu0 %v2223, 96
    %v2268 = vpop.permute.xlu0 %2267
    %2269 = vrot.lane.b32.xlu0 %v2224, 96
    %v2270 = vpop.permute.xlu0 %2269
    %2271 = vrot.lane.b32.xlu0 %v2225, 96
    %v2272 = vpop.permute.xlu0 %2271
    %2273 = vrot.lane.b32.xlu0 %v2226, 96
    %v2274 = vpop.permute.xlu0 %2273
    %2291 = vst.msk [vmem:[#allocation3] sm:$0xff] %vm276, %v2244
    %2292 = vst.msk [vmem:[#allocation3 + $0x18] sm:$0xff] %vm276, %v2246
    %2293 = vst.msk [vmem:[#allocation3 + $0x30] sm:$0xff] %vm276, %v2248
    %2294 = vst.msk [vmem:[#allocation3 + $0x48] sm:$0xff] %vm276, %v2250
    %2295 = vst.msk [vmem:[#allocation3 + $0x60] sm:$0xff] %vm276, %v2252
    %2296 = vst.msk [vmem:[#allocation3 + $0x78] sm:$0xff] %vm276, %v2254
    %2297 = vst.msk [vmem:[#allocation3 + $0x90] sm:$0xff] %vm276, %v2256
    %2298 = vst.msk [vmem:[#allocation3 + $0xa8] sm:$0xff] %vm276, %v2258
    %2299 = vst.msk [vmem:[#allocation3 + $0xc0] sm:$0xff] %vm276, %v2260
    %2300 = vst.msk [vmem:[#allocation3 + $0xd8] sm:$0xff] %vm276, %v2262
    %2301 = vst.msk [vmem:[#allocation3 + $0xf0] sm:$0xff] %vm276, %v2264
    %2302 = vst.msk [vmem:[#allocation3 + $0x108] sm:$0xff] %vm276, %v2266
    %2303 = vst.msk [vmem:[#allocation3 + $0x120] sm:$0xff] %vm276, %v2268
    %2304 = vst.msk [vmem:[#allocation3 + $0x138] sm:$0xff] %vm276, %v2270
    %2305 = vst.msk [vmem:[#allocation3 + $0x150] sm:$0xff] %vm276, %v2272
    %2306 = vst.msk [vmem:[#allocation3 + $0x168] sm:$0xff] %vm276, %v2274
    %v2307 = vld [vmem:[#allocation2 + $0x11f] sm:$0xff]
    %v2308 = vld [vmem:[#allocation2 + $0x127] sm:$0xff]
    %v2309 = vld [vmem:[#allocation2 + $0x12f] sm:$0xff]
    %v2310 = vld [vmem:[#allocation2 + $0x137] sm:$0xff]
    %v2311 = vld [vmem:[#allocation2 + $0x13f] sm:$0xff]
    %v2312 = vld [vmem:[#allocation2 + $0x147] sm:$0xff]
    %v2313 = vld [vmem:[#allocation2 + $0x14f] sm:$0xff]
    %v2314 = vld [vmem:[#allocation2 + $0x157] sm:$0xff]
    %v2315 = vld [vmem:[#allocation2 + $0x15f] sm:$0xff]
    %v2316 = vld [vmem:[#allocation2 + $0x167] sm:$0xff]
    %v2317 = vld [vmem:[#allocation2 + $0x16f] sm:$0xff]
    %v2318 = vld [vmem:[#allocation2 + $0x177] sm:$0xff]
    %v2319 = vld [vmem:[#allocation2 + $0x17f] sm:$0xff]
    %v2320 = vld [vmem:[#allocation2 + $0x187] sm:$0xff]
    %v2321 = vld [vmem:[#allocation2 + $0x18f] sm:$0xff]
    %v2322 = vld [vmem:[#allocation2 + $0x197] sm:$0xff]
    %v2323 = vld [vmem:[#allocation2 + $0x19f] sm:$0xff]
    %v2324 = vld [vmem:[#allocation2 + $0x1a7] sm:$0xff]
    %v2325 = vld [vmem:[#allocation2 + $0x1af] sm:$0xff]
    %v2326 = vld [vmem:[#allocation2 + $0x1b7] sm:$0xff]
    %v2327 = vld [vmem:[#allocation2 + $0x1bf] sm:$0xff]
    %v2328 = vld [vmem:[#allocation2 + $0x1c7] sm:$0xff]
    %v2329 = vld [vmem:[#allocation2 + $0x1cf] sm:$0xff]
    %v2330 = vld [vmem:[#allocation2 + $0x1d7] sm:$0xff]
    %v2331 = vld [vmem:[#allocation2 + $0x1df] sm:$0xff]
    %v2332 = vld [vmem:[#allocation2 + $0x1e7] sm:$0xff]
    %v2333 = vld [vmem:[#allocation2 + $0x1ef] sm:$0xff]
    %v2334 = vld [vmem:[#allocation2 + $0x1f7] sm:$0xff]
    %v2335 = vld [vmem:[#allocation2 + $0x1ff] sm:$0xff]
    %v2336 = vld [vmem:[#allocation2 + $0x207] sm:$0xff]
    %v2337 = vld [vmem:[#allocation2 + $0x20f] sm:$0xff]
    %v2338 = vld [vmem:[#allocation2 + $0x217] sm:$0xff]
    %v2339 = vpack.c.bf16 %v2308, %v2307
    %v2340 = vpack.c.bf16 %v2310, %v2309
    %v2341 = vpack.c.bf16 %v2312, %v2311
    %v2342 = vpack.c.bf16 %v2314, %v2313
    %v2343 = vpack.c.bf16 %v2316, %v2315
    %v2344 = vpack.c.bf16 %v2318, %v2317
    %v2345 = vpack.c.bf16 %v2320, %v2319
    %v2346 = vpack.c.bf16 %v2322, %v2321
    %v2347 = vpack.c.bf16 %v2324, %v2323
    %v2348 = vpack.c.bf16 %v2326, %v2325
    %v2349 = vpack.c.bf16 %v2328, %v2327
    %v2350 = vpack.c.bf16 %v2330, %v2329
    %v2351 = vpack.c.bf16 %v2332, %v2331
    %v2352 = vpack.c.bf16 %v2334, %v2333
    %v2353 = vpack.c.bf16 %v2336, %v2335
    %v2354 = vpack.c.bf16 %v2338, %v2337
    %2371 = vrot.lane.b32.xlu0 %v2339, 96
    %v2372 = vpop.permute.xlu0 %2371
    %2373 = vrot.lane.b32.xlu0 %v2340, 96
    %v2374 = vpop.permute.xlu0 %2373
    %2375 = vrot.lane.b32.xlu0 %v2341, 96
    %v2376 = vpop.permute.xlu0 %2375
    %2377 = vrot.lane.b32.xlu0 %v2342, 96
    %v2378 = vpop.permute.xlu0 %2377
    %2379 = vrot.lane.b32.xlu0 %v2343, 96
    %v2380 = vpop.permute.xlu0 %2379
    %2381 = vrot.lane.b32.xlu0 %v2344, 96
    %v2382 = vpop.permute.xlu0 %2381
    %2383 = vrot.lane.b32.xlu0 %v2345, 96
    %v2384 = vpop.permute.xlu0 %2383
    %2385 = vrot.lane.b32.xlu0 %v2346, 96
    %v2386 = vpop.permute.xlu0 %2385
    %2387 = vrot.lane.b32.xlu0 %v2347, 96
    %v2388 = vpop.permute.xlu0 %2387
    %2389 = vrot.lane.b32.xlu0 %v2348, 96
    %v2390 = vpop.permute.xlu0 %2389
    %2391 = vrot.lane.b32.xlu0 %v2349, 96
    %v2392 = vpop.permute.xlu0 %2391
    %2393 = vrot.lane.b32.xlu0 %v2350, 96
    %v2394 = vpop.permute.xlu0 %2393
    %2395 = vrot.lane.b32.xlu0 %v2351, 96
    %v2396 = vpop.permute.xlu0 %2395
    %2397 = vrot.lane.b32.xlu0 %v2352, 96
    %v2398 = vpop.permute.xlu0 %2397
    %2399 = vrot.lane.b32.xlu0 %v2353, 96
    %v2400 = vpop.permute.xlu0 %2399
    %2401 = vrot.lane.b32.xlu0 %v2354, 96
    %v2402 = vpop.permute.xlu0 %2401
    %2419 = vst.msk [vmem:[#allocation3 + $0x180] sm:$0xff] %vm276, %v2372
    %2420 = vst.msk [vmem:[#allocation3 + $0x198] sm:$0xff] %vm276, %v2374
    %2421 = vst.msk [vmem:[#allocation3 + $0x1b0] sm:$0xff] %vm276, %v2376
    %2422 = vst.msk [vmem:[#allocation3 + $0x1c8] sm:$0xff] %vm276, %v2378
    %2423 = vst.msk [vmem:[#allocation3 + $0x1e0] sm:$0xff] %vm276, %v2380
    %2424 = vst.msk [vmem:[#allocation3 + $0x1f8] sm:$0xff] %vm276, %v2382
    %2425 = vst.msk [vmem:[#allocation3 + $0x210] sm:$0xff] %vm276, %v2384
    %2426 = vst.msk [vmem:[#allocation3 + $0x228] sm:$0xff] %vm276, %v2386
    %2427 = vst.msk [vmem:[#allocation3 + $0x240] sm:$0xff] %vm276, %v2388
    %2428 = vst.msk [vmem:[#allocation3 + $0x258] sm:$0xff] %vm276, %v2390
    %2429 = vst.msk [vmem:[#allocation3 + $0x270] sm:$0xff] %vm276, %v2392
    %2430 = vst.msk [vmem:[#allocation3 + $0x288] sm:$0xff] %vm276, %v2394
    %2431 = vst.msk [vmem:[#allocation3 + $0x2a0] sm:$0xff] %vm276, %v2396
    %2432 = vst.msk [vmem:[#allocation3 + $0x2b8] sm:$0xff] %vm276, %v2398
    %2433 = vst.msk [vmem:[#allocation3 + $0x2d0] sm:$0xff] %vm276, %v2400
    %2434 = vst.msk [vmem:[#allocation3 + $0x2e8] sm:$0xff] %vm276, %v2402
    %v2435 = vld [vmem:[#allocation2 + $0x8] sm:$0xff]
    %v2436 = vld [vmem:[#allocation2 + $0x10] sm:$0xff]
    %v2437 = vld [vmem:[#allocation2 + $0x18] sm:$0xff]
    %v2438 = vld [vmem:[#allocation2 + $0x20] sm:$0xff]
    %v2439 = vld [vmem:[#allocation2 + $0x28] sm:$0xff]
    %v2440 = vld [vmem:[#allocation2 + $0x30] sm:$0xff]
    %v2441 = vld [vmem:[#allocation2 + $0x38] sm:$0xff]
    %v2442 = vld [vmem:[#allocation2 + $0x40] sm:$0xff]
    %v2443 = vld [vmem:[#allocation2 + $0x48] sm:$0xff]
    %v2444 = vld [vmem:[#allocation2 + $0x50] sm:$0xff]
    %v2445 = vld [vmem:[#allocation2 + $0x58] sm:$0xff]
    %v2446 = vld [vmem:[#allocation2 + $0x60] sm:$0xff]
    %v2447 = vld [vmem:[#allocation2 + $0x68] sm:$0xff]
    %v2448 = vld [vmem:[#allocation2 + $0x70] sm:$0xff]
    %v2449 = vld [vmem:[#allocation2 + $0x78] sm:$0xff]
    %v2450 = vld [vmem:[#allocation2 + $0x80] sm:$0xff]
    %v2451 = vld [vmem:[#allocation2 + $0x88] sm:$0xff]
    %v2452 = vld [vmem:[#allocation2 + $0x90] sm:$0xff]
    %v2453 = vld [vmem:[#allocation2 + $0x98] sm:$0xff]
    %v2454 = vld [vmem:[#allocation2 + $0xa0] sm:$0xff]
    %v2455 = vld [vmem:[#allocation2 + $0xa8] sm:$0xff]
    %v2456 = vld [vmem:[#allocation2 + $0xb0] sm:$0xff]
    %v2457 = vld [vmem:[#allocation2 + $0xb8] sm:$0xff]
    %v2458 = vld [vmem:[#allocation2 + $0xc0] sm:$0xff]
    %v2459 = vld [vmem:[#allocation2 + $0xc8] sm:$0xff]
    %v2460 = vld [vmem:[#allocation2 + $0xd0] sm:$0xff]
    %v2461 = vld [vmem:[#allocation2 + $0xd8] sm:$0xff]
    %v2462 = vld [vmem:[#allocation2 + $0xe0] sm:$0xff]
    %v2463 = vld [vmem:[#allocation2 + $0xe8] sm:$0xff]
    %v2464 = vld [vmem:[#allocation2 + $0xf0] sm:$0xff]
    %v2465 = vld [vmem:[#allocation2 + $0xf8] sm:$0xff]
    %v2466 = vld [vmem:[#allocation2 + $0x100] sm:$0xff]
    %v2467 = vpack.c.bf16 %v2436, %v2435
    %v2468 = vpack.c.bf16 %v2438, %v2437
    %v2469 = vpack.c.bf16 %v2440, %v2439
    %v2470 = vpack.c.bf16 %v2442, %v2441
    %v2471 = vpack.c.bf16 %v2444, %v2443
    %v2472 = vpack.c.bf16 %v2446, %v2445
    %v2473 = vpack.c.bf16 %v2448, %v2447
    %v2474 = vpack.c.bf16 %v2450, %v2449
    %v2475 = vpack.c.bf16 %v2452, %v2451
    %v2476 = vpack.c.bf16 %v2454, %v2453
    %v2477 = vpack.c.bf16 %v2456, %v2455
    %v2478 = vpack.c.bf16 %v2458, %v2457
    %v2479 = vpack.c.bf16 %v2460, %v2459
    %v2480 = vpack.c.bf16 %v2462, %v2461
    %v2481 = vpack.c.bf16 %v2464, %v2463
    %v2482 = vpack.c.bf16 %v2466, %v2465
    %2499 = vrot.lane.b32.xlu0 %v2467, 32
    %v2500 = vpop.permute.xlu0 %2499
    %2501 = vrot.lane.b32.xlu0 %v2468, 32
    %v2502 = vpop.permute.xlu0 %2501
    %2503 = vrot.lane.b32.xlu0 %v2469, 32
    %v2504 = vpop.permute.xlu0 %2503
    %2505 = vrot.lane.b32.xlu0 %v2470, 32
    %v2506 = vpop.permute.xlu0 %2505
    %2507 = vrot.lane.b32.xlu0 %v2471, 32
    %v2508 = vpop.permute.xlu0 %2507
    %2509 = vrot.lane.b32.xlu0 %v2472, 32
    %v2510 = vpop.permute.xlu0 %2509
    %2511 = vrot.lane.b32.xlu0 %v2473, 32
    %v2512 = vpop.permute.xlu0 %2511
    %2513 = vrot.lane.b32.xlu0 %v2474, 32
    %v2514 = vpop.permute.xlu0 %2513
    %2515 = vrot.lane.b32.xlu0 %v2475, 32
    %v2516 = vpop.permute.xlu0 %2515
    %2517 = vrot.lane.b32.xlu0 %v2476, 32
    %v2518 = vpop.permute.xlu0 %2517
    %2519 = vrot.lane.b32.xlu0 %v2477, 32
    %v2520 = vpop.permute.xlu0 %2519
    %2521 = vrot.lane.b32.xlu0 %v2478, 32
    %v2522 = vpop.permute.xlu0 %2521
    %2523 = vrot.lane.b32.xlu0 %v2479, 32
    %v2524 = vpop.permute.xlu0 %2523
    %2525 = vrot.lane.b32.xlu0 %v2480, 32
    %v2526 = vpop.permute.xlu0 %2525
    %2527 = vrot.lane.b32.xlu0 %v2481, 32
    %v2528 = vpop.permute.xlu0 %2527
    %2529 = vrot.lane.b32.xlu0 %v2482, 32
    %v2530 = vpop.permute.xlu0 %2529
    %2547 = vst.msk [vmem:[#allocation3] sm:$0xff] %vm1537, %v2500
    %2548 = vst.msk [vmem:[#allocation3 + $0x18] sm:$0xff] %vm1537, %v2502
    %2549 = vst.msk [vmem:[#allocation3 + $0x30] sm:$0xff] %vm1537, %v2504
    %2550 = vst.msk [vmem:[#allocation3 + $0x48] sm:$0xff] %vm1537, %v2506
    %2551 = vst.msk [vmem:[#allocation3 + $0x60] sm:$0xff] %vm1537, %v2508
    %2552 = vst.msk [vmem:[#allocation3 + $0x78] sm:$0xff] %vm1537, %v2510
    %2553 = vst.msk [vmem:[#allocation3 + $0x90] sm:$0xff] %vm1537, %v2512
    %2554 = vst.msk [vmem:[#allocation3 + $0xa8] sm:$0xff] %vm1537, %v2514
    %2555 = vst.msk [vmem:[#allocation3 + $0xc0] sm:$0xff] %vm1537, %v2516
    %2556 = vst.msk [vmem:[#allocation3 + $0xd8] sm:$0xff] %vm1537, %v2518
    %2557 = vst.msk [vmem:[#allocation3 + $0xf0] sm:$0xff] %vm1537, %v2520
    %2558 = vst.msk [vmem:[#allocation3 + $0x108] sm:$0xff] %vm1537, %v2522
    %2559 = vst.msk [vmem:[#allocation3 + $0x120] sm:$0xff] %vm1537, %v2524
    %2560 = vst.msk [vmem:[#allocation3 + $0x138] sm:$0xff] %vm1537, %v2526
    %2561 = vst.msk [vmem:[#allocation3 + $0x150] sm:$0xff] %vm1537, %v2528
    %2562 = vst.msk [vmem:[#allocation3 + $0x168] sm:$0xff] %vm1537, %v2530
    %v2563 = vld [vmem:[#allocation2 + $0x120] sm:$0xff]
    %v2564 = vld [vmem:[#allocation2 + $0x128] sm:$0xff]
    %v2565 = vld [vmem:[#allocation2 + $0x130] sm:$0xff]
    %v2566 = vld [vmem:[#allocation2 + $0x138] sm:$0xff]
    %v2567 = vld [vmem:[#allocation2 + $0x140] sm:$0xff]
    %v2568 = vld [vmem:[#allocation2 + $0x148] sm:$0xff]
    %v2569 = vld [vmem:[#allocation2 + $0x150] sm:$0xff]
    %v2570 = vld [vmem:[#allocation2 + $0x158] sm:$0xff]
    %v2571 = vld [vmem:[#allocation2 + $0x160] sm:$0xff]
    %v2572 = vld [vmem:[#allocation2 + $0x168] sm:$0xff]
    %v2573 = vld [vmem:[#allocation2 + $0x170] sm:$0xff]
    %v2574 = vld [vmem:[#allocation2 + $0x178] sm:$0xff]
    %v2575 = vld [vmem:[#allocation2 + $0x180] sm:$0xff]
    %v2576 = vld [vmem:[#allocation2 + $0x188] sm:$0xff]
    %v2577 = vld [vmem:[#allocation2 + $0x190] sm:$0xff]
    %v2578 = vld [vmem:[#allocation2 + $0x198] sm:$0xff]
    %v2579 = vld [vmem:[#allocation2 + $0x1a0] sm:$0xff]
    %v2580 = vld [vmem:[#allocation2 + $0x1a8] sm:$0xff]
    %v2581 = vld [vmem:[#allocation2 + $0x1b0] sm:$0xff]
    %v2582 = vld [vmem:[#allocation2 + $0x1b8] sm:$0xff]
    %v2583 = vld [vmem:[#allocation2 + $0x1c0] sm:$0xff]
    %v2584 = vld [vmem:[#allocation2 + $0x1c8] sm:$0xff]
    %v2585 = vld [vmem:[#allocation2 + $0x1d0] sm:$0xff]
    %v2586 = vld [vmem:[#allocation2 + $0x1d8] sm:$0xff]
    %v2587 = vld [vmem:[#allocation2 + $0x1e0] sm:$0xff]
    %v2588 = vld [vmem:[#allocation2 + $0x1e8] sm:$0xff]
    %v2589 = vld [vmem:[#allocation2 + $0x1f0] sm:$0xff]
    %v2590 = vld [vmem:[#allocation2 + $0x1f8] sm:$0xff]
    %v2591 = vld [vmem:[#allocation2 + $0x200] sm:$0xff]
    %v2592 = vld [vmem:[#allocation2 + $0x208] sm:$0xff]
    %v2593 = vld [vmem:[#allocation2 + $0x210] sm:$0xff]
    %v2594 = vld [vmem:[#allocation2 + $0x218] sm:$0xff]
    %v2595 = vpack.c.bf16 %v2564, %v2563
    %v2596 = vpack.c.bf16 %v2566, %v2565
    %v2597 = vpack.c.bf16 %v2568, %v2567
    %v2598 = vpack.c.bf16 %v2570, %v2569
    %v2599 = vpack.c.bf16 %v2572, %v2571
    %v2600 = vpack.c.bf16 %v2574, %v2573
    %v2601 = vpack.c.bf16 %v2576, %v2575
    %v2602 = vpack.c.bf16 %v2578, %v2577
    %v2603 = vpack.c.bf16 %v2580, %v2579
    %v2604 = vpack.c.bf16 %v2582, %v2581
    %v2605 = vpack.c.bf16 %v2584, %v2583
    %v2606 = vpack.c.bf16 %v2586, %v2585
    %v2607 = vpack.c.bf16 %v2588, %v2587
    %v2608 = vpack.c.bf16 %v2590, %v2589
    %v2609 = vpack.c.bf16 %v2592, %v2591
    %v2610 = vpack.c.bf16 %v2594, %v2593
    %2627 = vrot.lane.b32.xlu0 %v2595, 32
    %v2628 = vpop.permute.xlu0 %2627
    %2629 = vrot.lane.b32.xlu0 %v2596, 32
    %v2630 = vpop.permute.xlu0 %2629
    %2631 = vrot.lane.b32.xlu0 %v2597, 32
    %v2632 = vpop.permute.xlu0 %2631
    %2633 = vrot.lane.b32.xlu0 %v2598, 32
    %v2634 = vpop.permute.xlu0 %2633
    %2635 = vrot.lane.b32.xlu0 %v2599, 32
    %v2636 = vpop.permute.xlu0 %2635
    %2637 = vrot.lane.b32.xlu0 %v2600, 32
    %v2638 = vpop.permute.xlu0 %2637
    %2639 = vrot.lane.b32.xlu0 %v2601, 32
    %v2640 = vpop.permute.xlu0 %2639
    %2641 = vrot.lane.b32.xlu0 %v2602, 32
    %v2642 = vpop.permute.xlu0 %2641
    %2643 = vrot.lane.b32.xlu0 %v2603, 32
    %v2644 = vpop.permute.xlu0 %2643
    %2645 = vrot.lane.b32.xlu0 %v2604, 32
    %v2646 = vpop.permute.xlu0 %2645
    %2647 = vrot.lane.b32.xlu0 %v2605, 32
    %v2648 = vpop.permute.xlu0 %2647
    %2649 = vrot.lane.b32.xlu0 %v2606, 32
    %v2650 = vpop.permute.xlu0 %2649
    %2651 = vrot.lane.b32.xlu0 %v2607, 32
    %v2652 = vpop.permute.xlu0 %2651
    %2653 = vrot.lane.b32.xlu0 %v2608, 32
    %v2654 = vpop.permute.xlu0 %2653
    %2655 = vrot.lane.b32.xlu0 %v2609, 32
    %v2656 = vpop.permute.xlu0 %2655
    %2657 = vrot.lane.b32.xlu0 %v2610, 32
    %v2658 = vpop.permute.xlu0 %2657
    %2675 = vst.msk [vmem:[#allocation3 + $0x180] sm:$0xff] %vm1537, %v2628
    %2676 = vst.msk [vmem:[#allocation3 + $0x198] sm:$0xff] %vm1537, %v2630
    %2677 = vst.msk [vmem:[#allocation3 + $0x1b0] sm:$0xff] %vm1537, %v2632
    %2678 = vst.msk [vmem:[#allocation3 + $0x1c8] sm:$0xff] %vm1537, %v2634
    %2679 = vst.msk [vmem:[#allocation3 + $0x1e0] sm:$0xff] %vm1537, %v2636
    %2680 = vst.msk [vmem:[#allocation3 + $0x1f8] sm:$0xff] %vm1537, %v2638
    %2681 = vst.msk [vmem:[#allocation3 + $0x210] sm:$0xff] %vm1537, %v2640
    %2682 = vst.msk [vmem:[#allocation3 + $0x228] sm:$0xff] %vm1537, %v2642
    %2683 = vst.msk [vmem:[#allocation3 + $0x240] sm:$0xff] %vm1537, %v2644
    %2684 = vst.msk [vmem:[#allocation3 + $0x258] sm:$0xff] %vm1537, %v2646
    %2685 = vst.msk [vmem:[#allocation3 + $0x270] sm:$0xff] %vm1537, %v2648
    %2686 = vst.msk [vmem:[#allocation3 + $0x288] sm:$0xff] %vm1537, %v2650
    %2687 = vst.msk [vmem:[#allocation3 + $0x2a0] sm:$0xff] %vm1537, %v2652
    %2688 = vst.msk [vmem:[#allocation3 + $0x2b8] sm:$0xff] %vm1537, %v2654
    %2689 = vst.msk [vmem:[#allocation3 + $0x2d0] sm:$0xff] %vm1537, %v2656
    %2690 = vst.msk [vmem:[#allocation3 + $0x2e8] sm:$0xff] %vm1537, %v2658
    %v2691 = vld [vmem:[#allocation2 + $0x9] sm:$0xff]
    %v2692 = vld [vmem:[#allocation2 + $0x11] sm:$0xff]
    %v2693 = vld [vmem:[#allocation2 + $0x19] sm:$0xff]
    %v2694 = vld [vmem:[#allocation2 + $0x21] sm:$0xff]
    %v2695 = vld [vmem:[#allocation2 + $0x29] sm:$0xff]
    %v2696 = vld [vmem:[#allocation2 + $0x31] sm:$0xff]
    %v2697 = vld [vmem:[#allocation2 + $0x39] sm:$0xff]
    %v2698 = vld [vmem:[#allocation2 + $0x41] sm:$0xff]
    %v2699 = vld [vmem:[#allocation2 + $0x49] sm:$0xff]
    %v2700 = vld [vmem:[#allocation2 + $0x51] sm:$0xff]
    %v2701 = vld [vmem:[#allocation2 + $0x59] sm:$0xff]
    %v2702 = vld [vmem:[#allocation2 + $0x61] sm:$0xff]
    %v2703 = vld [vmem:[#allocation2 + $0x69] sm:$0xff]
    %v2704 = vld [vmem:[#allocation2 + $0x71] sm:$0xff]
    %v2705 = vld [vmem:[#allocation2 + $0x79] sm:$0xff]
    %v2706 = vld [vmem:[#allocation2 + $0x81] sm:$0xff]
    %v2707 = vld [vmem:[#allocation2 + $0x89] sm:$0xff]
    %v2708 = vld [vmem:[#allocation2 + $0x91] sm:$0xff]
    %v2709 = vld [vmem:[#allocation2 + $0x99] sm:$0xff]
    %v2710 = vld [vmem:[#allocation2 + $0xa1] sm:$0xff]
    %v2711 = vld [vmem:[#allocation2 + $0xa9] sm:$0xff]
    %v2712 = vld [vmem:[#allocation2 + $0xb1] sm:$0xff]
    %v2713 = vld [vmem:[#allocation2 + $0xb9] sm:$0xff]
    %v2714 = vld [vmem:[#allocation2 + $0xc1] sm:$0xff]
    %v2715 = vld [vmem:[#allocation2 + $0xc9] sm:$0xff]
    %v2716 = vld [vmem:[#allocation2 + $0xd1] sm:$0xff]
    %v2717 = vld [vmem:[#allocation2 + $0xd9] sm:$0xff]
    %v2718 = vld [vmem:[#allocation2 + $0xe1] sm:$0xff]
    %v2719 = vld [vmem:[#allocation2 + $0xe9] sm:$0xff]
    %v2720 = vld [vmem:[#allocation2 + $0xf1] sm:$0xff]
    %v2721 = vld [vmem:[#allocation2 + $0xf9] sm:$0xff]
    %v2722 = vld [vmem:[#allocation2 + $0x101] sm:$0xff]
    %v2723 = vpack.c.bf16 %v2692, %v2691
    %v2724 = vpack.c.bf16 %v2694, %v2693
    %v2725 = vpack.c.bf16 %v2696, %v2695
    %v2726 = vpack.c.bf16 %v2698, %v2697
    %v2727 = vpack.c.bf16 %v2700, %v2699
    %v2728 = vpack.c.bf16 %v2702, %v2701
    %v2729 = vpack.c.bf16 %v2704, %v2703
    %v2730 = vpack.c.bf16 %v2706, %v2705
    %v2731 = vpack.c.bf16 %v2708, %v2707
    %v2732 = vpack.c.bf16 %v2710, %v2709
    %v2733 = vpack.c.bf16 %v2712, %v2711
    %v2734 = vpack.c.bf16 %v2714, %v2713
    %v2735 = vpack.c.bf16 %v2716, %v2715
    %v2736 = vpack.c.bf16 %v2718, %v2717
    %v2737 = vpack.c.bf16 %v2720, %v2719
    %v2738 = vpack.c.bf16 %v2722, %v2721
    %2739 = vst.msk [vmem:[#allocation3] sm:$0xff] %vm1730, %v2723
    %2740 = vst.msk [vmem:[#allocation3 + $0x18] sm:$0xff] %vm1730, %v2724
    %2741 = vst.msk [vmem:[#allocation3 + $0x30] sm:$0xff] %vm1730, %v2725
    %2742 = vst.msk [vmem:[#allocation3 + $0x48] sm:$0xff] %vm1730, %v2726
    %2743 = vst.msk [vmem:[#allocation3 + $0x60] sm:$0xff] %vm1730, %v2727
    %2744 = vst.msk [vmem:[#allocation3 + $0x78] sm:$0xff] %vm1730, %v2728
    %2745 = vst.msk [vmem:[#allocation3 + $0x90] sm:$0xff] %vm1730, %v2729
    %2746 = vst.msk [vmem:[#allocation3 + $0xa8] sm:$0xff] %vm1730, %v2730
    %2747 = vst.msk [vmem:[#allocation3 + $0xc0] sm:$0xff] %vm1730, %v2731
    %2748 = vst.msk [vmem:[#allocation3 + $0xd8] sm:$0xff] %vm1730, %v2732
    %2749 = vst.msk [vmem:[#allocation3 + $0xf0] sm:$0xff] %vm1730, %v2733
    %2750 = vst.msk [vmem:[#allocation3 + $0x108] sm:$0xff] %vm1730, %v2734
    %2751 = vst.msk [vmem:[#allocation3 + $0x120] sm:$0xff] %vm1730, %v2735
    %2752 = vst.msk [vmem:[#allocation3 + $0x138] sm:$0xff] %vm1730, %v2736
    %2753 = vst.msk [vmem:[#allocation3 + $0x150] sm:$0xff] %vm1730, %v2737
    %2754 = vst.msk [vmem:[#allocation3 + $0x168] sm:$0xff] %vm1730, %v2738
    %v2755 = vld [vmem:[#allocation2 + $0x121] sm:$0xff]
    %v2756 = vld [vmem:[#allocation2 + $0x129] sm:$0xff]
    %v2757 = vld [vmem:[#allocation2 + $0x131] sm:$0xff]
    %v2758 = vld [vmem:[#allocation2 + $0x139] sm:$0xff]
    %v2759 = vld [vmem:[#allocation2 + $0x141] sm:$0xff]
    %v2760 = vld [vmem:[#allocation2 + $0x149] sm:$0xff]
    %v2761 = vld [vmem:[#allocation2 + $0x151] sm:$0xff]
    %v2762 = vld [vmem:[#allocation2 + $0x159] sm:$0xff]
    %v2763 = vld [vmem:[#allocation2 + $0x161] sm:$0xff]
    %v2764 = vld [vmem:[#allocation2 + $0x169] sm:$0xff]
    %v2765 = vld [vmem:[#allocation2 + $0x171] sm:$0xff]
    %v2766 = vld [vmem:[#allocation2 + $0x179] sm:$0xff]
    %v2767 = vld [vmem:[#allocation2 + $0x181] sm:$0xff]
    %v2768 = vld [vmem:[#allocation2 + $0x189] sm:$0xff]
    %v2769 = vld [vmem:[#allocation2 + $0x191] sm:$0xff]
    %v2770 = vld [vmem:[#allocation2 + $0x199] sm:$0xff]
    %v2771 = vld [vmem:[#allocation2 + $0x1a1] sm:$0xff]
    %v2772 = vld [vmem:[#allocation2 + $0x1a9] sm:$0xff]
    %v2773 = vld [vmem:[#allocation2 + $0x1b1] sm:$0xff]
    %v2774 = vld [vmem:[#allocation2 + $0x1b9] sm:$0xff]
    %v2775 = vld [vmem:[#allocation2 + $0x1c1] sm:$0xff]
    %v2776 = vld [vmem:[#allocation2 + $0x1c9] sm:$0xff]
    %v2777 = vld [vmem:[#allocation2 + $0x1d1] sm:$0xff]
    %v2778 = vld [vmem:[#allocation2 + $0x1d9] sm:$0xff]
    %v2779 = vld [vmem:[#allocation2 + $0x1e1] sm:$0xff]
    %v2780 = vld [vmem:[#allocation2 + $0x1e9] sm:$0xff]
    %v2781 = vld [vmem:[#allocation2 + $0x1f1] sm:$0xff]
    %v2782 = vld [vmem:[#allocation2 + $0x1f9] sm:$0xff]
    %v2783 = vld [vmem:[#allocation2 + $0x201] sm:$0xff]
    %v2784 = vld [vmem:[#allocation2 + $0x209] sm:$0xff]
    %v2785 = vld [vmem:[#allocation2 + $0x211] sm:$0xff]
    %v2786 = vld [vmem:[#allocation2 + $0x219] sm:$0xff]
    %v2787 = vpack.c.bf16 %v2756, %v2755
    %v2788 = vpack.c.bf16 %v2758, %v2757
    %v2789 = vpack.c.bf16 %v2760, %v2759
    %v2790 = vpack.c.bf16 %v2762, %v2761
    %v2791 = vpack.c.bf16 %v2764, %v2763
    %v2792 = vpack.c.bf16 %v2766, %v2765
    %v2793 = vpack.c.bf16 %v2768, %v2767
    %v2794 = vpack.c.bf16 %v2770, %v2769
    %v2795 = vpack.c.bf16 %v2772, %v2771
    %v2796 = vpack.c.bf16 %v2774, %v2773
    %v2797 = vpack.c.bf16 %v2776, %v2775
    %v2798 = vpack.c.bf16 %v2778, %v2777
    %v2799 = vpack.c.bf16 %v2780, %v2779
    %v2800 = vpack.c.bf16 %v2782, %v2781
    %v2801 = vpack.c.bf16 %v2784, %v2783
    %v2802 = vpack.c.bf16 %v2786, %v2785
    %2803 = vst.msk [vmem:[#allocation3 + $0x180] sm:$0xff] %vm1730, %v2787
    %2804 = vst.msk [vmem:[#allocation3 + $0x198] sm:$0xff] %vm1730, %v2788
    %2805 = vst.msk [vmem:[#allocation3 + $0x1b0] sm:$0xff] %vm1730, %v2789
    %2806 = vst.msk [vmem:[#allocation3 + $0x1c8] sm:$0xff] %vm1730, %v2790
    %2807 = vst.msk [vmem:[#allocation3 + $0x1e0] sm:$0xff] %vm1730, %v2791
    %2808 = vst.msk [vmem:[#allocation3 + $0x1f8] sm:$0xff] %vm1730, %v2792
    %2809 = vst.msk [vmem:[#allocation3 + $0x210] sm:$0xff] %vm1730, %v2793
    %2810 = vst.msk [vmem:[#allocation3 + $0x228] sm:$0xff] %vm1730, %v2794
    %2811 = vst.msk [vmem:[#allocation3 + $0x240] sm:$0xff] %vm1730, %v2795
    %2812 = vst.msk [vmem:[#allocation3 + $0x258] sm:$0xff] %vm1730, %v2796
    %2813 = vst.msk [vmem:[#allocation3 + $0x270] sm:$0xff] %vm1730, %v2797
    %2814 = vst.msk [vmem:[#allocation3 + $0x288] sm:$0xff] %vm1730, %v2798
    %2815 = vst.msk [vmem:[#allocation3 + $0x2a0] sm:$0xff] %vm1730, %v2799
    %2816 = vst.msk [vmem:[#allocation3 + $0x2b8] sm:$0xff] %vm1730, %v2800
    %2817 = vst.msk [vmem:[#allocation3 + $0x2d0] sm:$0xff] %vm1730, %v2801
    %2818 = vst.msk [vmem:[#allocation3 + $0x2e8] sm:$0xff] %vm1730, %v2802
    %v2819 = vld [vmem:[#allocation2 + $0x17] sm:$0xff]
    %v2820 = vld [vmem:[#allocation2 + $0x1f] sm:$0xff]
    %v2821 = vld [vmem:[#allocation2 + $0x27] sm:$0xff]
    %v2822 = vld [vmem:[#allocation2 + $0x2f] sm:$0xff]
    %v2823 = vld [vmem:[#allocation2 + $0x37] sm:$0xff]
    %v2824 = vld [vmem:[#allocation2 + $0x3f] sm:$0xff]
    %v2825 = vld [vmem:[#allocation2 + $0x47] sm:$0xff]
    %v2826 = vld [vmem:[#allocation2 + $0x4f] sm:$0xff]
    %v2827 = vld [vmem:[#allocation2 + $0x57] sm:$0xff]
    %v2828 = vld [vmem:[#allocation2 + $0x5f] sm:$0xff]
    %v2829 = vld [vmem:[#allocation2 + $0x67] sm:$0xff]
    %v2830 = vld [vmem:[#allocation2 + $0x6f] sm:$0xff]
    %v2831 = vld [vmem:[#allocation2 + $0x77] sm:$0xff]
    %v2832 = vld [vmem:[#allocation2 + $0x7f] sm:$0xff]
    %v2833 = vld [vmem:[#allocation2 + $0x87] sm:$0xff]
    %v2834 = vld [vmem:[#allocation2 + $0x8f] sm:$0xff]
    %v2835 = vld [vmem:[#allocation2 + $0x97] sm:$0xff]
    %v2836 = vld [vmem:[#allocation2 + $0x9f] sm:$0xff]
    %v2837 = vld [vmem:[#allocation2 + $0xa7] sm:$0xff]
    %v2838 = vld [vmem:[#allocation2 + $0xaf] sm:$0xff]
    %v2839 = vld [vmem:[#allocation2 + $0xb7] sm:$0xff]
    %v2840 = vld [vmem:[#allocation2 + $0xbf] sm:$0xff]
    %v2841 = vld [vmem:[#allocation2 + $0xc7] sm:$0xff]
    %v2842 = vld [vmem:[#allocation2 + $0xcf] sm:$0xff]
    %v2843 = vld [vmem:[#allocation2 + $0xd7] sm:$0xff]
    %v2844 = vld [vmem:[#allocation2 + $0xdf] sm:$0xff]
    %v2845 = vld [vmem:[#allocation2 + $0xe7] sm:$0xff]
    %v2846 = vld [vmem:[#allocation2 + $0xef] sm:$0xff]
    %v2847 = vld [vmem:[#allocation2 + $0xf7] sm:$0xff]
    %v2848 = vld [vmem:[#allocation2 + $0xff] sm:$0xff]
    %v2849 = vld [vmem:[#allocation2 + $0x107] sm:$0xff]
    %v2850 = vld [vmem:[#allocation2 + $0x10f] sm:$0xff]
    %v2851 = vpack.c.bf16 %v2820, %v2819
    %v2852 = vpack.c.bf16 %v2822, %v2821
    %v2853 = vpack.c.bf16 %v2824, %v2823
    %v2854 = vpack.c.bf16 %v2826, %v2825
    %v2855 = vpack.c.bf16 %v2828, %v2827
    %v2856 = vpack.c.bf16 %v2830, %v2829
    %v2857 = vpack.c.bf16 %v2832, %v2831
    %v2858 = vpack.c.bf16 %v2834, %v2833
    %v2859 = vpack.c.bf16 %v2836, %v2835
    %v2860 = vpack.c.bf16 %v2838, %v2837
    %v2861 = vpack.c.bf16 %v2840, %v2839
    %v2862 = vpack.c.bf16 %v2842, %v2841
    %v2863 = vpack.c.bf16 %v2844, %v2843
    %v2864 = vpack.c.bf16 %v2846, %v2845
    %v2865 = vpack.c.bf16 %v2848, %v2847
    %v2866 = vpack.c.bf16 %v2850, %v2849
    %2883 = vrot.lane.b32.xlu0 %v2851, 64
    %v2884 = vpop.permute.xlu0 %2883
    %2885 = vrot.lane.b32.xlu0 %v2852, 64
    %v2886 = vpop.permute.xlu0 %2885
    %2887 = vrot.lane.b32.xlu0 %v2853, 64
    %v2888 = vpop.permute.xlu0 %2887
    %2889 = vrot.lane.b32.xlu0 %v2854, 64
    %v2890 = vpop.permute.xlu0 %2889
    %2891 = vrot.lane.b32.xlu0 %v2855, 64
    %v2892 = vpop.permute.xlu0 %2891
    %2893 = vrot.lane.b32.xlu0 %v2856, 64
    %v2894 = vpop.permute.xlu0 %2893
    %2895 = vrot.lane.b32.xlu0 %v2857, 64
    %v2896 = vpop.permute.xlu0 %2895
    %2897 = vrot.lane.b32.xlu0 %v2858, 64
    %v2898 = vpop.permute.xlu0 %2897
    %2899 = vrot.lane.b32.xlu0 %v2859, 64
    %v2900 = vpop.permute.xlu0 %2899
    %2901 = vrot.lane.b32.xlu0 %v2860, 64
    %v2902 = vpop.permute.xlu0 %2901
    %2903 = vrot.lane.b32.xlu0 %v2861, 64
    %v2904 = vpop.permute.xlu0 %2903
    %2905 = vrot.lane.b32.xlu0 %v2862, 64
    %v2906 = vpop.permute.xlu0 %2905
    %2907 = vrot.lane.b32.xlu0 %v2863, 64
    %v2908 = vpop.permute.xlu0 %2907
    %2909 = vrot.lane.b32.xlu0 %v2864, 64
    %v2910 = vpop.permute.xlu0 %2909
    %2911 = vrot.lane.b32.xlu0 %v2865, 64
    %v2912 = vpop.permute.xlu0 %2911
    %2913 = vrot.lane.b32.xlu0 %v2866, 64
    %v2914 = vpop.permute.xlu0 %2913
    %vm2931 = vcmask 1048320
    %2932 = vst.msk [vmem:[#allocation3] sm:$0xff] %vm2931, %v2884
    %2933 = vst.msk [vmem:[#allocation3 + $0x18] sm:$0xff] %vm2931, %v2886
    %2934 = vst.msk [vmem:[#allocation3 + $0x30] sm:$0xff] %vm2931, %v2888
    %2935 = vst.msk [vmem:[#allocation3 + $0x48] sm:$0xff] %vm2931, %v2890
    %2936 = vst.msk [vmem:[#allocation3 + $0x60] sm:$0xff] %vm2931, %v2892
    %2937 = vst.msk [vmem:[#allocation3 + $0x78] sm:$0xff] %vm2931, %v2894
    %2938 = vst.msk [vmem:[#allocation3 + $0x90] sm:$0xff] %vm2931, %v2896
    %2939 = vst.msk [vmem:[#allocation3 + $0xa8] sm:$0xff] %vm2931, %v2898
    %2940 = vst.msk [vmem:[#allocation3 + $0xc0] sm:$0xff] %vm2931, %v2900
    %2941 = vst.msk [vmem:[#allocation3 + $0xd8] sm:$0xff] %vm2931, %v2902
    %2942 = vst.msk [vmem:[#allocation3 + $0xf0] sm:$0xff] %vm2931, %v2904
    %2943 = vst.msk [vmem:[#allocation3 + $0x108] sm:$0xff] %vm2931, %v2906
    %2944 = vst.msk [vmem:[#allocation3 + $0x120] sm:$0xff] %vm2931, %v2908
    %2945 = vst.msk [vmem:[#allocation3 + $0x138] sm:$0xff] %vm2931, %v2910
    %2946 = vst.msk [vmem:[#allocation3 + $0x150] sm:$0xff] %vm2931, %v2912
    %2947 = vst.msk [vmem:[#allocation3 + $0x168] sm:$0xff] %vm2931, %v2914
    %v2948 = vld [vmem:[#allocation2 + $0x12f] sm:$0xff]
    %v2949 = vld [vmem:[#allocation2 + $0x137] sm:$0xff]
    %v2950 = vld [vmem:[#allocation2 + $0x13f] sm:$0xff]
    %v2951 = vld [vmem:[#allocation2 + $0x147] sm:$0xff]
    %v2952 = vld [vmem:[#allocation2 + $0x14f] sm:$0xff]
    %v2953 = vld [vmem:[#allocation2 + $0x157] sm:$0xff]
    %v2954 = vld [vmem:[#allocation2 + $0x15f] sm:$0xff]
    %v2955 = vld [vmem:[#allocation2 + $0x167] sm:$0xff]
    %v2956 = vld [vmem:[#allocation2 + $0x16f] sm:$0xff]
    %v2957 = vld [vmem:[#allocation2 + $0x177] sm:$0xff]
    %v2958 = vld [vmem:[#allocation2 + $0x17f] sm:$0xff]
    %v2959 = vld [vmem:[#allocation2 + $0x187] sm:$0xff]
    %v2960 = vld [vmem:[#allocation2 + $0x18f] sm:$0xff]
    %v2961 = vld [vmem:[#allocation2 + $0x197] sm:$0xff]
    %v2962 = vld [vmem:[#allocation2 + $0x19f] sm:$0xff]
    %v2963 = vld [vmem:[#allocation2 + $0x1a7] sm:$0xff]
    %v2964 = vld [vmem:[#allocation2 + $0x1af] sm:$0xff]
    %v2965 = vld [vmem:[#allocation2 + $0x1b7] sm:$0xff]
    %v2966 = vld [vmem:[#allocation2 + $0x1bf] sm:$0xff]
    %v2967 = vld [vmem:[#allocation2 + $0x1c7] sm:$0xff]
    %v2968 = vld [vmem:[#allocation2 + $0x1cf] sm:$0xff]
    %v2969 = vld [vmem:[#allocation2 + $0x1d7] sm:$0xff]
    %v2970 = vld [vmem:[#allocation2 + $0x1df] sm:$0xff]
    %v2971 = vld [vmem:[#allocation2 + $0x1e7] sm:$0xff]
    %v2972 = vld [vmem:[#allocation2 + $0x1ef] sm:$0xff]
    %v2973 = vld [vmem:[#allocation2 + $0x1f7] sm:$0xff]
    %v2974 = vld [vmem:[#allocation2 + $0x1ff] sm:$0xff]
    %v2975 = vld [vmem:[#allocation2 + $0x207] sm:$0xff]
    %v2976 = vld [vmem:[#allocation2 + $0x20f] sm:$0xff]
    %v2977 = vld [vmem:[#allocation2 + $0x217] sm:$0xff]
    %v2978 = vld [vmem:[#allocation2 + $0x21f] sm:$0xff]
    %v2979 = vld [vmem:[#allocation2 + $0x227] sm:$0xff]
    %v2980 = vpack.c.bf16 %v2949, %v2948
    %v2981 = vpack.c.bf16 %v2951, %v2950
    %v2982 = vpack.c.bf16 %v2953, %v2952
    %v2983 = vpack.c.bf16 %v2955, %v2954
    %v2984 = vpack.c.bf16 %v2957, %v2956
    %v2985 = vpack.c.bf16 %v2959, %v2958
    %v2986 = vpack.c.bf16 %v2961, %v2960
    %v2987 = vpack.c.bf16 %v2963, %v2962
    %v2988 = vpack.c.bf16 %v2965, %v2964
    %v2989 = vpack.c.bf16 %v2967, %v2966
    %v2990 = vpack.c.bf16 %v2969, %v2968
    %v2991 = vpack.c.bf16 %v2971, %v2970
    %v2992 = vpack.c.bf16 %v2973, %v2972
    %v2993 = vpack.c.bf16 %v2975, %v2974
    %v2994 = vpack.c.bf16 %v2977, %v2976
    %v2995 = vpack.c.bf16 %v2979, %v2978
    %3012 = vrot.lane.b32.xlu0 %v2980, 64
    %v3013 = vpop.permute.xlu0 %3012
    %3014 = vrot.lane.b32.xlu0 %v2981, 64
    %v3015 = vpop.permute.xlu0 %3014
    %3016 = vrot.lane.b32.xlu0 %v2982, 64
    %v3017 = vpop.permute.xlu0 %3016
    %3018 = vrot.lane.b32.xlu0 %v2983, 64
    %v3019 = vpop.permute.xlu0 %3018
    %3020 = vrot.lane.b32.xlu0 %v2984, 64
    %v3021 = vpop.permute.xlu0 %3020
    %3022 = vrot.lane.b32.xlu0 %v2985, 64
    %v3023 = vpop.permute.xlu0 %3022
    %3024 = vrot.lane.b32.xlu0 %v2986, 64
    %v3025 = vpop.permute.xlu0 %3024
    %3026 = vrot.lane.b32.xlu0 %v2987, 64
    %v3027 = vpop.permute.xlu0 %3026
    %3028 = vrot.lane.b32.xlu0 %v2988, 64
    %v3029 = vpop.permute.xlu0 %3028
    %3030 = vrot.lane.b32.xlu0 %v2989, 64
    %v3031 = vpop.permute.xlu0 %3030
    %3032 = vrot.lane.b32.xlu0 %v2990, 64
    %v3033 = vpop.permute.xlu0 %3032
    %3034 = vrot.lane.b32.xlu0 %v2991, 64
    %v3035 = vpop.permute.xlu0 %3034
    %3036 = vrot.lane.b32.xlu0 %v2992, 64
    %v3037 = vpop.permute.xlu0 %3036
    %3038 = vrot.lane.b32.xlu0 %v2993, 64
    %v3039 = vpop.permute.xlu0 %3038
    %3040 = vrot.lane.b32.xlu0 %v2994, 64
    %v3041 = vpop.permute.xlu0 %3040
    %3042 = vrot.lane.b32.xlu0 %v2995, 64
    %v3043 = vpop.permute.xlu0 %3042
    %3060 = vst.msk [vmem:[#allocation3 + $0x180] sm:$0xff] %vm2931, %v3013
    %3061 = vst.msk [vmem:[#allocation3 + $0x198] sm:$0xff] %vm2931, %v3015
    %3062 = vst.msk [vmem:[#allocation3 + $0x1b0] sm:$0xff] %vm2931, %v3017
    %3063 = vst.msk [vmem:[#allocation3 + $0x1c8] sm:$0xff] %vm2931, %v3019
    %3064 = vst.msk [vmem:[#allocation3 + $0x1e0] sm:$0xff] %vm2931, %v3021
    %3065 = vst.msk [vmem:[#allocation3 + $0x1f8] sm:$0xff] %vm2931, %v3023
    %3066 = vst.msk [vmem:[#allocation3 + $0x210] sm:$0xff] %vm2931, %v3025
    %3067 = vst.msk [vmem:[#allocation3 + $0x228] sm:$0xff] %vm2931, %v3027
    %3068 = vst.msk [vmem:[#allocation3 + $0x240] sm:$0xff] %vm2931, %v3029
    %3069 = vst.msk [vmem:[#allocation3 + $0x258] sm:$0xff] %vm2931, %v3031
    %3070 = vst.msk [vmem:[#allocation3 + $0x270] sm:$0xff] %vm2931, %v3033
    %3071 = vst.msk [vmem:[#allocation3 + $0x288] sm:$0xff] %vm2931, %v3035
    %3072 = vst.msk [vmem:[#allocation3 + $0x2a0] sm:$0xff] %vm2931, %v3037
    %3073 = vst.msk [vmem:[#allocation3 + $0x2b8] sm:$0xff] %vm2931, %v3039
    %3074 = vst.msk [vmem:[#allocation3 + $0x2d0] sm:$0xff] %vm2931, %v3041
    %3075 = vst.msk [vmem:[#allocation3 + $0x2e8] sm:$0xff] %vm2931, %v3043
    %v3076 = vld [vmem:[#allocation2 + $0x18] sm:$0xff]
    %v3077 = vld [vmem:[#allocation2 + $0x20] sm:$0xff]
    %v3078 = vld [vmem:[#allocation2 + $0x28] sm:$0xff]
    %v3079 = vld [vmem:[#allocation2 + $0x30] sm:$0xff]
    %v3080 = vld [vmem:[#allocation2 + $0x38] sm:$0xff]
    %v3081 = vld [vmem:[#allocation2 + $0x40] sm:$0xff]
    %v3082 = vld [vmem:[#allocation2 + $0x48] sm:$0xff]
    %v3083 = vld [vmem:[#allocation2 + $0x50] sm:$0xff]
    %v3084 = vld [vmem:[#allocation2 + $0x58] sm:$0xff]
    %v3085 = vld [vmem:[#allocation2 + $0x60] sm:$0xff]
    %v3086 = vld [vmem:[#allocation2 + $0x68] sm:$0xff]
    %v3087 = vld [vmem:[#allocation2 + $0x70] sm:$0xff]
    %v3088 = vld [vmem:[#allocation2 + $0x78] sm:$0xff]
    %v3089 = vld [vmem:[#allocation2 + $0x80] sm:$0xff]
    %v3090 = vld [vmem:[#allocation2 + $0x88] sm:$0xff]
    %v3091 = vld [vmem:[#allocation2 + $0x90] sm:$0xff]
    %v3092 = vld [vmem:[#allocation2 + $0x98] sm:$0xff]
    %v3093 = vld [vmem:[#allocation2 + $0xa0] sm:$0xff]
    %v3094 = vld [vmem:[#allocation2 + $0xa8] sm:$0xff]
    %v3095 = vld [vmem:[#allocation2 + $0xb0] sm:$0xff]
    %v3096 = vld [vmem:[#allocation2 + $0xb8] sm:$0xff]
    %v3097 = vld [vmem:[#allocation2 + $0xc0] sm:$0xff]
    %v3098 = vld [vmem:[#allocation2 + $0xc8] sm:$0xff]
    %v3099 = vld [vmem:[#allocation2 + $0xd0] sm:$0xff]
    %v3100 = vld [vmem:[#allocation2 + $0xd8] sm:$0xff]
    %v3101 = vld [vmem:[#allocation2 + $0xe0] sm:$0xff]
    %v3102 = vld [vmem:[#allocation2 + $0xe8] sm:$0xff]
    %v3103 = vld [vmem:[#allocation2 + $0xf0] sm:$0xff]
    %v3104 = vld [vmem:[#allocation2 + $0xf8] sm:$0xff]
    %v3105 = vld [vmem:[#allocation2 + $0x100] sm:$0xff]
    %v3106 = vld [vmem:[#allocation2 + $0x108] sm:$0xff]
    %v3107 = vld [vmem:[#allocation2 + $0x110] sm:$0xff]
    %v3108 = vpack.c.bf16 %v3077, %v3076
    %v3109 = vpack.c.bf16 %v3079, %v3078
    %v3110 = vpack.c.bf16 %v3081, %v3080
    %v3111 = vpack.c.bf16 %v3083, %v3082
    %v3112 = vpack.c.bf16 %v3085, %v3084
    %v3113 = vpack.c.bf16 %v3087, %v3086
    %v3114 = vpack.c.bf16 %v3089, %v3088
    %v3115 = vpack.c.bf16 %v3091, %v3090
    %v3116 = vpack.c.bf16 %v3093, %v3092
    %v3117 = vpack.c.bf16 %v3095, %v3094
    %v3118 = vpack.c.bf16 %v3097, %v3096
    %v3119 = vpack.c.bf16 %v3099, %v3098
    %v3120 = vpack.c.bf16 %v3101, %v3100
    %v3121 = vpack.c.bf16 %v3103, %v3102
    %v3122 = vpack.c.bf16 %v3105, %v3104
    %v3123 = vpack.c.bf16 %v3107, %v3106
    %3124 = vst.msk [vmem:[#allocation3 + $0x8] sm:$0xff] %vm276, %v3108
    %3125 = vst.msk [vmem:[#allocation3 + $0x20] sm:$0xff] %vm276, %v3109
    %3126 = vst.msk [vmem:[#allocation3 + $0x38] sm:$0xff] %vm276, %v3110
    %3127 = vst.msk [vmem:[#allocation3 + $0x50] sm:$0xff] %vm276, %v3111
    %3128 = vst.msk [vmem:[#allocation3 + $0x68] sm:$0xff] %vm276, %v3112
    %3129 = vst.msk [vmem:[#allocation3 + $0x80] sm:$0xff] %vm276, %v3113
    %3130 = vst.msk [vmem:[#allocation3 + $0x98] sm:$0xff] %vm276, %v3114
    %3131 = vst.msk [vmem:[#allocation3 + $0xb0] sm:$0xff] %vm276, %v3115
    %3132 = vst.msk [vmem:[#allocation3 + $0xc8] sm:$0xff] %vm276, %v3116
    %3133 = vst.msk [vmem:[#allocation3 + $0xe0] sm:$0xff] %vm276, %v3117
    %3134 = vst.msk [vmem:[#allocation3 + $0xf8] sm:$0xff] %vm276, %v3118
    %3135 = vst.msk [vmem:[#allocation3 + $0x110] sm:$0xff] %vm276, %v3119
    %3136 = vst.msk [vmem:[#allocation3 + $0x128] sm:$0xff] %vm276, %v3120
    %3137 = vst.msk [vmem:[#allocation3 + $0x140] sm:$0xff] %vm276, %v3121
    %3138 = vst.msk [vmem:[#allocation3 + $0x158] sm:$0xff] %vm276, %v3122
    %3139 = vst.msk [vmem:[#allocation3 + $0x170] sm:$0xff] %vm276, %v3123
    %v3140 = vld [vmem:[#allocation2 + $0x130] sm:$0xff]
    %v3141 = vld [vmem:[#allocation2 + $0x138] sm:$0xff]
    %v3142 = vld [vmem:[#allocation2 + $0x140] sm:$0xff]
    %v3143 = vld [vmem:[#allocation2 + $0x148] sm:$0xff]
    %v3144 = vld [vmem:[#allocation2 + $0x150] sm:$0xff]
    %v3145 = vld [vmem:[#allocation2 + $0x158] sm:$0xff]
    %v3146 = vld [vmem:[#allocation2 + $0x160] sm:$0xff]
    %v3147 = vld [vmem:[#allocation2 + $0x168] sm:$0xff]
    %v3148 = vld [vmem:[#allocation2 + $0x170] sm:$0xff]
    %v3149 = vld [vmem:[#allocation2 + $0x178] sm:$0xff]
    %v3150 = vld [vmem:[#allocation2 + $0x180] sm:$0xff]
    %v3151 = vld [vmem:[#allocation2 + $0x188] sm:$0xff]
    %v3152 = vld [vmem:[#allocation2 + $0x190] sm:$0xff]
    %v3153 = vld [vmem:[#allocation2 + $0x198] sm:$0xff]
    %v3154 = vld [vmem:[#allocation2 + $0x1a0] sm:$0xff]
    %v3155 = vld [vmem:[#allocation2 + $0x1a8] sm:$0xff]
    %v3156 = vld [vmem:[#allocation2 + $0x1b0] sm:$0xff]
    %v3157 = vld [vmem:[#allocation2 + $0x1b8] sm:$0xff]
    %v3158 = vld [vmem:[#allocation2 + $0x1c0] sm:$0xff]
    %v3159 = vld [vmem:[#allocation2 + $0x1c8] sm:$0xff]
    %v3160 = vld [vmem:[#allocation2 + $0x1d0] sm:$0xff]
    %v3161 = vld [vmem:[#allocation2 + $0x1d8] sm:$0xff]
    %v3162 = vld [vmem:[#allocation2 + $0x1e0] sm:$0xff]
    %v3163 = vld [vmem:[#allocation2 + $0x1e8] sm:$0xff]
    %v3164 = vld [vmem:[#allocation2 + $0x1f0] sm:$0xff]
    %v3165 = vld [vmem:[#allocation2 + $0x1f8] sm:$0xff]
    %v3166 = vld [vmem:[#allocation2 + $0x200] sm:$0xff]
    %v3167 = vld [vmem:[#allocation2 + $0x208] sm:$0xff]
    %v3168 = vld [vmem:[#allocation2 + $0x210] sm:$0xff]
    %v3169 = vld [vmem:[#allocation2 + $0x218] sm:$0xff]
    %v3170 = vld [vmem:[#allocation2 + $0x220] sm:$0xff]
    %v3171 = vld [vmem:[#allocation2 + $0x228] sm:$0xff]
    %v3172 = vpack.c.bf16 %v3141, %v3140
    %v3173 = vpack.c.bf16 %v3143, %v3142
    %v3174 = vpack.c.bf16 %v3145, %v3144
    %v3175 = vpack.c.bf16 %v3147, %v3146
    %v3176 = vpack.c.bf16 %v3149, %v3148
    %v3177 = vpack.c.bf16 %v3151, %v3150
    %v3178 = vpack.c.bf16 %v3153, %v3152
    %v3179 = vpack.c.bf16 %v3155, %v3154
    %v3180 = vpack.c.bf16 %v3157, %v3156
    %v3181 = vpack.c.bf16 %v3159, %v3158
    %v3182 = vpack.c.bf16 %v3161, %v3160
    %v3183 = vpack.c.bf16 %v3163, %v3162
    %v3184 = vpack.c.bf16 %v3165, %v3164
    %v3185 = vpack.c.bf16 %v3167, %v3166
    %v3186 = vpack.c.bf16 %v3169, %v3168
    %v3187 = vpack.c.bf16 %v3171, %v3170
    %3188 = vst.msk [vmem:[#allocation3 + $0x188] sm:$0xff] %vm276, %v3172
    %3189 = vst.msk [vmem:[#allocation3 + $0x1a0] sm:$0xff] %vm276, %v3173
    %3190 = vst.msk [vmem:[#allocation3 + $0x1b8] sm:$0xff] %vm276, %v3174
    %3191 = vst.msk [vmem:[#allocation3 + $0x1d0] sm:$0xff] %vm276, %v3175
    %3192 = vst.msk [vmem:[#allocation3 + $0x1e8] sm:$0xff] %vm276, %v3176
    %3193 = vst.msk [vmem:[#allocation3 + $0x200] sm:$0xff] %vm276, %v3177
    %3194 = vst.msk [vmem:[#allocation3 + $0x218] sm:$0xff] %vm276, %v3178
    %3195 = vst.msk [vmem:[#allocation3 + $0x230] sm:$0xff] %vm276, %v3179
    %3196 = vst.msk [vmem:[#allocation3 + $0x248] sm:$0xff] %vm276, %v3180
    %3197 = vst.msk [vmem:[#allocation3 + $0x260] sm:$0xff] %vm276, %v3181
    %3198 = vst.msk [vmem:[#allocation3 + $0x278] sm:$0xff] %vm276, %v3182
    %3199 = vst.msk [vmem:[#allocation3 + $0x290] sm:$0xff] %vm276, %v3183
    %3200 = vst.msk [vmem:[#allocation3 + $0x2a8] sm:$0xff] %vm276, %v3184
    %3201 = vst.msk [vmem:[#allocation3 + $0x2c0] sm:$0xff] %vm276, %v3185
    %3202 = vst.msk [vmem:[#allocation3 + $0x2d8] sm:$0xff] %vm276, %v3186
    %3203 = vst.msk [vmem:[#allocation3 + $0x2f0] sm:$0xff] %vm276, %v3187
    %v3204 = vld [vmem:[#allocation2 + $0x19] sm:$0xff]
    %v3205 = vld [vmem:[#allocation2 + $0x21] sm:$0xff]
    %v3206 = vld [vmem:[#allocation2 + $0x29] sm:$0xff]
    %v3207 = vld [vmem:[#allocation2 + $0x31] sm:$0xff]
    %v3208 = vld [vmem:[#allocation2 + $0x39] sm:$0xff]
    %v3209 = vld [vmem:[#allocation2 + $0x41] sm:$0xff]
    %v3210 = vld [vmem:[#allocation2 + $0x49] sm:$0xff]
    %v3211 = vld [vmem:[#allocation2 + $0x51] sm:$0xff]
    %v3212 = vld [vmem:[#allocation2 + $0x59] sm:$0xff]
    %v3213 = vld [vmem:[#allocation2 + $0x61] sm:$0xff]
    %v3214 = vld [vmem:[#allocation2 + $0x69] sm:$0xff]
    %v3215 = vld [vmem:[#allocation2 + $0x71] sm:$0xff]
    %v3216 = vld [vmem:[#allocation2 + $0x79] sm:$0xff]
    %v3217 = vld [vmem:[#allocation2 + $0x81] sm:$0xff]
    %v3218 = vld [vmem:[#allocation2 + $0x89] sm:$0xff]
    %v3219 = vld [vmem:[#allocation2 + $0x91] sm:$0xff]
    %v3220 = vld [vmem:[#allocation2 + $0x99] sm:$0xff]
    %v3221 = vld [vmem:[#allocation2 + $0xa1] sm:$0xff]
    %v3222 = vld [vmem:[#allocation2 + $0xa9] sm:$0xff]
    %v3223 = vld [vmem:[#allocation2 + $0xb1] sm:$0xff]
    %v3224 = vld [vmem:[#allocation2 + $0xb9] sm:$0xff]
    %v3225 = vld [vmem:[#allocation2 + $0xc1] sm:$0xff]
    %v3226 = vld [vmem:[#allocation2 + $0xc9] sm:$0xff]
    %v3227 = vld [vmem:[#allocation2 + $0xd1] sm:$0xff]
    %v3228 = vld [vmem:[#allocation2 + $0xd9] sm:$0xff]
    %v3229 = vld [vmem:[#allocation2 + $0xe1] sm:$0xff]
    %v3230 = vld [vmem:[#allocation2 + $0xe9] sm:$0xff]
    %v3231 = vld [vmem:[#allocation2 + $0xf1] sm:$0xff]
    %v3232 = vld [vmem:[#allocation2 + $0xf9] sm:$0xff]
    %v3233 = vld [vmem:[#allocation2 + $0x101] sm:$0xff]
    %v3234 = vld [vmem:[#allocation2 + $0x109] sm:$0xff]
    %v3235 = vld [vmem:[#allocation2 + $0x111] sm:$0xff]
    %v3236 = vpack.c.bf16 %v3205, %v3204
    %v3237 = vpack.c.bf16 %v3207, %v3206
    %v3238 = vpack.c.bf16 %v3209, %v3208
    %v3239 = vpack.c.bf16 %v3211, %v3210
    %v3240 = vpack.c.bf16 %v3213, %v3212
    %v3241 = vpack.c.bf16 %v3215, %v3214
    %v3242 = vpack.c.bf16 %v3217, %v3216
    %v3243 = vpack.c.bf16 %v3219, %v3218
    %v3244 = vpack.c.bf16 %v3221, %v3220
    %v3245 = vpack.c.bf16 %v3223, %v3222
    %v3246 = vpack.c.bf16 %v3225, %v3224
    %v3247 = vpack.c.bf16 %v3227, %v3226
    %v3248 = vpack.c.bf16 %v3229, %v3228
    %v3249 = vpack.c.bf16 %v3231, %v3230
    %v3250 = vpack.c.bf16 %v3233, %v3232
    %v3251 = vpack.c.bf16 %v3235, %v3234
    %3268 = vrot.lane.b32.xlu0 %v3236, 96
    %v3269 = vpop.permute.xlu0 %3268
    %3270 = vrot.lane.b32.xlu0 %v3237, 96
    %v3271 = vpop.permute.xlu0 %3270
    %3272 = vrot.lane.b32.xlu0 %v3238, 96
    %v3273 = vpop.permute.xlu0 %3272
    %3274 = vrot.lane.b32.xlu0 %v3239, 96
    %v3275 = vpop.permute.xlu0 %3274
    %3276 = vrot.lane.b32.xlu0 %v3240, 96
    %v3277 = vpop.permute.xlu0 %3276
    %3278 = vrot.lane.b32.xlu0 %v3241, 96
    %v3279 = vpop.permute.xlu0 %3278
    %3280 = vrot.lane.b32.xlu0 %v3242, 96
    %v3281 = vpop.permute.xlu0 %3280
    %3282 = vrot.lane.b32.xlu0 %v3243, 96
    %v3283 = vpop.permute.xlu0 %3282
    %3284 = vrot.lane.b32.xlu0 %v3244, 96
    %v3285 = vpop.permute.xlu0 %3284
    %3286 = vrot.lane.b32.xlu0 %v3245, 96
    %v3287 = vpop.permute.xlu0 %3286
    %3288 = vrot.lane.b32.xlu0 %v3246, 96
    %v3289 = vpop.permute.xlu0 %3288
    %3290 = vrot.lane.b32.xlu0 %v3247, 96
    %v3291 = vpop.permute.xlu0 %3290
    %3292 = vrot.lane.b32.xlu0 %v3248, 96
    %v3293 = vpop.permute.xlu0 %3292
    %3294 = vrot.lane.b32.xlu0 %v3249, 96
    %v3295 = vpop.permute.xlu0 %3294
    %3296 = vrot.lane.b32.xlu0 %v3250, 96
    %v3297 = vpop.permute.xlu0 %3296
    %3298 = vrot.lane.b32.xlu0 %v3251, 96
    %v3299 = vpop.permute.xlu0 %3298
    %3316 = vst.msk [vmem:[#allocation3 + $0x8] sm:$0xff] %vm1537, %v3269
    %3317 = vst.msk [vmem:[#allocation3 + $0x20] sm:$0xff] %vm1537, %v3271
    %3318 = vst.msk [vmem:[#allocation3 + $0x38] sm:$0xff] %vm1537, %v3273
    %3319 = vst.msk [vmem:[#allocation3 + $0x50] sm:$0xff] %vm1537, %v3275
    %3320 = vst.msk [vmem:[#allocation3 + $0x68] sm:$0xff] %vm1537, %v3277
    %3321 = vst.msk [vmem:[#allocation3 + $0x80] sm:$0xff] %vm1537, %v3279
    %3322 = vst.msk [vmem:[#allocation3 + $0x98] sm:$0xff] %vm1537, %v3281
    %3323 = vst.msk [vmem:[#allocation3 + $0xb0] sm:$0xff] %vm1537, %v3283
    %3324 = vst.msk [vmem:[#allocation3 + $0xc8] sm:$0xff] %vm1537, %v3285
    %3325 = vst.msk [vmem:[#allocation3 + $0xe0] sm:$0xff] %vm1537, %v3287
    %3326 = vst.msk [vmem:[#allocation3 + $0xf8] sm:$0xff] %vm1537, %v3289
    %3327 = vst.msk [vmem:[#allocation3 + $0x110] sm:$0xff] %vm1537, %v3291
    %3328 = vst.msk [vmem:[#allocation3 + $0x128] sm:$0xff] %vm1537, %v3293
    %3329 = vst.msk [vmem:[#allocation3 + $0x140] sm:$0xff] %vm1537, %v3295
    %3330 = vst.msk [vmem:[#allocation3 + $0x158] sm:$0xff] %vm1537, %v3297
    %3331 = vst.msk [vmem:[#allocation3 + $0x170] sm:$0xff] %vm1537, %v3299
    %v3332 = vld [vmem:[#allocation2 + $0x131] sm:$0xff]
    %v3333 = vld [vmem:[#allocation2 + $0x139] sm:$0xff]
    %v3334 = vld [vmem:[#allocation2 + $0x141] sm:$0xff]
    %v3335 = vld [vmem:[#allocation2 + $0x149] sm:$0xff]
    %v3336 = vld [vmem:[#allocation2 + $0x151] sm:$0xff]
    %v3337 = vld [vmem:[#allocation2 + $0x159] sm:$0xff]
    %v3338 = vld [vmem:[#allocation2 + $0x161] sm:$0xff]
    %v3339 = vld [vmem:[#allocation2 + $0x169] sm:$0xff]
    %v3340 = vld [vmem:[#allocation2 + $0x171] sm:$0xff]
    %v3341 = vld [vmem:[#allocation2 + $0x179] sm:$0xff]
    %v3342 = vld [vmem:[#allocation2 + $0x181] sm:$0xff]
    %v3343 = vld [vmem:[#allocation2 + $0x189] sm:$0xff]
    %v3344 = vld [vmem:[#allocation2 + $0x191] sm:$0xff]
    %v3345 = vld [vmem:[#allocation2 + $0x199] sm:$0xff]
    %v3346 = vld [vmem:[#allocation2 + $0x1a1] sm:$0xff]
    %v3347 = vld [vmem:[#allocation2 + $0x1a9] sm:$0xff]
    %v3348 = vld [vmem:[#allocation2 + $0x1b1] sm:$0xff]
    %v3349 = vld [vmem:[#allocation2 + $0x1b9] sm:$0xff]
    %v3350 = vld [vmem:[#allocation2 + $0x1c1] sm:$0xff]
    %v3351 = vld [vmem:[#allocation2 + $0x1c9] sm:$0xff]
    %v3352 = vld [vmem:[#allocation2 + $0x1d1] sm:$0xff]
    %v3353 = vld [vmem:[#allocation2 + $0x1d9] sm:$0xff]
    %v3354 = vld [vmem:[#allocation2 + $0x1e1] sm:$0xff]
    %v3355 = vld [vmem:[#allocation2 + $0x1e9] sm:$0xff]
    %v3356 = vld [vmem:[#allocation2 + $0x1f1] sm:$0xff]
    %v3357 = vld [vmem:[#allocation2 + $0x1f9] sm:$0xff]
    %v3358 = vld [vmem:[#allocation2 + $0x201] sm:$0xff]
    %v3359 = vld [vmem:[#allocation2 + $0x209] sm:$0xff]
    %v3360 = vld [vmem:[#allocation2 + $0x211] sm:$0xff]
    %v3361 = vld [vmem:[#allocation2 + $0x219] sm:$0xff]
    %v3362 = vld [vmem:[#allocation2 + $0x221] sm:$0xff]
    %v3363 = vld [vmem:[#allocation2 + $0x229] sm:$0xff]
    %v3364 = vpack.c.bf16 %v3333, %v3332
    %v3365 = vpack.c.bf16 %v3335, %v3334
    %v3366 = vpack.c.bf16 %v3337, %v3336
    %v3367 = vpack.c.bf16 %v3339, %v3338
    %v3368 = vpack.c.bf16 %v3341, %v3340
    %v3369 = vpack.c.bf16 %v3343, %v3342
    %v3370 = vpack.c.bf16 %v3345, %v3344
    %v3371 = vpack.c.bf16 %v3347, %v3346
    %v3372 = vpack.c.bf16 %v3349, %v3348
    %v3373 = vpack.c.bf16 %v3351, %v3350
    %v3374 = vpack.c.bf16 %v3353, %v3352
    %v3375 = vpack.c.bf16 %v3355, %v3354
    %v3376 = vpack.c.bf16 %v3357, %v3356
    %v3377 = vpack.c.bf16 %v3359, %v3358
    %v3378 = vpack.c.bf16 %v3361, %v3360
    %v3379 = vpack.c.bf16 %v3363, %v3362
    %3396 = vrot.lane.b32.xlu0 %v3364, 96
    %v3397 = vpop.permute.xlu0 %3396
    %3398 = vrot.lane.b32.xlu0 %v3365, 96
    %v3399 = vpop.permute.xlu0 %3398
    %3400 = vrot.lane.b32.xlu0 %v3366, 96
    %v3401 = vpop.permute.xlu0 %3400
    %3402 = vrot.lane.b32.xlu0 %v3367, 96
    %v3403 = vpop.permute.xlu0 %3402
    %3404 = vrot.lane.b32.xlu0 %v3368, 96
    %v3405 = vpop.permute.xlu0 %3404
    %3406 = vrot.lane.b32.xlu0 %v3369, 96
    %v3407 = vpop.permute.xlu0 %3406
    %3408 = vrot.lane.b32.xlu0 %v3370, 96
    %v3409 = vpop.permute.xlu0 %3408
    %3410 = vrot.lane.b32.xlu0 %v3371, 96
    %v3411 = vpop.permute.xlu0 %3410
    %3412 = vrot.lane.b32.xlu0 %v3372, 96
    %v3413 = vpop.permute.xlu0 %3412
    %3414 = vrot.lane.b32.xlu0 %v3373, 96
    %v3415 = vpop.permute.xlu0 %3414
    %3416 = vrot.lane.b32.xlu0 %v3374, 96
    %v3417 = vpop.permute.xlu0 %3416
    %3418 = vrot.lane.b32.xlu0 %v3375, 96
    %v3419 = vpop.permute.xlu0 %3418
    %3420 = vrot.lane.b32.xlu0 %v3376, 96
    %v3421 = vpop.permute.xlu0 %3420
    %3422 = vrot.lane.b32.xlu0 %v3377, 96
    %v3423 = vpop.permute.xlu0 %3422
    %3424 = vrot.lane.b32.xlu0 %v3378, 96
    %v3425 = vpop.permute.xlu0 %3424
    %3426 = vrot.lane.b32.xlu0 %v3379, 96
    %v3427 = vpop.permute.xlu0 %3426
    %3444 = vst.msk [vmem:[#allocation3 + $0x188] sm:$0xff] %vm1537, %v3397
    %3445 = vst.msk [vmem:[#allocation3 + $0x1a0] sm:$0xff] %vm1537, %v3399
    %3446 = vst.msk [vmem:[#allocation3 + $0x1b8] sm:$0xff] %vm1537, %v3401
    %3447 = vst.msk [vmem:[#allocation3 + $0x1d0] sm:$0xff] %vm1537, %v3403
    %3448 = vst.msk [vmem:[#allocation3 + $0x1e8] sm:$0xff] %vm1537, %v3405
    %3449 = vst.msk [vmem:[#allocation3 + $0x200] sm:$0xff] %vm1537, %v3407
    %3450 = vst.msk [vmem:[#allocation3 + $0x218] sm:$0xff] %vm1537, %v3409
    %3451 = vst.msk [vmem:[#allocation3 + $0x230] sm:$0xff] %vm1537, %v3411
    %3452 = vst.msk [vmem:[#allocation3 + $0x248] sm:$0xff] %vm1537, %v3413
    %3453 = vst.msk [vmem:[#allocation3 + $0x260] sm:$0xff] %vm1537, %v3415
    %3454 = vst.msk [vmem:[#allocation3 + $0x278] sm:$0xff] %vm1537, %v3417
    %3455 = vst.msk [vmem:[#allocation3 + $0x290] sm:$0xff] %vm1537, %v3419
    %3456 = vst.msk [vmem:[#allocation3 + $0x2a8] sm:$0xff] %vm1537, %v3421
    %3457 = vst.msk [vmem:[#allocation3 + $0x2c0] sm:$0xff] %vm1537, %v3423
    %3458 = vst.msk [vmem:[#allocation3 + $0x2d8] sm:$0xff] %vm1537, %v3425
    %3459 = vst.msk [vmem:[#allocation3 + $0x2f0] sm:$0xff] %vm1537, %v3427
    %v3460 = vld [vmem:[#allocation2 + $0x27] sm:$0xff]
    %v3461 = vld [vmem:[#allocation2 + $0x2f] sm:$0xff]
    %v3462 = vld [vmem:[#allocation2 + $0x37] sm:$0xff]
    %v3463 = vld [vmem:[#allocation2 + $0x3f] sm:$0xff]
    %v3464 = vld [vmem:[#allocation2 + $0x47] sm:$0xff]
    %v3465 = vld [vmem:[#allocation2 + $0x4f] sm:$0xff]
    %v3466 = vld [vmem:[#allocation2 + $0x57] sm:$0xff]
    %v3467 = vld [vmem:[#allocation2 + $0x5f] sm:$0xff]
    %v3468 = vld [vmem:[#allocation2 + $0x67] sm:$0xff]
    %v3469 = vld [vmem:[#allocation2 + $0x6f] sm:$0xff]
    %v3470 = vld [vmem:[#allocation2 + $0x77] sm:$0xff]
    %v3471 = vld [vmem:[#allocation2 + $0x7f] sm:$0xff]
    %v3472 = vld [vmem:[#allocation2 + $0x87] sm:$0xff]
    %v3473 = vld [vmem:[#allocation2 + $0x8f] sm:$0xff]
    %v3474 = vld [vmem:[#allocation2 + $0x97] sm:$0xff]
    %v3475 = vld [vmem:[#allocation2 + $0x9f] sm:$0xff]
    %v3476 = vld [vmem:[#allocation2 + $0xa7] sm:$0xff]
    %v3477 = vld [vmem:[#allocation2 + $0xaf] sm:$0xff]
    %v3478 = vld [vmem:[#allocation2 + $0xb7] sm:$0xff]
    %v3479 = vld [vmem:[#allocation2 + $0xbf] sm:$0xff]
    %v3480 = vld [vmem:[#allocation2 + $0xc7] sm:$0xff]
    %v3481 = vld [vmem:[#allocation2 + $0xcf] sm:$0xff]
    %v3482 = vld [vmem:[#allocation2 + $0xd7] sm:$0xff]
    %v3483 = vld [vmem:[#allocation2 + $0xdf] sm:$0xff]
    %v3484 = vld [vmem:[#allocation2 + $0xe7] sm:$0xff]
    %v3485 = vld [vmem:[#allocation2 + $0xef] sm:$0xff]
    %v3486 = vld [vmem:[#allocation2 + $0xf7] sm:$0xff]
    %v3487 = vld [vmem:[#allocation2 + $0xff] sm:$0xff]
    %v3488 = vld [vmem:[#allocation2 + $0x107] sm:$0xff]
    %v3489 = vld [vmem:[#allocation2 + $0x10f] sm:$0xff]
    %v3490 = vld [vmem:[#allocation2 + $0x117] sm:$0xff]
    %v3491 = vld [vmem:[#allocation2 + $0x11f] sm:$0xff]
    %v3492 = vpack.c.bf16 %v3461, %v3460
    %v3493 = vpack.c.bf16 %v3463, %v3462
    %v3494 = vpack.c.bf16 %v3465, %v3464
    %v3495 = vpack.c.bf16 %v3467, %v3466
    %v3496 = vpack.c.bf16 %v3469, %v3468
    %v3497 = vpack.c.bf16 %v3471, %v3470
    %v3498 = vpack.c.bf16 %v3473, %v3472
    %v3499 = vpack.c.bf16 %v3475, %v3474
    %v3500 = vpack.c.bf16 %v3477, %v3476
    %v3501 = vpack.c.bf16 %v3479, %v3478
    %v3502 = vpack.c.bf16 %v3481, %v3480
    %v3503 = vpack.c.bf16 %v3483, %v3482
    %v3504 = vpack.c.bf16 %v3485, %v3484
    %v3505 = vpack.c.bf16 %v3487, %v3486
    %v3506 = vpack.c.bf16 %v3489, %v3488
    %v3507 = vpack.c.bf16 %v3491, %v3490
    %3524 = vrot.lane.b32.xlu0 %v3492, 32
    %v3525 = vpop.permute.xlu0 %3524
    %3526 = vrot.lane.b32.xlu0 %v3493, 32
    %v3527 = vpop.permute.xlu0 %3526
    %3528 = vrot.lane.b32.xlu0 %v3494, 32
    %v3529 = vpop.permute.xlu0 %3528
    %3530 = vrot.lane.b32.xlu0 %v3495, 32
    %v3531 = vpop.permute.xlu0 %3530
    %3532 = vrot.lane.b32.xlu0 %v3496, 32
    %v3533 = vpop.permute.xlu0 %3532
    %3534 = vrot.lane.b32.xlu0 %v3497, 32
    %v3535 = vpop.permute.xlu0 %3534
    %3536 = vrot.lane.b32.xlu0 %v3498, 32
    %v3537 = vpop.permute.xlu0 %3536
    %3538 = vrot.lane.b32.xlu0 %v3499, 32
    %v3539 = vpop.permute.xlu0 %3538
    %3540 = vrot.lane.b32.xlu0 %v3500, 32
    %v3541 = vpop.permute.xlu0 %3540
    %3542 = vrot.lane.b32.xlu0 %v3501, 32
    %v3543 = vpop.permute.xlu0 %3542
    %3544 = vrot.lane.b32.xlu0 %v3502, 32
    %v3545 = vpop.permute.xlu0 %3544
    %3546 = vrot.lane.b32.xlu0 %v3503, 32
    %v3547 = vpop.permute.xlu0 %3546
    %3548 = vrot.lane.b32.xlu0 %v3504, 32
    %v3549 = vpop.permute.xlu0 %3548
    %3550 = vrot.lane.b32.xlu0 %v3505, 32
    %v3551 = vpop.permute.xlu0 %3550
    %3552 = vrot.lane.b32.xlu0 %v3506, 32
    %v3553 = vpop.permute.xlu0 %3552
    %3554 = vrot.lane.b32.xlu0 %v3507, 32
    %v3555 = vpop.permute.xlu0 %3554
    %3572 = vst.msk [vmem:[#allocation3 + $0x8] sm:$0xff] %vm1730, %v3525
    %3573 = vst.msk [vmem:[#allocation3 + $0x20] sm:$0xff] %vm1730, %v3527
    %3574 = vst.msk [vmem:[#allocation3 + $0x38] sm:$0xff] %vm1730, %v3529
    %3575 = vst.msk [vmem:[#allocation3 + $0x50] sm:$0xff] %vm1730, %v3531
    %3576 = vst.msk [vmem:[#allocation3 + $0x68] sm:$0xff] %vm1730, %v3533
    %3577 = vst.msk [vmem:[#allocation3 + $0x80] sm:$0xff] %vm1730, %v3535
    %3578 = vst.msk [vmem:[#allocation3 + $0x98] sm:$0xff] %vm1730, %v3537
    %3579 = vst.msk [vmem:[#allocation3 + $0xb0] sm:$0xff] %vm1730, %v3539
    %3580 = vst.msk [vmem:[#allocation3 + $0xc8] sm:$0xff] %vm1730, %v3541
    %3581 = vst.msk [vmem:[#allocation3 + $0xe0] sm:$0xff] %vm1730, %v3543
    %3582 = vst.msk [vmem:[#allocation3 + $0xf8] sm:$0xff] %vm1730, %v3545
    %3583 = vst.msk [vmem:[#allocation3 + $0x110] sm:$0xff] %vm1730, %v3547
    %3584 = vst.msk [vmem:[#allocation3 + $0x128] sm:$0xff] %vm1730, %v3549
    %3585 = vst.msk [vmem:[#allocation3 + $0x140] sm:$0xff] %vm1730, %v3551
    %3586 = vst.msk [vmem:[#allocation3 + $0x158] sm:$0xff] %vm1730, %v3553
    %3587 = vst.msk [vmem:[#allocation3 + $0x170] sm:$0xff] %vm1730, %v3555
    %v3588 = vld [vmem:[#allocation2 + $0x13f] sm:$0xff]
    %v3589 = vld [vmem:[#allocation2 + $0x147] sm:$0xff]
    %v3590 = vld [vmem:[#allocation2 + $0x14f] sm:$0xff]
    %v3591 = vld [vmem:[#allocation2 + $0x157] sm:$0xff]
    %v3592 = vld [vmem:[#allocation2 + $0x15f] sm:$0xff]
    %v3593 = vld [vmem:[#allocation2 + $0x167] sm:$0xff]
    %v3594 = vld [vmem:[#allocation2 + $0x16f] sm:$0xff]
    %v3595 = vld [vmem:[#allocation2 + $0x177] sm:$0xff]
    %v3596 = vld [vmem:[#allocation2 + $0x17f] sm:$0xff]
    %v3597 = vld [vmem:[#allocation2 + $0x187] sm:$0xff]
    %v3598 = vld [vmem:[#allocation2 + $0x18f] sm:$0xff]
    %v3599 = vld [vmem:[#allocation2 + $0x197] sm:$0xff]
    %v3600 = vld [vmem:[#allocation2 + $0x19f] sm:$0xff]
    %v3601 = vld [vmem:[#allocation2 + $0x1a7] sm:$0xff]
    %v3602 = vld [vmem:[#allocation2 + $0x1af] sm:$0xff]
    %v3603 = vld [vmem:[#allocation2 + $0x1b7] sm:$0xff]
    %v3604 = vld [vmem:[#allocation2 + $0x1bf] sm:$0xff]
    %v3605 = vld [vmem:[#allocation2 + $0x1c7] sm:$0xff]
    %v3606 = vld [vmem:[#allocation2 + $0x1cf] sm:$0xff]
    %v3607 = vld [vmem:[#allocation2 + $0x1d7] sm:$0xff]
    %v3608 = vld [vmem:[#allocation2 + $0x1df] sm:$0xff]
    %v3609 = vld [vmem:[#allocation2 + $0x1e7] sm:$0xff]
    %v3610 = vld [vmem:[#allocation2 + $0x1ef] sm:$0xff]
    %v3611 = vld [vmem:[#allocation2 + $0x1f7] sm:$0xff]
    %v3612 = vld [vmem:[#allocation2 + $0x1ff] sm:$0xff]
    %v3613 = vld [vmem:[#allocation2 + $0x207] sm:$0xff]
    %v3614 = vld [vmem:[#allocation2 + $0x20f] sm:$0xff]
    %v3615 = vld [vmem:[#allocation2 + $0x217] sm:$0xff]
    %v3616 = vld [vmem:[#allocation2 + $0x21f] sm:$0xff]
    %v3617 = vld [vmem:[#allocation2 + $0x227] sm:$0xff]
    %v3618 = vld [vmem:[#allocation2 + $0x22f] sm:$0xff]
    %v3619 = vld [vmem:[#allocation2 + $0x237] sm:$0xff]
    %v3620 = vpack.c.bf16 %v3589, %v3588
    %v3621 = vpack.c.bf16 %v3591, %v3590
    %v3622 = vpack.c.bf16 %v3593, %v3592
    %v3623 = vpack.c.bf16 %v3595, %v3594
    %v3624 = vpack.c.bf16 %v3597, %v3596
    %v3625 = vpack.c.bf16 %v3599, %v3598
    %v3626 = vpack.c.bf16 %v3601, %v3600
    %v3627 = vpack.c.bf16 %v3603, %v3602
    %v3628 = vpack.c.bf16 %v3605, %v3604
    %v3629 = vpack.c.bf16 %v3607, %v3606
    %v3630 = vpack.c.bf16 %v3609, %v3608
    %v3631 = vpack.c.bf16 %v3611, %v3610
    %v3632 = vpack.c.bf16 %v3613, %v3612
    %v3633 = vpack.c.bf16 %v3615, %v3614
    %v3634 = vpack.c.bf16 %v3617, %v3616
    %v3635 = vpack.c.bf16 %v3619, %v3618
    %3652 = vrot.lane.b32.xlu0 %v3620, 32
    %v3653 = vpop.permute.xlu0 %3652
    %3654 = vrot.lane.b32.xlu0 %v3621, 32
    %v3655 = vpop.permute.xlu0 %3654
    %3656 = vrot.lane.b32.xlu0 %v3622, 32
    %v3657 = vpop.permute.xlu0 %3656
    %3658 = vrot.lane.b32.xlu0 %v3623, 32
    %v3659 = vpop.permute.xlu0 %3658
    %3660 = vrot.lane.b32.xlu0 %v3624, 32
    %v3661 = vpop.permute.xlu0 %3660
    %3662 = vrot.lane.b32.xlu0 %v3625, 32
    %v3663 = vpop.permute.xlu0 %3662
    %3664 = vrot.lane.b32.xlu0 %v3626, 32
    %v3665 = vpop.permute.xlu0 %3664
    %3666 = vrot.lane.b32.xlu0 %v3627, 32
    %v3667 = vpop.permute.xlu0 %3666
    %3668 = vrot.lane.b32.xlu0 %v3628, 32
    %v3669 = vpop.permute.xlu0 %3668
    %3670 = vrot.lane.b32.xlu0 %v3629, 32
    %v3671 = vpop.permute.xlu0 %3670
    %3672 = vrot.lane.b32.xlu0 %v3630, 32
    %v3673 = vpop.permute.xlu0 %3672
    %3674 = vrot.lane.b32.xlu0 %v3631, 32
    %v3675 = vpop.permute.xlu0 %3674
    %3676 = vrot.lane.b32.xlu0 %v3632, 32
    %v3677 = vpop.permute.xlu0 %3676
    %3678 = vrot.lane.b32.xlu0 %v3633, 32
    %v3679 = vpop.permute.xlu0 %3678
    %3680 = vrot.lane.b32.xlu0 %v3634, 32
    %v3681 = vpop.permute.xlu0 %3680
    %3682 = vrot.lane.b32.xlu0 %v3635, 32
    %v3683 = vpop.permute.xlu0 %3682
    %3700 = vst.msk [vmem:[#allocation3 + $0x188] sm:$0xff] %vm1730, %v3653
    %3701 = vst.msk [vmem:[#allocation3 + $0x1a0] sm:$0xff] %vm1730, %v3655
    %3702 = vst.msk [vmem:[#allocation3 + $0x1b8] sm:$0xff] %vm1730, %v3657
    %3703 = vst.msk [vmem:[#allocation3 + $0x1d0] sm:$0xff] %vm1730, %v3659
    %3704 = vst.msk [vmem:[#allocation3 + $0x1e8] sm:$0xff] %vm1730, %v3661
    %3705 = vst.msk [vmem:[#allocation3 + $0x200] sm:$0xff] %vm1730, %v3663
    %3706 = vst.msk [vmem:[#allocation3 + $0x218] sm:$0xff] %vm1730, %v3665
    %3707 = vst.msk [vmem:[#allocation3 + $0x230] sm:$0xff] %vm1730, %v3667
    %3708 = vst.msk [vmem:[#allocation3 + $0x248] sm:$0xff] %vm1730, %v3669
    %3709 = vst.msk [vmem:[#allocation3 + $0x260] sm:$0xff] %vm1730, %v3671
    %3710 = vst.msk [vmem:[#allocation3 + $0x278] sm:$0xff] %vm1730, %v3673
    %3711 = vst.msk [vmem:[#allocation3 + $0x290] sm:$0xff] %vm1730, %v3675
    %3712 = vst.msk [vmem:[#allocation3 + $0x2a8] sm:$0xff] %vm1730, %v3677
    %3713 = vst.msk [vmem:[#allocation3 + $0x2c0] sm:$0xff] %vm1730, %v3679
    %3714 = vst.msk [vmem:[#allocation3 + $0x2d8] sm:$0xff] %vm1730, %v3681
    %3715 = vst.msk [vmem:[#allocation3 + $0x2f0] sm:$0xff] %vm1730, %v3683
    %v3716 = vld [vmem:[#allocation2 + $0x28] sm:$0xff]
    %v3717 = vld [vmem:[#allocation2 + $0x30] sm:$0xff]
    %v3718 = vld [vmem:[#allocation2 + $0x38] sm:$0xff]
    %v3719 = vld [vmem:[#allocation2 + $0x40] sm:$0xff]
    %v3720 = vld [vmem:[#allocation2 + $0x48] sm:$0xff]
    %v3721 = vld [vmem:[#allocation2 + $0x50] sm:$0xff]
    %v3722 = vld [vmem:[#allocation2 + $0x58] sm:$0xff]
    %v3723 = vld [vmem:[#allocation2 + $0x60] sm:$0xff]
    %v3724 = vld [vmem:[#allocation2 + $0x68] sm:$0xff]
    %v3725 = vld [vmem:[#allocation2 + $0x70] sm:$0xff]
    %v3726 = vld [vmem:[#allocation2 + $0x78] sm:$0xff]
    %v3727 = vld [vmem:[#allocation2 + $0x80] sm:$0xff]
    %v3728 = vld [vmem:[#allocation2 + $0x88] sm:$0xff]
    %v3729 = vld [vmem:[#allocation2 + $0x90] sm:$0xff]
    %v3730 = vld [vmem:[#allocation2 + $0x98] sm:$0xff]
    %v3731 = vld [vmem:[#allocation2 + $0xa0] sm:$0xff]
    %v3732 = vld [vmem:[#allocation2 + $0xa8] sm:$0xff]
    %v3733 = vld [vmem:[#allocation2 + $0xb0] sm:$0xff]
    %v3734 = vld [vmem:[#allocation2 + $0xb8] sm:$0xff]
    %v3735 = vld [vmem:[#allocation2 + $0xc0] sm:$0xff]
    %v3736 = vld [vmem:[#allocation2 + $0xc8] sm:$0xff]
    %v3737 = vld [vmem:[#allocation2 + $0xd0] sm:$0xff]
    %v3738 = vld [vmem:[#allocation2 + $0xd8] sm:$0xff]
    %v3739 = vld [vmem:[#allocation2 + $0xe0] sm:$0xff]
    %v3740 = vld [vmem:[#allocation2 + $0xe8] sm:$0xff]
    %v3741 = vld [vmem:[#allocation2 + $0xf0] sm:$0xff]
    %v3742 = vld [vmem:[#allocation2 + $0xf8] sm:$0xff]
    %v3743 = vld [vmem:[#allocation2 + $0x100] sm:$0xff]
    %v3744 = vld [vmem:[#allocation2 + $0x108] sm:$0xff]
    %v3745 = vld [vmem:[#allocation2 + $0x110] sm:$0xff]
    %v3746 = vld [vmem:[#allocation2 + $0x118] sm:$0xff]
    %v3747 = vld [vmem:[#allocation2 + $0x120] sm:$0xff]
    %v3748 = vpack.c.bf16 %v3717, %v3716
    %v3749 = vpack.c.bf16 %v3719, %v3718
    %v3750 = vpack.c.bf16 %v3721, %v3720
    %v3751 = vpack.c.bf16 %v3723, %v3722
    %v3752 = vpack.c.bf16 %v3725, %v3724
    %v3753 = vpack.c.bf16 %v3727, %v3726
    %v3754 = vpack.c.bf16 %v3729, %v3728
    %v3755 = vpack.c.bf16 %v3731, %v3730
    %v3756 = vpack.c.bf16 %v3733, %v3732
    %v3757 = vpack.c.bf16 %v3735, %v3734
    %v3758 = vpack.c.bf16 %v3737, %v3736
    %v3759 = vpack.c.bf16 %v3739, %v3738
    %v3760 = vpack.c.bf16 %v3741, %v3740
    %v3761 = vpack.c.bf16 %v3743, %v3742
    %v3762 = vpack.c.bf16 %v3745, %v3744
    %v3763 = vpack.c.bf16 %v3747, %v3746
    %3780 = vrot.lane.b32.xlu0 %v3748, 96
    %v3781 = vpop.permute.xlu0 %3780
    %3782 = vrot.lane.b32.xlu0 %v3749, 96
    %v3783 = vpop.permute.xlu0 %3782
    %3784 = vrot.lane.b32.xlu0 %v3750, 96
    %v3785 = vpop.permute.xlu0 %3784
    %3786 = vrot.lane.b32.xlu0 %v3751, 96
    %v3787 = vpop.permute.xlu0 %3786
    %3788 = vrot.lane.b32.xlu0 %v3752, 96
    %v3789 = vpop.permute.xlu0 %3788
    %3790 = vrot.lane.b32.xlu0 %v3753, 96
    %v3791 = vpop.permute.xlu0 %3790
    %3792 = vrot.lane.b32.xlu0 %v3754, 96
    %v3793 = vpop.permute.xlu0 %3792
    %3794 = vrot.lane.b32.xlu0 %v3755, 96
    %v3795 = vpop.permute.xlu0 %3794
    %3796 = vrot.lane.b32.xlu0 %v3756, 96
    %v3797 = vpop.permute.xlu0 %3796
    %3798 = vrot.lane.b32.xlu0 %v3757, 96
    %v3799 = vpop.permute.xlu0 %3798
    %3800 = vrot.lane.b32.xlu0 %v3758, 96
    %v3801 = vpop.permute.xlu0 %3800
    %3802 = vrot.lane.b32.xlu0 %v3759, 96
    %v3803 = vpop.permute.xlu0 %3802
    %3804 = vrot.lane.b32.xlu0 %v3760, 96
    %v3805 = vpop.permute.xlu0 %3804
    %3806 = vrot.lane.b32.xlu0 %v3761, 96
    %v3807 = vpop.permute.xlu0 %3806
    %3808 = vrot.lane.b32.xlu0 %v3762, 96
    %v3809 = vpop.permute.xlu0 %3808
    %3810 = vrot.lane.b32.xlu0 %v3763, 96
    %v3811 = vpop.permute.xlu0 %3810
    %3828 = vst.msk [vmem:[#allocation3 + $0x8] sm:$0xff] %vm2931, %v3781
    %3829 = vst.msk [vmem:[#allocation3 + $0x20] sm:$0xff] %vm2931, %v3783
    %3830 = vst.msk [vmem:[#allocation3 + $0x38] sm:$0xff] %vm2931, %v3785
    %3831 = vst.msk [vmem:[#allocation3 + $0x50] sm:$0xff] %vm2931, %v3787
    %3832 = vst.msk [vmem:[#allocation3 + $0x68] sm:$0xff] %vm2931, %v3789
    %3833 = vst.msk [vmem:[#allocation3 + $0x80] sm:$0xff] %vm2931, %v3791
    %3834 = vst.msk [vmem:[#allocation3 + $0x98] sm:$0xff] %vm2931, %v3793
    %3835 = vst.msk [vmem:[#allocation3 + $0xb0] sm:$0xff] %vm2931, %v3795
    %3836 = vst.msk [vmem:[#allocation3 + $0xc8] sm:$0xff] %vm2931, %v3797
    %3837 = vst.msk [vmem:[#allocation3 + $0xe0] sm:$0xff] %vm2931, %v3799
    %3838 = vst.msk [vmem:[#allocation3 + $0xf8] sm:$0xff] %vm2931, %v3801
    %3839 = vst.msk [vmem:[#allocation3 + $0x110] sm:$0xff] %vm2931, %v3803
    %3840 = vst.msk [vmem:[#allocation3 + $0x128] sm:$0xff] %vm2931, %v3805
    %3841 = vst.msk [vmem:[#allocation3 + $0x140] sm:$0xff] %vm2931, %v3807
    %3842 = vst.msk [vmem:[#allocation3 + $0x158] sm:$0xff] %vm2931, %v3809
    %3843 = vst.msk [vmem:[#allocation3 + $0x170] sm:$0xff] %vm2931, %v3811
    %v3844 = vld [vmem:[#allocation2 + $0x140] sm:$0xff]
    %v3845 = vld [vmem:[#allocation2 + $0x148] sm:$0xff]
    %v3846 = vld [vmem:[#allocation2 + $0x150] sm:$0xff]
    %v3847 = vld [vmem:[#allocation2 + $0x158] sm:$0xff]
    %v3848 = vld [vmem:[#allocation2 + $0x160] sm:$0xff]
    %v3849 = vld [vmem:[#allocation2 + $0x168] sm:$0xff]
    %v3850 = vld [vmem:[#allocation2 + $0x170] sm:$0xff]
    %v3851 = vld [vmem:[#allocation2 + $0x178] sm:$0xff]
    %v3852 = vld [vmem:[#allocation2 + $0x180] sm:$0xff]
    %v3853 = vld [vmem:[#allocation2 + $0x188] sm:$0xff]
    %v3854 = vld [vmem:[#allocation2 + $0x190] sm:$0xff]
    %v3855 = vld [vmem:[#allocation2 + $0x198] sm:$0xff]
    %v3856 = vld [vmem:[#allocation2 + $0x1a0] sm:$0xff]
    %v3857 = vld [vmem:[#allocation2 + $0x1a8] sm:$0xff]
    %v3858 = vld [vmem:[#allocation2 + $0x1b0] sm:$0xff]
    %v3859 = vld [vmem:[#allocation2 + $0x1b8] sm:$0xff]
    %v3860 = vld [vmem:[#allocation2 + $0x1c0] sm:$0xff]
    %v3861 = vld [vmem:[#allocation2 + $0x1c8] sm:$0xff]
    %v3862 = vld [vmem:[#allocation2 + $0x1d0] sm:$0xff]
    %v3863 = vld [vmem:[#allocation2 + $0x1d8] sm:$0xff]
    %v3864 = vld [vmem:[#allocation2 + $0x1e0] sm:$0xff]
    %v3865 = vld [vmem:[#allocation2 + $0x1e8] sm:$0xff]
    %v3866 = vld [vmem:[#allocation2 + $0x1f0] sm:$0xff]
    %v3867 = vld [vmem:[#allocation2 + $0x1f8] sm:$0xff]
    %v3868 = vld [vmem:[#allocation2 + $0x200] sm:$0xff]
    %v3869 = vld [vmem:[#allocation2 + $0x208] sm:$0xff]
    %v3870 = vld [vmem:[#allocation2 + $0x210] sm:$0xff]
    %v3871 = vld [vmem:[#allocation2 + $0x218] sm:$0xff]
    %v3872 = vld [vmem:[#allocation2 + $0x220] sm:$0xff]
    %v3873 = vld [vmem:[#allocation2 + $0x228] sm:$0xff]
    %v3874 = vld [vmem:[#allocation2 + $0x230] sm:$0xff]
    %v3875 = vld [vmem:[#allocation2 + $0x238] sm:$0xff]
    %v3876 = vpack.c.bf16 %v3845, %v3844
    %v3877 = vpack.c.bf16 %v3847, %v3846
    %v3878 = vpack.c.bf16 %v3849, %v3848
    %v3879 = vpack.c.bf16 %v3851, %v3850
    %v3880 = vpack.c.bf16 %v3853, %v3852
    %v3881 = vpack.c.bf16 %v3855, %v3854
    %v3882 = vpack.c.bf16 %v3857, %v3856
    %v3883 = vpack.c.bf16 %v3859, %v3858
    %v3884 = vpack.c.bf16 %v3861, %v3860
    %v3885 = vpack.c.bf16 %v3863, %v3862
    %v3886 = vpack.c.bf16 %v3865, %v3864
    %v3887 = vpack.c.bf16 %v3867, %v3866
    %v3888 = vpack.c.bf16 %v3869, %v3868
    %v3889 = vpack.c.bf16 %v3871, %v3870
    %v3890 = vpack.c.bf16 %v3873, %v3872
    %v3891 = vpack.c.bf16 %v3875, %v3874
    %3908 = vrot.lane.b32.xlu0 %v3876, 96
    %v3909 = vpop.permute.xlu0 %3908
    %3910 = vrot.lane.b32.xlu0 %v3877, 96
    %v3911 = vpop.permute.xlu0 %3910
    %3912 = vrot.lane.b32.xlu0 %v3878, 96
    %v3913 = vpop.permute.xlu0 %3912
    %3914 = vrot.lane.b32.xlu0 %v3879, 96
    %v3915 = vpop.permute.xlu0 %3914
    %3916 = vrot.lane.b32.xlu0 %v3880, 96
    %v3917 = vpop.permute.xlu0 %3916
    %3918 = vrot.lane.b32.xlu0 %v3881, 96
    %v3919 = vpop.permute.xlu0 %3918
    %3920 = vrot.lane.b32.xlu0 %v3882, 96
    %v3921 = vpop.permute.xlu0 %3920
    %3922 = vrot.lane.b32.xlu0 %v3883, 96
    %v3923 = vpop.permute.xlu0 %3922
    %3924 = vrot.lane.b32.xlu0 %v3884, 96
    %v3925 = vpop.permute.xlu0 %3924
    %3926 = vrot.lane.b32.xlu0 %v3885, 96
    %v3927 = vpop.permute.xlu0 %3926
    %3928 = vrot.lane.b32.xlu0 %v3886, 96
    %v3929 = vpop.permute.xlu0 %3928
    %3930 = vrot.lane.b32.xlu0 %v3887, 96
    %v3931 = vpop.permute.xlu0 %3930
    %3932 = vrot.lane.b32.xlu0 %v3888, 96
    %v3933 = vpop.permute.xlu0 %3932
    %3934 = vrot.lane.b32.xlu0 %v3889, 96
    %v3935 = vpop.permute.xlu0 %3934
    %3936 = vrot.lane.b32.xlu0 %v3890, 96
    %v3937 = vpop.permute.xlu0 %3936
    %3938 = vrot.lane.b32.xlu0 %v3891, 96
    %v3939 = vpop.permute.xlu0 %3938
    %3956 = vst.msk [vmem:[#allocation3 + $0x188] sm:$0xff] %vm2931, %v3909
    %3957 = vst.msk [vmem:[#allocation3 + $0x1a0] sm:$0xff] %vm2931, %v3911
    %3958 = vst.msk [vmem:[#allocation3 + $0x1b8] sm:$0xff] %vm2931, %v3913
    %3959 = vst.msk [vmem:[#allocation3 + $0x1d0] sm:$0xff] %vm2931, %v3915
    %3960 = vst.msk [vmem:[#allocation3 + $0x1e8] sm:$0xff] %vm2931, %v3917
    %3961 = vst.msk [vmem:[#allocation3 + $0x200] sm:$0xff] %vm2931, %v3919
    %3962 = vst.msk [vmem:[#allocation3 + $0x218] sm:$0xff] %vm2931, %v3921
    %3963 = vst.msk [vmem:[#allocation3 + $0x230] sm:$0xff] %vm2931, %v3923
    %3964 = vst.msk [vmem:[#allocation3 + $0x248] sm:$0xff] %vm2931, %v3925
    %3965 = vst.msk [vmem:[#allocation3 + $0x260] sm:$0xff] %vm2931, %v3927
    %3966 = vst.msk [vmem:[#allocation3 + $0x278] sm:$0xff] %vm2931, %v3929
    %3967 = vst.msk [vmem:[#allocation3 + $0x290] sm:$0xff] %vm2931, %v3931
    %3968 = vst.msk [vmem:[#allocation3 + $0x2a8] sm:$0xff] %vm2931, %v3933
    %3969 = vst.msk [vmem:[#allocation3 + $0x2c0] sm:$0xff] %vm2931, %v3935
    %3970 = vst.msk [vmem:[#allocation3 + $0x2d8] sm:$0xff] %vm2931, %v3937
    %3971 = vst.msk [vmem:[#allocation3 + $0x2f0] sm:$0xff] %vm2931, %v3939
    %v3972 = vld [vmem:[#allocation2 + $0x29] sm:$0xff]
    %v3973 = vld [vmem:[#allocation2 + $0x31] sm:$0xff]
    %v3974 = vld [vmem:[#allocation2 + $0x39] sm:$0xff]
    %v3975 = vld [vmem:[#allocation2 + $0x41] sm:$0xff]
    %v3976 = vld [vmem:[#allocation2 + $0x49] sm:$0xff]
    %v3977 = vld [vmem:[#allocation2 + $0x51] sm:$0xff]
    %v3978 = vld [vmem:[#allocation2 + $0x59] sm:$0xff]
    %v3979 = vld [vmem:[#allocation2 + $0x61] sm:$0xff]
    %v3980 = vld [vmem:[#allocation2 + $0x69] sm:$0xff]
    %v3981 = vld [vmem:[#allocation2 + $0x71] sm:$0xff]
    %v3982 = vld [vmem:[#allocation2 + $0x79] sm:$0xff]
    %v3983 = vld [vmem:[#allocation2 + $0x81] sm:$0xff]
    %v3984 = vld [vmem:[#allocation2 + $0x89] sm:$0xff]
    %v3985 = vld [vmem:[#allocation2 + $0x91] sm:$0xff]
    %v3986 = vld [vmem:[#allocation2 + $0x99] sm:$0xff]
    %v3987 = vld [vmem:[#allocation2 + $0xa1] sm:$0xff]
    %v3988 = vld [vmem:[#allocation2 + $0xa9] sm:$0xff]
    %v3989 = vld [vmem:[#allocation2 + $0xb1] sm:$0xff]
    %v3990 = vld [vmem:[#allocation2 + $0xb9] sm:$0xff]
    %v3991 = vld [vmem:[#allocation2 + $0xc1] sm:$0xff]
    %v3992 = vld [vmem:[#allocation2 + $0xc9] sm:$0xff]
    %v3993 = vld [vmem:[#allocation2 + $0xd1] sm:$0xff]
    %v3994 = vld [vmem:[#allocation2 + $0xd9] sm:$0xff]
    %v3995 = vld [vmem:[#allocation2 + $0xe1] sm:$0xff]
    %v3996 = vld [vmem:[#allocation2 + $0xe9] sm:$0xff]
    %v3997 = vld [vmem:[#allocation2 + $0xf1] sm:$0xff]
    %v3998 = vld [vmem:[#allocation2 + $0xf9] sm:$0xff]
    %v3999 = vld [vmem:[#allocation2 + $0x101] sm:$0xff]
    %v4000 = vld [vmem:[#allocation2 + $0x109] sm:$0xff]
    %v4001 = vld [vmem:[#allocation2 + $0x111] sm:$0xff]
    %v4002 = vld [vmem:[#allocation2 + $0x119] sm:$0xff]
    %v4003 = vld [vmem:[#allocation2 + $0x121] sm:$0xff]
    %v4004 = vpack.c.bf16 %v3973, %v3972
    %v4005 = vpack.c.bf16 %v3975, %v3974
    %v4006 = vpack.c.bf16 %v3977, %v3976
    %v4007 = vpack.c.bf16 %v3979, %v3978
    %v4008 = vpack.c.bf16 %v3981, %v3980
    %v4009 = vpack.c.bf16 %v3983, %v3982
    %v4010 = vpack.c.bf16 %v3985, %v3984
    %v4011 = vpack.c.bf16 %v3987, %v3986
    %v4012 = vpack.c.bf16 %v3989, %v3988
    %v4013 = vpack.c.bf16 %v3991, %v3990
    %v4014 = vpack.c.bf16 %v3993, %v3992
    %v4015 = vpack.c.bf16 %v3995, %v3994
    %v4016 = vpack.c.bf16 %v3997, %v3996
    %v4017 = vpack.c.bf16 %v3999, %v3998
    %v4018 = vpack.c.bf16 %v4001, %v4000
    %v4019 = vpack.c.bf16 %v4003, %v4002
    %4036 = vrot.lane.b32.xlu0 %v4004, 64
    %v4037 = vpop.permute.xlu0 %4036
    %4038 = vrot.lane.b32.xlu0 %v4005, 64
    %v4039 = vpop.permute.xlu0 %4038
    %4040 = vrot.lane.b32.xlu0 %v4006, 64
    %v4041 = vpop.permute.xlu0 %4040
    %4042 = vrot.lane.b32.xlu0 %v4007, 64
    %v4043 = vpop.permute.xlu0 %4042
    %4044 = vrot.lane.b32.xlu0 %v4008, 64
    %v4045 = vpop.permute.xlu0 %4044
    %4046 = vrot.lane.b32.xlu0 %v4009, 64
    %v4047 = vpop.permute.xlu0 %4046
    %4048 = vrot.lane.b32.xlu0 %v4010, 64
    %v4049 = vpop.permute.xlu0 %4048
    %4050 = vrot.lane.b32.xlu0 %v4011, 64
    %v4051 = vpop.permute.xlu0 %4050
    %4052 = vrot.lane.b32.xlu0 %v4012, 64
    %v4053 = vpop.permute.xlu0 %4052
    %4054 = vrot.lane.b32.xlu0 %v4013, 64
    %v4055 = vpop.permute.xlu0 %4054
    %4056 = vrot.lane.b32.xlu0 %v4014, 64
    %v4057 = vpop.permute.xlu0 %4056
    %4058 = vrot.lane.b32.xlu0 %v4015, 64
    %v4059 = vpop.permute.xlu0 %4058
    %4060 = vrot.lane.b32.xlu0 %v4016, 64
    %v4061 = vpop.permute.xlu0 %4060
    %4062 = vrot.lane.b32.xlu0 %v4017, 64
    %v4063 = vpop.permute.xlu0 %4062
    %4064 = vrot.lane.b32.xlu0 %v4018, 64
    %v4065 = vpop.permute.xlu0 %4064
    %4066 = vrot.lane.b32.xlu0 %v4019, 64
    %v4067 = vpop.permute.xlu0 %4066
    %4084 = vst.msk [vmem:[#allocation3 + $0x10] sm:$0xff] %vm276, %v4037
    %4085 = vst.msk [vmem:[#allocation3 + $0x28] sm:$0xff] %vm276, %v4039
    %4086 = vst.msk [vmem:[#allocation3 + $0x40] sm:$0xff] %vm276, %v4041
    %4087 = vst.msk [vmem:[#allocation3 + $0x58] sm:$0xff] %vm276, %v4043
    %4088 = vst.msk [vmem:[#allocation3 + $0x70] sm:$0xff] %vm276, %v4045
    %4089 = vst.msk [vmem:[#allocation3 + $0x88] sm:$0xff] %vm276, %v4047
    %4090 = vst.msk [vmem:[#allocation3 + $0xa0] sm:$0xff] %vm276, %v4049
    %4091 = vst.msk [vmem:[#allocation3 + $0xb8] sm:$0xff] %vm276, %v4051
    %4092 = vst.msk [vmem:[#allocation3 + $0xd0] sm:$0xff] %vm276, %v4053
    %4093 = vst.msk [vmem:[#allocation3 + $0xe8] sm:$0xff] %vm276, %v4055
    %4094 = vst.msk [vmem:[#allocation3 + $0x100] sm:$0xff] %vm276, %v4057
    %4095 = vst.msk [vmem:[#allocation3 + $0x118] sm:$0xff] %vm276, %v4059
    %4096 = vst.msk [vmem:[#allocation3 + $0x130] sm:$0xff] %vm276, %v4061
    %4097 = vst.msk [vmem:[#allocation3 + $0x148] sm:$0xff] %vm276, %v4063
    %4098 = vst.msk [vmem:[#allocation3 + $0x160] sm:$0xff] %vm276, %v4065
    %4099 = vst.msk [vmem:[#allocation3 + $0x178] sm:$0xff] %vm276, %v4067
    %v4100 = vld [vmem:[#allocation2 + $0x141] sm:$0xff]
    %v4101 = vld [vmem:[#allocation2 + $0x149] sm:$0xff]
    %v4102 = vld [vmem:[#allocation2 + $0x151] sm:$0xff]
    %v4103 = vld [vmem:[#allocation2 + $0x159] sm:$0xff]
    %v4104 = vld [vmem:[#allocation2 + $0x161] sm:$0xff]
    %v4105 = vld [vmem:[#allocation2 + $0x169] sm:$0xff]
    %v4106 = vld [vmem:[#allocation2 + $0x171] sm:$0xff]
    %v4107 = vld [vmem:[#allocation2 + $0x179] sm:$0xff]
    %v4108 = vld [vmem:[#allocation2 + $0x181] sm:$0xff]
    %v4109 = vld [vmem:[#allocation2 + $0x189] sm:$0xff]
    %v4110 = vld [vmem:[#allocation2 + $0x191] sm:$0xff]
    %v4111 = vld [vmem:[#allocation2 + $0x199] sm:$0xff]
    %v4112 = vld [vmem:[#allocation2 + $0x1a1] sm:$0xff]
    %v4113 = vld [vmem:[#allocation2 + $0x1a9] sm:$0xff]
    %v4114 = vld [vmem:[#allocation2 + $0x1b1] sm:$0xff]
    %v4115 = vld [vmem:[#allocation2 + $0x1b9] sm:$0xff]
    %v4116 = vld [vmem:[#allocation2 + $0x1c1] sm:$0xff]
    %v4117 = vld [vmem:[#allocation2 + $0x1c9] sm:$0xff]
    %v4118 = vld [vmem:[#allocation2 + $0x1d1] sm:$0xff]
    %v4119 = vld [vmem:[#allocation2 + $0x1d9] sm:$0xff]
    %v4120 = vld [vmem:[#allocation2 + $0x1e1] sm:$0xff]
    %v4121 = vld [vmem:[#allocation2 + $0x1e9] sm:$0xff]
    %v4122 = vld [vmem:[#allocation2 + $0x1f1] sm:$0xff]
    %v4123 = vld [vmem:[#allocation2 + $0x1f9] sm:$0xff]
    %v4124 = vld [vmem:[#allocation2 + $0x201] sm:$0xff]
    %v4125 = vld [vmem:[#allocation2 + $0x209] sm:$0xff]
    %v4126 = vld [vmem:[#allocation2 + $0x211] sm:$0xff]
    %v4127 = vld [vmem:[#allocation2 + $0x219] sm:$0xff]
    %v4128 = vld [vmem:[#allocation2 + $0x221] sm:$0xff]
    %v4129 = vld [vmem:[#allocation2 + $0x229] sm:$0xff]
    %v4130 = vld [vmem:[#allocation2 + $0x231] sm:$0xff]
    %v4131 = vld [vmem:[#allocation2 + $0x239] sm:$0xff]
    %v4132 = vpack.c.bf16 %v4101, %v4100
    %v4133 = vpack.c.bf16 %v4103, %v4102
    %v4134 = vpack.c.bf16 %v4105, %v4104
    %v4135 = vpack.c.bf16 %v4107, %v4106
    %v4136 = vpack.c.bf16 %v4109, %v4108
    %v4137 = vpack.c.bf16 %v4111, %v4110
    %v4138 = vpack.c.bf16 %v4113, %v4112
    %v4139 = vpack.c.bf16 %v4115, %v4114
    %v4140 = vpack.c.bf16 %v4117, %v4116
    %v4141 = vpack.c.bf16 %v4119, %v4118
    %v4142 = vpack.c.bf16 %v4121, %v4120
    %v4143 = vpack.c.bf16 %v4123, %v4122
    %v4144 = vpack.c.bf16 %v4125, %v4124
    %v4145 = vpack.c.bf16 %v4127, %v4126
    %v4146 = vpack.c.bf16 %v4129, %v4128
    %v4147 = vpack.c.bf16 %v4131, %v4130
    %4164 = vrot.lane.b32.xlu0 %v4132, 64
    %v4165 = vpop.permute.xlu0 %4164
    %4166 = vrot.lane.b32.xlu0 %v4133, 64
    %v4167 = vpop.permute.xlu0 %4166
    %4168 = vrot.lane.b32.xlu0 %v4134, 64
    %v4169 = vpop.permute.xlu0 %4168
    %4170 = vrot.lane.b32.xlu0 %v4135, 64
    %v4171 = vpop.permute.xlu0 %4170
    %4172 = vrot.lane.b32.xlu0 %v4136, 64
    %v4173 = vpop.permute.xlu0 %4172
    %4174 = vrot.lane.b32.xlu0 %v4137, 64
    %v4175 = vpop.permute.xlu0 %4174
    %4176 = vrot.lane.b32.xlu0 %v4138, 64
    %v4177 = vpop.permute.xlu0 %4176
    %4178 = vrot.lane.b32.xlu0 %v4139, 64
    %v4179 = vpop.permute.xlu0 %4178
    %4180 = vrot.lane.b32.xlu0 %v4140, 64
    %v4181 = vpop.permute.xlu0 %4180
    %4182 = vrot.lane.b32.xlu0 %v4141, 64
    %v4183 = vpop.permute.xlu0 %4182
    %4184 = vrot.lane.b32.xlu0 %v4142, 64
    %v4185 = vpop.permute.xlu0 %4184
    %4186 = vrot.lane.b32.xlu0 %v4143, 64
    %v4187 = vpop.permute.xlu0 %4186
    %4188 = vrot.lane.b32.xlu0 %v4144, 64
    %v4189 = vpop.permute.xlu0 %4188
    %4190 = vrot.lane.b32.xlu0 %v4145, 64
    %v4191 = vpop.permute.xlu0 %4190
    %4192 = vrot.lane.b32.xlu0 %v4146, 64
    %v4193 = vpop.permute.xlu0 %4192
    %4194 = vrot.lane.b32.xlu0 %v4147, 64
    %v4195 = vpop.permute.xlu0 %4194
    %4212 = vst.msk [vmem:[#allocation3 + $0x190] sm:$0xff] %vm276, %v4165
    %4213 = vst.msk [vmem:[#allocation3 + $0x1a8] sm:$0xff] %vm276, %v4167
    %4214 = vst.msk [vmem:[#allocation3 + $0x1c0] sm:$0xff] %vm276, %v4169
    %4215 = vst.msk [vmem:[#allocation3 + $0x1d8] sm:$0xff] %vm276, %v4171
    %4216 = vst.msk [vmem:[#allocation3 + $0x1f0] sm:$0xff] %vm276, %v4173
    %4217 = vst.msk [vmem:[#allocation3 + $0x208] sm:$0xff] %vm276, %v4175
    %4218 = vst.msk [vmem:[#allocation3 + $0x220] sm:$0xff] %vm276, %v4177
    %4219 = vst.msk [vmem:[#allocation3 + $0x238] sm:$0xff] %vm276, %v4179
    %4220 = vst.msk [vmem:[#allocation3 + $0x250] sm:$0xff] %vm276, %v4181
    %4221 = vst.msk [vmem:[#allocation3 + $0x268] sm:$0xff] %vm276, %v4183
    %4222 = vst.msk [vmem:[#allocation3 + $0x280] sm:$0xff] %vm276, %v4185
    %4223 = vst.msk [vmem:[#allocation3 + $0x298] sm:$0xff] %vm276, %v4187
    %4224 = vst.msk [vmem:[#allocation3 + $0x2b0] sm:$0xff] %vm276, %v4189
    %4225 = vst.msk [vmem:[#allocation3 + $0x2c8] sm:$0xff] %vm276, %v4191
    %4226 = vst.msk [vmem:[#allocation3 + $0x2e0] sm:$0xff] %vm276, %v4193
    %4227 = vst.msk [vmem:[#allocation3 + $0x2f8] sm:$0xff] %vm276, %v4195
    %v4228 = vld [vmem:[#allocation5 + $0x18] sm:$0xf]
    %v4229 = vld [vmem:[#allocation5 + $0x1c] sm:$0xf]
    %v4230 = vld [vmem:[#allocation5 + $0x20] sm:$0xf]
    %v4231 = vld [vmem:[#allocation5 + $0x24] sm:$0xf]
    %v4232 = vld [vmem:[#allocation5 + $0x28] sm:$0xf]
    %v4233 = vld [vmem:[#allocation5 + $0x2c] sm:$0xf]
    %v4234 = vld [vmem:[#allocation5 + $0x30] sm:$0xf]
    %v4235 = vld [vmem:[#allocation5 + $0x34] sm:$0xf]
    %v4236 = vld [vmem:[#allocation5 + $0x38] sm:$0xf]
    %v4237 = vld [vmem:[#allocation5 + $0x3c] sm:$0xf]
    %v4238 = vld [vmem:[#allocation5 + $0x40] sm:$0xf]
    %v4239 = vld [vmem:[#allocation5 + $0x44] sm:$0xf]
    %v4240 = vld [vmem:[#allocation5 + $0x48] sm:$0xf]
    %v4241 = vld [vmem:[#allocation5 + $0x4c] sm:$0xf]
    %v4242 = vld [vmem:[#allocation5 + $0x50] sm:$0xf]
    %v4243 = vld [vmem:[#allocation5 + $0x54] sm:$0xf]
    %v4244 = vld [vmem:[#allocation5 + $0x58] sm:$0xf]
    %v4245 = vld [vmem:[#allocation5 + $0x5c] sm:$0xf]
    %v4246 = vld [vmem:[#allocation5 + $0x60] sm:$0xf]
    %v4247 = vld [vmem:[#allocation5 + $0x64] sm:$0xf]
    %v4248 = vld [vmem:[#allocation5 + $0x68] sm:$0xf]
    %v4249 = vld [vmem:[#allocation5 + $0x6c] sm:$0xf]
    %v4250 = vld [vmem:[#allocation5 + $0x70] sm:$0xf]
    %v4251 = vld [vmem:[#allocation5 + $0x74] sm:$0xf]
    %v4252 = vld [vmem:[#allocation5 + $0x78] sm:$0xf]
    %v4253 = vld [vmem:[#allocation5 + $0x7c] sm:$0xf]
    %v4254 = vld [vmem:[#allocation5 + $0x80] sm:$0xf]
    %v4255 = vld [vmem:[#allocation5 + $0x84] sm:$0xf]
    %v4256 = vld [vmem:[#allocation5 + $0x88] sm:$0xf]
    %v4257 = vld [vmem:[#allocation5 + $0x8c] sm:$0xf]
    %v4258 = vld [vmem:[#allocation5 + $0x90] sm:$0xf]
    %v4259 = vld [vmem:[#allocation5 + $0x94] sm:$0xf]
    %v4260 = vld [vmem:[#allocation5 + $0x98] sm:$0xf]
    %v4261 = vld [vmem:[#allocation5 + $0x9c] sm:$0xf]
    %v4262 = vld [vmem:[#allocation5 + $0xa0] sm:$0xf]
    %v4263 = vld [vmem:[#allocation5 + $0xa4] sm:$0xf]
    %v4264 = vld [vmem:[#allocation5 + $0xa8] sm:$0x1]
    %v4265 = vld [vmem:[#allocation3] sm:$0xff]
    %v4266 = vld [vmem:[#allocation3 + $0x8] sm:$0xff]
    %v4267 = vld [vmem:[#allocation3 + $0x10] sm:$0xff]
    %v4268 = vld [vmem:[#allocation3 + $0x18] sm:$0xff]
    %v4269 = vld [vmem:[#allocation3 + $0x20] sm:$0xff]
    %v4270 = vld [vmem:[#allocation3 + $0x28] sm:$0xff]
    %v4271 = vld [vmem:[#allocation3 + $0x30] sm:$0xff]
    %v4272 = vld [vmem:[#allocation3 + $0x38] sm:$0xff]
    %v4273 = vld [vmem:[#allocation3 + $0x40] sm:$0xff]
    %v4274 = vld [vmem:[#allocation3 + $0x48] sm:$0xff]
    %v4275 = vld [vmem:[#allocation3 + $0x50] sm:$0xff]
    %v4276 = vld [vmem:[#allocation3 + $0x58] sm:$0xff]
    %v4277 = vld [vmem:[#allocation3 + $0x60] sm:$0xff]
    %v4278 = vld [vmem:[#allocation3 + $0x68] sm:$0xff]
    %v4279 = vld [vmem:[#allocation3 + $0x70] sm:$0xff]
    %v4280 = vld [vmem:[#allocation3 + $0x78] sm:$0xff]
    %v4281 = vld [vmem:[#allocation3 + $0x80] sm:$0xff]
    %v4282 = vld [vmem:[#allocation3 + $0x88] sm:$0xff]
    %v4283 = vld [vmem:[#allocation3 + $0x90] sm:$0xff]
    %v4284 = vld [vmem:[#allocation3 + $0x98] sm:$0xff]
    %v4285 = vld [vmem:[#allocation3 + $0xa0] sm:$0xff]
    %v4286 = vld [vmem:[#allocation3 + $0xa8] sm:$0xff]
    %v4287 = vld [vmem:[#allocation3 + $0xb0] sm:$0xff]
    %v4288 = vld [vmem:[#allocation3 + $0xb8] sm:$0xff]
    %v4289 = vld [vmem:[#allocation3 + $0xc0] sm:$0xff]
    %v4290 = vld [vmem:[#allocation3 + $0xc8] sm:$0xff]
    %v4291 = vld [vmem:[#allocation3 + $0xd0] sm:$0xff]
    %v4292 = vld [vmem:[#allocation3 + $0xd8] sm:$0xff]
    %v4293 = vld [vmem:[#allocation3 + $0xe0] sm:$0xff]
    %v4294 = vld [vmem:[#allocation3 + $0xe8] sm:$0xff]
    %v4295 = vld [vmem:[#allocation3 + $0xf0] sm:$0xff]
    %v4296 = vld [vmem:[#allocation3 + $0xf8] sm:$0xff]
    %v4297 = vld [vmem:[#allocation3 + $0x100] sm:$0xff]
    %v4298 = vld [vmem:[#allocation3 + $0x108] sm:$0xff]
    %v4299 = vld [vmem:[#allocation3 + $0x110] sm:$0xff]
    %v4300 = vld [vmem:[#allocation3 + $0x118] sm:$0xff]
    %v4301 = vld [vmem:[#allocation3 + $0x120] sm:$0xff]
    %v4302 = vld [vmem:[#allocation3 + $0x128] sm:$0xff]
    %v4303 = vld [vmem:[#allocation3 + $0x130] sm:$0xff]
    %v4304 = vld [vmem:[#allocation3 + $0x138] sm:$0xff]
    %v4305 = vld [vmem:[#allocation3 + $0x140] sm:$0xff]
    %v4306 = vld [vmem:[#allocation3 + $0x148] sm:$0xff]
    %v4307 = vld [vmem:[#allocation3 + $0x150] sm:$0xff]
    %v4308 = vld [vmem:[#allocation3 + $0x158] sm:$0xff]
    %v4309 = vld [vmem:[#allocation3 + $0x160] sm:$0xff]
    %v4310 = vld [vmem:[#allocation3 + $0x168] sm:$0xff]
    %v4311 = vld [vmem:[#allocation3 + $0x170] sm:$0xff]
    %v4312 = vld [vmem:[#allocation3 + $0x178] sm:$0xff]
    %v4313 = vld [vmem:[#allocation3 + $0x180] sm:$0xff]
    %v4314 = vld [vmem:[#allocation3 + $0x188] sm:$0xff]
    %v4315 = vld [vmem:[#allocation3 + $0x190] sm:$0xff]
    %v4316 = vld [vmem:[#allocation3 + $0x198] sm:$0xff]
    %v4317 = vld [vmem:[#allocation3 + $0x1a0] sm:$0xff]
    %v4318 = vld [vmem:[#allocation3 + $0x1a8] sm:$0xff]
    %v4319 = vld [vmem:[#allocation3 + $0x1b0] sm:$0xff]
    %v4320 = vld [vmem:[#allocation3 + $0x1b8] sm:$0xff]
    %v4321 = vld [vmem:[#allocation3 + $0x1c0] sm:$0xff]
    %v4322 = vld [vmem:[#allocation3 + $0x1c8] sm:$0xff]
    %v4323 = vld [vmem:[#allocation3 + $0x1d0] sm:$0xff]
    %v4324 = vld [vmem:[#allocation3 + $0x1d8] sm:$0xff]
    %v4325 = vld [vmem:[#allocation3 + $0x1e0] sm:$0xff]
    %v4326 = vld [vmem:[#allocation3 + $0x1e8] sm:$0xff]
    %v4327 = vld [vmem:[#allocation3 + $0x1f0] sm:$0xff]
    %v4328 = vld [vmem:[#allocation3 + $0x1f8] sm:$0xff]
    %v4329 = vld [vmem:[#allocation3 + $0x200] sm:$0xff]
    %v4330 = vld [vmem:[#allocation3 + $0x208] sm:$0xff]
    %v4331 = vld [vmem:[#allocation3 + $0x210] sm:$0xff]
    %v4332 = vld [vmem:[#allocation3 + $0x218] sm:$0xff]
    %v4333 = vld [vmem:[#allocation3 + $0x220] sm:$0xff]
    %v4334 = vld [vmem:[#allocation3 + $0x228] sm:$0xff]
    %v4335 = vld [vmem:[#allocation3 + $0x230] sm:$0xff]
    %v4336 = vld [vmem:[#allocation3 + $0x238] sm:$0xff]
    %v4337 = vld [vmem:[#allocation3 + $0x240] sm:$0xff]
    %v4338 = vld [vmem:[#allocation3 + $0x248] sm:$0xff]
    %v4339 = vld [vmem:[#allocation3 + $0x250] sm:$0xff]
    %v4340 = vld [vmem:[#allocation3 + $0x258] sm:$0xff]
    %v4341 = vld [vmem:[#allocation3 + $0x260] sm:$0xff]
    %v4342 = vld [vmem:[#allocation3 + $0x268] sm:$0xff]
    %v4343 = vld [vmem:[#allocation3 + $0x270] sm:$0xff]
    %v4344 = vld [vmem:[#allocation3 + $0x278] sm:$0xff]
    %v4345 = vld [vmem:[#allocation3 + $0x280] sm:$0xff]
    %v4346 = vld [vmem:[#allocation3 + $0x288] sm:$0xff]
    %v4347 = vld [vmem:[#allocation3 + $0x290] sm:$0xff]
    %v4348 = vld [vmem:[#allocation3 + $0x298] sm:$0xff]
    %v4349 = vld [vmem:[#allocation3 + $0x2a0] sm:$0xff]
    %v4350 = vld [vmem:[#allocation3 + $0x2a8] sm:$0xff]
    %v4351 = vld [vmem:[#allocation3 + $0x2b0] sm:$0xff]
    %v4352 = vld [vmem:[#allocation3 + $0x2b8] sm:$0xff]
    %v4353 = vld [vmem:[#allocation3 + $0x2c0] sm:$0xff]
    %v4354 = vld [vmem:[#allocation3 + $0x2c8] sm:$0xff]
    %v4355 = vld [vmem:[#allocation3 + $0x2d0] sm:$0xff]
    %v4356 = vld [vmem:[#allocation3 + $0x2d8] sm:$0xff]
    %v4357 = vld [vmem:[#allocation3 + $0x2e0] sm:$0xff]
    %v4358 = vld [vmem:[#allocation3 + $0x2e8] sm:$0xff]
    %v4359 = vld [vmem:[#allocation3 + $0x2f0] sm:$0xff]
    %v4360 = vld [vmem:[#allocation3 + $0x2f8] sm:$0xff]
    %v4361 = vunpack.c.l.bf16 %v4264
    %v4362 = vlaneseq
    %v4363 = vshrl.u32 %v4362, 7
    %v4364 = vsub.s32 0, %v4363
    %v4365 = vrot.slane %v4361, %v4364
    %v4402 = vunpack.c.l.b16 %v4228
    %v4403 = vunpack.c.l.b16 %v4229
    %v4404 = vunpack.c.l.b16 %v4230
    %v4405 = vunpack.c.l.b16 %v4231
    %v4406 = vunpack.c.l.b16 %v4232
    %v4407 = vunpack.c.l.b16 %v4233
    %v4408 = vunpack.c.l.b16 %v4234
    %v4409 = vunpack.c.l.b16 %v4235
    %v4410 = vunpack.c.l.b16 %v4236
    %v4411 = vunpack.c.l.b16 %v4237
    %v4412 = vunpack.c.l.b16 %v4238
    %v4413 = vunpack.c.l.b16 %v4239
    %v4414 = vunpack.c.l.b16 %v4240
    %v4415 = vunpack.c.l.b16 %v4241
    %v4416 = vunpack.c.l.b16 %v4242
    %v4417 = vunpack.c.l.b16 %v4243
    %v4418 = vunpack.c.l.b16 %v4244
    %v4419 = vunpack.c.l.b16 %v4245
    %v4420 = vunpack.c.l.b16 %v4246
    %v4421 = vunpack.c.l.b16 %v4247
    %v4422 = vunpack.c.l.b16 %v4248
    %v4423 = vunpack.c.l.b16 %v4249
    %v4424 = vunpack.c.l.b16 %v4250
    %v4425 = vunpack.c.l.b16 %v4251
    %v4426 = vunpack.c.l.b16 %v4252
    %v4427 = vunpack.c.l.b16 %v4253
    %v4428 = vunpack.c.l.b16 %v4254
    %v4429 = vunpack.c.l.b16 %v4255
    %v4430 = vunpack.c.l.b16 %v4256
    %v4431 = vunpack.c.l.b16 %v4257
    %v4432 = vunpack.c.l.b16 %v4258
    %v4433 = vunpack.c.l.b16 %v4259
    %v4434 = vunpack.c.l.b16 %v4260
    %v4435 = vunpack.c.l.b16 %v4261
    %v4436 = vunpack.c.l.b16 %v4262
    %v4437 = vunpack.c.l.b16 %v4263
    %v4438 = vpack.c.b16 %v4403, %v4402
    %v4439 = vpack.c.b16 %v4405, %v4404
    %v4440 = vpack.c.b16 %v4407, %v4406
    %v4441 = vpack.c.b16 %v4409, %v4408
    %v4442 = vpack.c.b16 %v4411, %v4410
    %v4443 = vpack.c.b16 %v4413, %v4412
    %v4444 = vpack.c.b16 %v4415, %v4414
    %v4445 = vpack.c.b16 %v4417, %v4416
    %v4446 = vpack.c.b16 %v4419, %v4418
    %v4447 = vpack.c.b16 %v4421, %v4420
    %v4448 = vpack.c.b16 %v4423, %v4422
    %v4449 = vpack.c.b16 %v4425, %v4424
    %v4450 = vpack.c.b16 %v4427, %v4426
    %v4451 = vpack.c.b16 %v4429, %v4428
    %v4452 = vpack.c.b16 %v4431, %v4430
    %v4453 = vpack.c.b16 %v4433, %v4432
    %v4454 = vpack.c.b16 %v4435, %v4434
    %v4455 = vpack.c.b16 %v4437, %v4436
    %v4475 = vsel %vm276, %v4267, 0
    %v4478 = vsel %vm276, %v4270, 0
    %v4481 = vsel %vm276, %v4273, 0
    %v4484 = vsel %vm276, %v4276, 0
    %v4487 = vsel %vm276, %v4279, 0
    %v4490 = vsel %vm276, %v4282, 0
    %v4493 = vsel %vm276, %v4285, 0
    %v4496 = vsel %vm276, %v4288, 0
    %v4499 = vsel %vm276, %v4291, 0
    %v4502 = vsel %vm276, %v4294, 0
    %v4505 = vsel %vm276, %v4297, 0
    %v4508 = vsel %vm276, %v4300, 0
    %v4511 = vsel %vm276, %v4303, 0
    %v4514 = vsel %vm276, %v4306, 0
    %v4517 = vsel %vm276, %v4309, 0
    %v4520 = vsel %vm276, %v4312, 0
    %v4523 = vsel %vm276, %v4315, 0
    %v4526 = vsel %vm276, %v4318, 0
    %v4529 = vsel %vm276, %v4321, 0
    %v4532 = vsel %vm276, %v4324, 0
    %v4535 = vsel %vm276, %v4327, 0
    %v4538 = vsel %vm276, %v4330, 0
    %v4541 = vsel %vm276, %v4333, 0
    %v4544 = vsel %vm276, %v4336, 0
    %v4547 = vsel %vm276, %v4339, 0
    %v4550 = vsel %vm276, %v4342, 0
    %v4553 = vsel %vm276, %v4345, 0
    %v4556 = vsel %vm276, %v4348, 0
    %v4559 = vsel %vm276, %v4351, 0
    %v4562 = vsel %vm276, %v4354, 0
    %v4565 = vsel %vm276, %v4357, 0
    %v4568 = vsel %vm276, %v4360, 0
    %4570 = vmatprep.subr.bf16.mxu0 0
    %4571 = vmatpush1.bf16.msra.mxu0 %v4438
    %4572 = vmatprep.subr.bf16.mxu0 0
    %4573 = vmatpush1.bf16.msra.mxu0 %v4439
    %4574 = vmatprep.subr.bf16.mxu0 0
    %4575 = vmatpush1.bf16.msra.mxu0 %v4440
    %4576 = vmatprep.subr.bf16.mxu0 0
    %4577 = vmatpush1.bf16.msra.mxu0 %v4441
    %4578 = vmatprep.subr.bf16.mxu0 0
    %4579 = vmatpush1.bf16.msra.mxu0 %v4442
    %4580 = vmatprep.subr.bf16.mxu0 0
    %4581 = vmatpush1.bf16.msra.mxu0 %v4443
    %4582 = vmatprep.subr.bf16.mxu0 0
    %4583 = vmatpush1.bf16.msra.mxu0 %v4444
    %4584 = vmatprep.subr.bf16.mxu0 0
    %4585 = vmatpush1.bf16.msra.mxu0 %v4445
    %4586 = vmatprep.subr.bf16.mxu0 0
    %4587 = vmatpush1.bf16.msra.mxu0 %v4446
    %4588 = vmatprep.subr.bf16.mxu0 0
    %4589 = vmatpush1.bf16.msra.mxu0 %v4447
    %4590 = vmatprep.subr.bf16.mxu0 0
    %4591 = vmatpush1.bf16.msra.mxu0 %v4448
    %4592 = vmatprep.subr.bf16.mxu0 0
    %4593 = vmatpush1.bf16.msra.mxu0 %v4449
    %4594 = vmatprep.subr.bf16.mxu0 0
    %4595 = vmatpush1.bf16.msra.mxu0 %v4450
    %4596 = vmatprep.subr.bf16.mxu0 0
    %4597 = vmatpush1.bf16.msra.mxu0 %v4451
    %4598 = vmatprep.subr.bf16.mxu0 0
    %4599 = vmatpush1.bf16.msra.mxu0 %v4452
    %4600 = vmatprep.subr.bf16.mxu0 0
    %4601 = vmatpush1.bf16.msra.mxu0 %v4453
    %4602 = vmatprep.mubr.bf16.mxu0 %v4266
    %4603 = vmatmul.mubr.bf16.gmra.mrb[0].mxu0 %v4265
    %v4604 = vpop.f32.mrb[0].mxu0
    %v4605 = vadd.f32 %v4365, %v4604
    %v4606 = vpop.f32.mrb[0].mxu0
    %v4607 = vpop.f32.mrb[0].mxu0
    %v4608 = vadd.f32 %v4365, %v4607
    %v4609 = vpop.f32.mrb[0].mxu0
    %4610 = vmatprep.mubr.bf16.mxu0 %v4269
    %4611 = vmatmul.mubr.bf16.gmra.mrb[0].mxu0 %v4268
    %v4612 = vpop.f32.mrb[0].mxu0
    %v4613 = vadd.f32 %v4365, %v4612
    %v4614 = vpop.f32.mrb[0].mxu0
    %v4615 = vpop.f32.mrb[0].mxu0
    %v4616 = vadd.f32 %v4365, %v4615
    %v4617 = vpop.f32.mrb[0].mxu0
    %4618 = vmatprep.mubr.bf16.mxu0 %v4272
    %4619 = vmatmul.mubr.bf16.gmra.mrb[0].mxu0 %v4271
    %v4620 = vpop.f32.mrb[0].mxu0
    %v4621 = vadd.f32 %v4365, %v4620
    %v4622 = vpop.f32.mrb[0].mxu0
    %v4623 = vpop.f32.mrb[0].mxu0
    %v4624 = vadd.f32 %v4365, %v4623
    %v4625 = vpop.f32.mrb[0].mxu0
    %4626 = vmatprep.mubr.bf16.mxu0 %v4275
    %4627 = vmatmul.mubr.bf16.gmra.mrb[0].mxu0 %v4274
    %v4628 = vpop.f32.mrb[0].mxu0
    %v4629 = vadd.f32 %v4365, %v4628
    %v4630 = vpop.f32.mrb[0].mxu0
    %v4631 = vpop.f32.mrb[0].mxu0
    %v4632 = vadd.f32 %v4365, %v4631
    %v4633 = vpop.f32.mrb[0].mxu0
    %4634 = vmatprep.mubr.bf16.mxu0 %v4278
    %4635 = vmatmul.mubr.bf16.gmra.mrb[0].mxu0 %v4277
    %v4636 = vpop.f32.mrb[0].mxu0
    %v4637 = vadd.f32 %v4365, %v4636
    %v4638 = vpop.f32.mrb[0].mxu0
    %v4639 = vpop.f32.mrb[0].mxu0
    %v4640 = vadd.f32 %v4365, %v4639
    %v4641 = vpop.f32.mrb[0].mxu0
    %4642 = vmatprep.mubr.bf16.mxu0 %v4281
    %4643 = vmatmul.mubr.bf16.gmra.mrb[0].mxu0 %v4280
    %v4644 = vpop.f32.mrb[0].mxu0
    %v4645 = vadd.f32 %v4365, %v4644
    %v4646 = vpop.f32.mrb[0].mxu0
    %v4647 = vpop.f32.mrb[0].mxu0
    %v4648 = vadd.f32 %v4365, %v4647
    %v4649 = vpop.f32.mrb[0].mxu0
    %4650 = vmatprep.mubr.bf16.mxu0 %v4284
    %4651 = vmatmul.mubr.bf16.gmra.mrb[0].mxu0 %v4283
    %v4652 = vpop.f32.mrb[0].mxu0
    %v4653 = vadd.f32 %v4365, %v4652
    %v4654 = vpop.f32.mrb[0].mxu0
    %v4655 = vpop.f32.mrb[0].mxu0
    %v4656 = vadd.f32 %v4365, %v4655
    %v4657 = vpop.f32.mrb[0].mxu0
    %4658 = vmatprep.mubr.bf16.mxu0 %v4287
    %4659 = vmatmul.mubr.bf16.gmra.mrb[0].mxu0 %v4286
    %v4660 = vpop.f32.mrb[0].mxu0
    %v4661 = vadd.f32 %v4365, %v4660
    %v4662 = vpop.f32.mrb[0].mxu0
    %v4663 = vpop.f32.mrb[0].mxu0
    %v4664 = vadd.f32 %v4365, %v4663
    %v4665 = vpop.f32.mrb[0].mxu0
    %4666 = vmatprep.mubr.bf16.mxu0 %v4290
    %4667 = vmatmul.mubr.bf16.gmra.mrb[0].mxu0 %v4289
    %v4668 = vpop.f32.mrb[0].mxu0
    %v4669 = vadd.f32 %v4365, %v4668
    %v4670 = vpop.f32.mrb[0].mxu0
    %v4671 = vpop.f32.mrb[0].mxu0
    %v4672 = vadd.f32 %v4365, %v4671
    %v4673 = vpop.f32.mrb[0].mxu0
    %4674 = vmatprep.mubr.bf16.mxu0 %v4293
    %4675 = vmatmul.mubr.bf16.gmra.mrb[0].mxu0 %v4292
    %v4676 = vpop.f32.mrb[0].mxu0
    %v4677 = vadd.f32 %v4365, %v4676
    %v4678 = vpop.f32.mrb[0].mxu0
    %v4679 = vpop.f32.mrb[0].mxu0
    %v4680 = vadd.f32 %v4365, %v4679
    %v4681 = vpop.f32.mrb[0].mxu0
    %4682 = vmatprep.mubr.bf16.mxu0 %v4296
    %4683 = vmatmul.mubr.bf16.gmra.mrb[0].mxu0 %v4295
    %v4684 = vpop.f32.mrb[0].mxu0
    %v4685 = vadd.f32 %v4365, %v4684
    %v4686 = vpop.f32.mrb[0].mxu0
    %v4687 = vpop.f32.mrb[0].mxu0
    %v4688 = vadd.f32 %v4365, %v4687
    %v4689 = vpop.f32.mrb[0].mxu0
    %4690 = vmatprep.mubr.bf16.mxu0 %v4299
    %4691 = vmatmul.mubr.bf16.gmra.mrb[0].mxu0 %v4298
    %v4692 = vpop.f32.mrb[0].mxu0
    %v4693 = vadd.f32 %v4365, %v4692
    %v4694 = vpop.f32.mrb[0].mxu0
    %v4695 = vpop.f32.mrb[0].mxu0
    %v4696 = vadd.f32 %v4365, %v4695
    %v4697 = vpop.f32.mrb[0].mxu0
    %4698 = vmatprep.mubr.bf16.mxu0 %v4302
    %4699 = vmatmul.mubr.bf16.gmra.mrb[0].mxu0 %v4301
    %v4700 = vpop.f32.mrb[0].mxu0
    %v4701 = vadd.f32 %v4365, %v4700
    %v4702 = vpop.f32.mrb[0].mxu0
    %v4703 = vpop.f32.mrb[0].mxu0
    %v4704 = vadd.f32 %v4365, %v4703
    %v4705 = vpop.f32.mrb[0].mxu0
    %4706 = vmatprep.mubr.bf16.mxu0 %v4305
    %4707 = vmatmul.mubr.bf16.gmra.mrb[0].mxu0 %v4304
    %v4708 = vpop.f32.mrb[0].mxu0
    %v4709 = vadd.f32 %v4365, %v4708
    %v4710 = vpop.f32.mrb[0].mxu0
    %v4711 = vpop.f32.mrb[0].mxu0
    %v4712 = vadd.f32 %v4365, %v4711
    %v4713 = vpop.f32.mrb[0].mxu0
    %4714 = vmatprep.mubr.bf16.mxu0 %v4308
    %4715 = vmatmul.mubr.bf16.gmra.mrb[0].mxu0 %v4307
    %v4716 = vpop.f32.mrb[0].mxu0
    %v4717 = vadd.f32 %v4365, %v4716
    %v4718 = vpop.f32.mrb[0].mxu0
    %v4719 = vpop.f32.mrb[0].mxu0
    %v4720 = vadd.f32 %v4365, %v4719
    %v4721 = vpop.f32.mrb[0].mxu0
    %4722 = vmatprep.mubr.bf16.mxu0 %v4311
    %4723 = vmatmul.mubr.bf16.gmra.mrb[0].mxu0 %v4310
    %v4724 = vpop.f32.mrb[0].mxu0
    %v4725 = vadd.f32 %v4365, %v4724
    %v4726 = vpop.f32.mrb[0].mxu0
    %v4727 = vpop.f32.mrb[0].mxu0
    %v4728 = vadd.f32 %v4365, %v4727
    %v4729 = vpop.f32.mrb[0].mxu0
    %4730 = vmatprep.mubr.bf16.mxu0 %v4314
    %4731 = vmatmul.mubr.bf16.gmra.mrb[0].mxu0 %v4313
    %v4732 = vpop.f32.mrb[0].mxu0
    %v4733 = vadd.f32 %v4365, %v4732
    %v4734 = vpop.f32.mrb[0].mxu0
    %v4735 = vpop.f32.mrb[0].mxu0
    %v4736 = vadd.f32 %v4365, %v4735
    %v4737 = vpop.f32.mrb[0].mxu0
    %4738 = vmatprep.mubr.bf16.mxu0 %v4317
    %4739 = vmatmul.mubr.bf16.gmra.mrb[0].mxu0 %v4316
    %v4740 = vpop.f32.mrb[0].mxu0
    %v4741 = vadd.f32 %v4365, %v4740
    %v4742 = vpop.f32.mrb[0].mxu0
    %v4743 = vpop.f32.mrb[0].mxu0
    %v4744 = vadd.f32 %v4365, %v4743
    %v4745 = vpop.f32.mrb[0].mxu0
    %4746 = vmatprep.mubr.bf16.mxu0 %v4320
    %4747 = vmatmul.mubr.bf16.gmra.mrb[0].mxu0 %v4319
    %v4748 = vpop.f32.mrb[0].mxu0
    %v4749 = vadd.f32 %v4365, %v4748
    %v4750 = vpop.f32.mrb[0].mxu0
    %v4751 = vpop.f32.mrb[0].mxu0
    %v4752 = vadd.f32 %v4365, %v4751
    %v4753 = vpop.f32.mrb[0].mxu0
    %4754 = vmatprep.mubr.bf16.mxu0 %v4323
    %4755 = vmatmul.mubr.bf16.gmra.mrb[0].mxu0 %v4322
    %v4756 = vpop.f32.mrb[0].mxu0
    %v4757 = vadd.f32 %v4365, %v4756
    %v4758 = vpop.f32.mrb[0].mxu0
    %v4759 = vpop.f32.mrb[0].mxu0
    %v4760 = vadd.f32 %v4365, %v4759
    %v4761 = vpop.f32.mrb[0].mxu0
    %4762 = vmatprep.mubr.bf16.mxu0 %v4326
    %4763 = vmatmul.mubr.bf16.gmra.mrb[0].mxu0 %v4325
    %v4764 = vpop.f32.mrb[0].mxu0
    %v4765 = vadd.f32 %v4365, %v4764
    %v4766 = vpop.f32.mrb[0].mxu0
    %v4767 = vpop.f32.mrb[0].mxu0
    %v4768 = vadd.f32 %v4365, %v4767
    %v4769 = vpop.f32.mrb[0].mxu0
    %4770 = vmatprep.mubr.bf16.mxu0 %v4329
    %4771 = vmatmul.mubr.bf16.gmra.mrb[0].mxu0 %v4328
    %v4772 = vpop.f32.mrb[0].mxu0
    %v4773 = vadd.f32 %v4365, %v4772
    %v4774 = vpop.f32.mrb[0].mxu0
    %v4775 = vpop.f32.mrb[0].mxu0
    %v4776 = vadd.f32 %v4365, %v4775
    %v4777 = vpop.f32.mrb[0].mxu0
    %4778 = vmatprep.mubr.bf16.mxu0 %v4332
    %4779 = vmatmul.mubr.bf16.gmra.mrb[0].mxu0 %v4331
    %v4780 = vpop.f32.mrb[0].mxu0
    %v4781 = vadd.f32 %v4365, %v4780
    %v4782 = vpop.f32.mrb[0].mxu0
    %v4783 = vpop.f32.mrb[0].mxu0
    %v4784 = vadd.f32 %v4365, %v4783
    %v4785 = vpop.f32.mrb[0].mxu0
    %4786 = vmatprep.mubr.bf16.mxu0 %v4335
    %4787 = vmatmul.mubr.bf16.gmra.mrb[0].mxu0 %v4334
    %v4788 = vpop.f32.mrb[0].mxu0
    %v4789 = vadd.f32 %v4365, %v4788
    %v4790 = vpop.f32.mrb[0].mxu0
    %v4791 = vpop.f32.mrb[0].mxu0
    %v4792 = vadd.f32 %v4365, %v4791
    %v4793 = vpop.f32.mrb[0].mxu0
    %4794 = vmatprep.mubr.bf16.mxu0 %v4338
    %4795 = vmatmul.mubr.bf16.gmra.mrb[0].mxu0 %v4337
    %v4796 = vpop.f32.mrb[0].mxu0
    %v4797 = vadd.f32 %v4365, %v4796
    %v4798 = vpop.f32.mrb[0].mxu0
    %v4799 = vpop.f32.mrb[0].mxu0
    %v4800 = vadd.f32 %v4365, %v4799
    %v4801 = vpop.f32.mrb[0].mxu0
    %4802 = vmatprep.mubr.bf16.mxu0 %v4341
    %4803 = vmatmul.mubr.bf16.gmra.mrb[0].mxu0 %v4340
    %v4804 = vpop.f32.mrb[0].mxu0
    %v4805 = vadd.f32 %v4365, %v4804
    %v4806 = vpop.f32.mrb[0].mxu0
    %v4807 = vpop.f32.mrb[0].mxu0
    %v4808 = vadd.f32 %v4365, %v4807
    %v4809 = vpop.f32.mrb[0].mxu0
    %4810 = vmatprep.mubr.bf16.mxu0 %v4344
    %4811 = vmatmul.mubr.bf16.gmra.mrb[0].mxu0 %v4343
    %v4812 = vpop.f32.mrb[0].mxu0
    %v4813 = vadd.f32 %v4365, %v4812
    %v4814 = vpop.f32.mrb[0].mxu0
    %v4815 = vpop.f32.mrb[0].mxu0
    %v4816 = vadd.f32 %v4365, %v4815
    %v4817 = vpop.f32.mrb[0].mxu0
    %4818 = vmatprep.mubr.bf16.mxu0 %v4347
    %4819 = vmatmul.mubr.bf16.gmra.mrb[0].mxu0 %v4346
    %v4820 = vpop.f32.mrb[0].mxu0
    %v4821 = vadd.f32 %v4365, %v4820
    %v4822 = vpop.f32.mrb[0].mxu0
    %v4823 = vpop.f32.mrb[0].mxu0
    %v4824 = vadd.f32 %v4365, %v4823
    %v4825 = vpop.f32.mrb[0].mxu0
    %4826 = vmatprep.mubr.bf16.mxu0 %v4350
    %4827 = vmatmul.mubr.bf16.gmra.mrb[0].mxu0 %v4349
    %v4828 = vpop.f32.mrb[0].mxu0
    %v4829 = vadd.f32 %v4365, %v4828
    %v4830 = vpop.f32.mrb[0].mxu0
    %v4831 = vpop.f32.mrb[0].mxu0
    %v4832 = vadd.f32 %v4365, %v4831
    %v4833 = vpop.f32.mrb[0].mxu0
    %4834 = vmatprep.mubr.bf16.mxu0 %v4353
    %4835 = vmatmul.mubr.bf16.gmra.mrb[0].mxu0 %v4352
    %v4836 = vpop.f32.mrb[0].mxu0
    %v4837 = vadd.f32 %v4365, %v4836
    %v4838 = vpop.f32.mrb[0].mxu0
    %v4839 = vpop.f32.mrb[0].mxu0
    %v4840 = vadd.f32 %v4365, %v4839
    %v4841 = vpop.f32.mrb[0].mxu0
    %4842 = vmatprep.mubr.bf16.mxu0 %v4356
    %4843 = vmatmul.mubr.bf16.gmra.mrb[0].mxu0 %v4355
    %v4844 = vpop.f32.mrb[0].mxu0
    %v4845 = vadd.f32 %v4365, %v4844
    %v4846 = vpop.f32.mrb[0].mxu0
    %v4847 = vpop.f32.mrb[0].mxu0
    %v4848 = vadd.f32 %v4365, %v4847
    %v4849 = vpop.f32.mrb[0].mxu0
    %4850 = vmatprep.mubr.bf16.mxu0 %v4359
    %4851 = vmatmul.mubr.bf16.gmra.mrb[0].mxu0 %v4358
    %v4852 = vpop.f32.mrb[0].mxu0
    %v4853 = vadd.f32 %v4365, %v4852
    %v4854 = vpop.f32.mrb[0].mxu0
    %v4855 = vpop.f32.mrb[0].mxu0
    %v4856 = vadd.f32 %v4365, %v4855
    %v4857 = vpop.f32.mrb[0].mxu0
    %4858 = vdwg.mxu0
    %4859 = vmatprep.subr.bf16.mxu0 0
    %4860 = vmatpush1.bf16.msra.mxu0 %v4454
    %4861 = vmatprep.subr.bf16.mxu0 0
    %4862 = vmatpush1.bf16.msra.mxu0 %v4455
    %4863 = vmatprep.subr.bf16.mxu0 0
    %4864 = vmatpush1.bf16.msra.mxu0 0
    %4865 = vmatprep.subr.bf16.mxu0 0
    %4866 = vmatpush1.bf16.msra.mxu0 0
    %4867 = vmatprep.subr.bf16.mxu0 0
    %4868 = vmatpush1.bf16.msra.mxu0 0
    %4869 = vmatprep.subr.bf16.mxu0 0
    %4870 = vmatpush1.bf16.msra.mxu0 0
    %4871 = vmatprep.subr.bf16.mxu0 0
    %4872 = vmatpush1.bf16.msra.mxu0 0
    %4873 = vmatprep.subr.bf16.mxu0 0
    %4874 = vmatpush1.bf16.msra.mxu0 0
    %4875 = vmatprep.subr.bf16.mxu0 0
    %4876 = vmatpush1.bf16.msra.mxu0 0
    %4877 = vmatprep.subr.bf16.mxu0 0
    %4878 = vmatpush1.bf16.msra.mxu0 0
    %4879 = vmatprep.subr.bf16.mxu0 0
    %4880 = vmatpush1.bf16.msra.mxu0 0
    %4881 = vmatprep.subr.bf16.mxu0 0
    %4882 = vmatpush1.bf16.msra.mxu0 0
    %4883 = vmatprep.subr.bf16.mxu0 0
    %4884 = vmatpush1.bf16.msra.mxu0 0
    %4885 = vmatprep.subr.bf16.mxu0 0
    %4886 = vmatpush1.bf16.msra.mxu0 0
    %4887 = vmatprep.subr.bf16.mxu0 0
    %4888 = vmatpush1.bf16.msra.mxu0 0
    %4889 = vmatprep.subr.bf16.mxu0 0
    %4890 = vmatpush1.bf16.msra.mxu0 0
    %4891 = vmatprep.mubr.bf16.mxu0 0
    %4892 = vmatmul.mubr.bf16.gmra.mrb[0].mxu0 %v4475
    %v4893 = vpop.f32.mrb[0].mxu0
    %v4894 = vadd.f32 %v4605, %v4893
    %v4895 = vpop.f32.mrb[0].mxu0
    %v4896 = vpop.f32.mrb[0].mxu0
    %v4897 = vadd.f32 %v4608, %v4896
    %v4898 = vpop.f32.mrb[0].mxu0
    %4899 = vmatprep.mubr.bf16.mxu0 0
    %4900 = vmatmul.mubr.bf16.gmra.mrb[0].mxu0 %v4478
    %v4901 = vpop.f32.mrb[0].mxu0
    %v4902 = vadd.f32 %v4613, %v4901
    %v4903 = vpop.f32.mrb[0].mxu0
    %v4904 = vpop.f32.mrb[0].mxu0
    %v4905 = vadd.f32 %v4616, %v4904
    %v4906 = vpop.f32.mrb[0].mxu0
    %4907 = vmatprep.mubr.bf16.mxu0 0
    %4908 = vmatmul.mubr.bf16.gmra.mrb[0].mxu0 %v4481
    %v4909 = vpop.f32.mrb[0].mxu0
    %v4910 = vadd.f32 %v4621, %v4909
    %v4911 = vpop.f32.mrb[0].mxu0
    %v4912 = vpop.f32.mrb[0].mxu0
    %v4913 = vadd.f32 %v4624, %v4912
    %v4914 = vpop.f32.mrb[0].mxu0
    %4915 = vmatprep.mubr.bf16.mxu0 0
    %4916 = vmatmul.mubr.bf16.gmra.mrb[0].mxu0 %v4484
    %v4917 = vpop.f32.mrb[0].mxu0
    %v4918 = vadd.f32 %v4629, %v4917
    %v4919 = vpop.f32.mrb[0].mxu0
    %v4920 = vpop.f32.mrb[0].mxu0
    %v4921 = vadd.f32 %v4632, %v4920
    %v4922 = vpop.f32.mrb[0].mxu0
    %4923 = vmatprep.mubr.bf16.mxu0 0
    %4924 = vmatmul.mubr.bf16.gmra.mrb[0].mxu0 %v4487
    %v4925 = vpop.f32.mrb[0].mxu0
    %v4926 = vadd.f32 %v4637, %v4925
    %v4927 = vpop.f32.mrb[0].mxu0
    %v4928 = vpop.f32.mrb[0].mxu0
    %v4929 = vadd.f32 %v4640, %v4928
    %v4930 = vpop.f32.mrb[0].mxu0
    %4931 = vmatprep.mubr.bf16.mxu0 0
    %4932 = vmatmul.mubr.bf16.gmra.mrb[0].mxu0 %v4490
    %v4933 = vpop.f32.mrb[0].mxu0
    %v4934 = vadd.f32 %v4645, %v4933
    %v4935 = vpop.f32.mrb[0].mxu0
    %v4936 = vpop.f32.mrb[0].mxu0
    %v4937 = vadd.f32 %v4648, %v4936
    %v4938 = vpop.f32.mrb[0].mxu0
    %4939 = vmatprep.mubr.bf16.mxu0 0
    %4940 = vmatmul.mubr.bf16.gmra.mrb[0].mxu0 %v4493
    %v4941 = vpop.f32.mrb[0].mxu0
    %v4942 = vadd.f32 %v4653, %v4941
    %v4943 = vpop.f32.mrb[0].mxu0
    %v4944 = vpop.f32.mrb[0].mxu0
    %v4945 = vadd.f32 %v4656, %v4944
    %v4946 = vpop.f32.mrb[0].mxu0
    %4947 = vmatprep.mubr.bf16.mxu0 0
    %4948 = vmatmul.mubr.bf16.gmra.mrb[0].mxu0 %v4496
    %v4949 = vpop.f32.mrb[0].mxu0
    %v4950 = vadd.f32 %v4661, %v4949
    %v4951 = vpop.f32.mrb[0].mxu0
    %v4952 = vpop.f32.mrb[0].mxu0
    %v4953 = vadd.f32 %v4664, %v4952
    %v4954 = vpop.f32.mrb[0].mxu0
    %4955 = vmatprep.mubr.bf16.mxu0 0
    %4956 = vmatmul.mubr.bf16.gmra.mrb[0].mxu0 %v4499
    %v4957 = vpop.f32.mrb[0].mxu0
    %v4958 = vadd.f32 %v4669, %v4957
    %v4959 = vpop.f32.mrb[0].mxu0
    %v4960 = vpop.f32.mrb[0].mxu0
    %v4961 = vadd.f32 %v4672, %v4960
    %v4962 = vpop.f32.mrb[0].mxu0
    %4963 = vmatprep.mubr.bf16.mxu0 0
    %4964 = vmatmul.mubr.bf16.gmra.mrb[0].mxu0 %v4502
    %v4965 = vpop.f32.mrb[0].mxu0
    %v4966 = vadd.f32 %v4677, %v4965
    %v4967 = vpop.f32.mrb[0].mxu0
    %v4968 = vpop.f32.mrb[0].mxu0
    %v4969 = vadd.f32 %v4680, %v4968
    %v4970 = vpop.f32.mrb[0].mxu0
    %4971 = vmatprep.mubr.bf16.mxu0 0
    %4972 = vmatmul.mubr.bf16.gmra.mrb[0].mxu0 %v4505
    %v4973 = vpop.f32.mrb[0].mxu0
    %v4974 = vadd.f32 %v4685, %v4973
    %v4975 = vpop.f32.mrb[0].mxu0
    %v4976 = vpop.f32.mrb[0].mxu0
    %v4977 = vadd.f32 %v4688, %v4976
    %v4978 = vpop.f32.mrb[0].mxu0
    %4979 = vmatprep.mubr.bf16.mxu0 0
    %4980 = vmatmul.mubr.bf16.gmra.mrb[0].mxu0 %v4508
    %v4981 = vpop.f32.mrb[0].mxu0
    %v4982 = vadd.f32 %v4693, %v4981
    %v4983 = vpop.f32.mrb[0].mxu0
    %v4984 = vpop.f32.mrb[0].mxu0
    %v4985 = vadd.f32 %v4696, %v4984
    %v4986 = vpop.f32.mrb[0].mxu0
    %4987 = vmatprep.mubr.bf16.mxu0 0
    %4988 = vmatmul.mubr.bf16.gmra.mrb[0].mxu0 %v4511
    %v4989 = vpop.f32.mrb[0].mxu0
    %v4990 = vadd.f32 %v4701, %v4989
    %v4991 = vpop.f32.mrb[0].mxu0
    %v4992 = vpop.f32.mrb[0].mxu0
    %v4993 = vadd.f32 %v4704, %v4992
    %v4994 = vpop.f32.mrb[0].mxu0
    %4995 = vmatprep.mubr.bf16.mxu0 0
    %4996 = vmatmul.mubr.bf16.gmra.mrb[0].mxu0 %v4514
    %v4997 = vpop.f32.mrb[0].mxu0
    %v4998 = vadd.f32 %v4709, %v4997
    %v4999 = vpop.f32.mrb[0].mxu0
    %v5000 = vpop.f32.mrb[0].mxu0
    %v5001 = vadd.f32 %v4712, %v5000
    %v5002 = vpop.f32.mrb[0].mxu0
    %5003 = vmatprep.mubr.bf16.mxu0 0
    %5004 = vmatmul.mubr.bf16.gmra.mrb[0].mxu0 %v4517
    %v5005 = vpop.f32.mrb[0].mxu0
    %v5006 = vadd.f32 %v4717, %v5005
    %v5007 = vpop.f32.mrb[0].mxu0
    %v5008 = vpop.f32.mrb[0].mxu0
    %v5009 = vadd.f32 %v4720, %v5008
    %v5010 = vpop.f32.mrb[0].mxu0
    %5011 = vmatprep.mubr.bf16.mxu0 0
    %5012 = vmatmul.mubr.bf16.gmra.mrb[0].mxu0 %v4520
    %v5013 = vpop.f32.mrb[0].mxu0
    %v5014 = vadd.f32 %v4725, %v5013
    %v5015 = vpop.f32.mrb[0].mxu0
    %v5016 = vpop.f32.mrb[0].mxu0
    %v5017 = vadd.f32 %v4728, %v5016
    %v5018 = vpop.f32.mrb[0].mxu0
    %5019 = vmatprep.mubr.bf16.mxu0 0
    %5020 = vmatmul.mubr.bf16.gmra.mrb[0].mxu0 %v4523
    %v5021 = vpop.f32.mrb[0].mxu0
    %v5022 = vadd.f32 %v4733, %v5021
    %v5023 = vpop.f32.mrb[0].mxu0
    %v5024 = vpop.f32.mrb[0].mxu0
    %v5025 = vadd.f32 %v4736, %v5024
    %v5026 = vpop.f32.mrb[0].mxu0
    %5027 = vmatprep.mubr.bf16.mxu0 0
    %5028 = vmatmul.mubr.bf16.gmra.mrb[0].mxu0 %v4526
    %v5029 = vpop.f32.mrb[0].mxu0
    %v5030 = vadd.f32 %v4741, %v5029
    %v5031 = vpop.f32.mrb[0].mxu0
    %v5032 = vpop.f32.mrb[0].mxu0
    %v5033 = vadd.f32 %v4744, %v5032
    %v5034 = vpop.f32.mrb[0].mxu0
    %5035 = vmatprep.mubr.bf16.mxu0 0
    %5036 = vmatmul.mubr.bf16.gmra.mrb[0].mxu0 %v4529
    %v5037 = vpop.f32.mrb[0].mxu0
    %v5038 = vadd.f32 %v4749, %v5037
    %v5039 = vpop.f32.mrb[0].mxu0
    %v5040 = vpop.f32.mrb[0].mxu0
    %v5041 = vadd.f32 %v4752, %v5040
    %v5042 = vpop.f32.mrb[0].mxu0
    %5043 = vmatprep.mubr.bf16.mxu0 0
    %5044 = vmatmul.mubr.bf16.gmra.mrb[0].mxu0 %v4532
    %v5045 = vpop.f32.mrb[0].mxu0
    %v5046 = vadd.f32 %v4757, %v5045
    %v5047 = vpop.f32.mrb[0].mxu0
    %v5048 = vpop.f32.mrb[0].mxu0
    %v5049 = vadd.f32 %v4760, %v5048
    %v5050 = vpop.f32.mrb[0].mxu0
    %5051 = vmatprep.mubr.bf16.mxu0 0
    %5052 = vmatmul.mubr.bf16.gmra.mrb[0].mxu0 %v4535
    %v5053 = vpop.f32.mrb[0].mxu0
    %v5054 = vadd.f32 %v4765, %v5053
    %v5055 = vpop.f32.mrb[0].mxu0
    %v5056 = vpop.f32.mrb[0].mxu0
    %v5057 = vadd.f32 %v4768, %v5056
    %v5058 = vpop.f32.mrb[0].mxu0
    %5059 = vmatprep.mubr.bf16.mxu0 0
    %5060 = vmatmul.mubr.bf16.gmra.mrb[0].mxu0 %v4538
    %v5061 = vpop.f32.mrb[0].mxu0
    %v5062 = vadd.f32 %v4773, %v5061
    %v5063 = vpop.f32.mrb[0].mxu0
    %v5064 = vpop.f32.mrb[0].mxu0
    %v5065 = vadd.f32 %v4776, %v5064
    %v5066 = vpop.f32.mrb[0].mxu0
    %5067 = vmatprep.mubr.bf16.mxu0 0
    %5068 = vmatmul.mubr.bf16.gmra.mrb[0].mxu0 %v4541
    %v5069 = vpop.f32.mrb[0].mxu0
    %v5070 = vadd.f32 %v4781, %v5069
    %v5071 = vpop.f32.mrb[0].mxu0
    %v5072 = vpop.f32.mrb[0].mxu0
    %v5073 = vadd.f32 %v4784, %v5072
    %v5074 = vpop.f32.mrb[0].mxu0
    %5075 = vmatprep.mubr.bf16.mxu0 0
    %5076 = vmatmul.mubr.bf16.gmra.mrb[0].mxu0 %v4544
    %v5077 = vpop.f32.mrb[0].mxu0
    %v5078 = vadd.f32 %v4789, %v5077
    %v5079 = vpop.f32.mrb[0].mxu0
    %v5080 = vpop.f32.mrb[0].mxu0
    %v5081 = vadd.f32 %v4792, %v5080
    %v5082 = vpop.f32.mrb[0].mxu0
    %5083 = vmatprep.mubr.bf16.mxu0 0
    %5084 = vmatmul.mubr.bf16.gmra.mrb[0].mxu0 %v4547
    %v5085 = vpop.f32.mrb[0].mxu0
    %v5086 = vadd.f32 %v4797, %v5085
    %v5087 = vpop.f32.mrb[0].mxu0
    %v5088 = vpop.f32.mrb[0].mxu0
    %v5089 = vadd.f32 %v4800, %v5088
    %v5090 = vpop.f32.mrb[0].mxu0
    %5091 = vmatprep.mubr.bf16.mxu0 0
    %5092 = vmatmul.mubr.bf16.gmra.mrb[0].mxu0 %v4550
    %v5093 = vpop.f32.mrb[0].mxu0
    %v5094 = vadd.f32 %v4805, %v5093
    %v5095 = vpop.f32.mrb[0].mxu0
    %v5096 = vpop.f32.mrb[0].mxu0
    %v5097 = vadd.f32 %v4808, %v5096
    %v5098 = vpop.f32.mrb[0].mxu0
    %5099 = vmatprep.mubr.bf16.mxu0 0
    %5100 = vmatmul.mubr.bf16.gmra.mrb[0].mxu0 %v4553
    %v5101 = vpop.f32.mrb[0].mxu0
    %v5102 = vadd.f32 %v4813, %v5101
    %v5103 = vpop.f32.mrb[0].mxu0
    %v5104 = vpop.f32.mrb[0].mxu0
    %v5105 = vadd.f32 %v4816, %v5104
    %v5106 = vpop.f32.mrb[0].mxu0
    %5107 = vmatprep.mubr.bf16.mxu0 0
    %5108 = vmatmul.mubr.bf16.gmra.mrb[0].mxu0 %v4556
    %v5109 = vpop.f32.mrb[0].mxu0
    %v5110 = vadd.f32 %v4821, %v5109
    %v5111 = vpop.f32.mrb[0].mxu0
    %v5112 = vpop.f32.mrb[0].mxu0
    %v5113 = vadd.f32 %v4824, %v5112
    %v5114 = vpop.f32.mrb[0].mxu0
    %5115 = vmatprep.mubr.bf16.mxu0 0
    %5116 = vmatmul.mubr.bf16.gmra.mrb[0].mxu0 %v4559
    %v5117 = vpop.f32.mrb[0].mxu0
    %v5118 = vadd.f32 %v4829, %v5117
    %v5119 = vpop.f32.mrb[0].mxu0
    %v5120 = vpop.f32.mrb[0].mxu0
    %v5121 = vadd.f32 %v4832, %v5120
    %v5122 = vpop.f32.mrb[0].mxu0
    %5123 = vmatprep.mubr.bf16.mxu0 0
    %5124 = vmatmul.mubr.bf16.gmra.mrb[0].mxu0 %v4562
    %v5125 = vpop.f32.mrb[0].mxu0
    %v5126 = vadd.f32 %v4837, %v5125
    %v5127 = vpop.f32.mrb[0].mxu0
    %v5128 = vpop.f32.mrb[0].mxu0
    %v5129 = vadd.f32 %v4840, %v5128
    %v5130 = vpop.f32.mrb[0].mxu0
    %5131 = vmatprep.mubr.bf16.mxu0 0
    %5132 = vmatmul.mubr.bf16.gmra.mrb[0].mxu0 %v4565
    %v5133 = vpop.f32.mrb[0].mxu0
    %v5134 = vadd.f32 %v4845, %v5133
    %v5135 = vpop.f32.mrb[0].mxu0
    %v5136 = vpop.f32.mrb[0].mxu0
    %v5137 = vadd.f32 %v4848, %v5136
    %v5138 = vpop.f32.mrb[0].mxu0
    %5139 = vmatprep.mubr.bf16.mxu0 0
    %5140 = vmatmul.mubr.bf16.gmra.mrb[0].mxu0 %v4568
    %v5141 = vpop.f32.mrb[0].mxu0
    %v5142 = vadd.f32 %v4853, %v5141
    %v5143 = vpop.f32.mrb[0].mxu0
    %v5144 = vpop.f32.mrb[0].mxu0
    %v5145 = vadd.f32 %v4856, %v5144
    %v5146 = vpop.f32.mrb[0].mxu0
    %5147 = vdwg.mxu0
    %v5148 = vmax.f32 %v4894, 0.0
    %v5149 = vmax.f32 %v4897, 0.0
    %v5150 = vmax.f32 %v4902, 0.0
    %v5151 = vmax.f32 %v4905, 0.0
    %v5152 = vmax.f32 %v4910, 0.0
    %v5153 = vmax.f32 %v4913, 0.0
    %v5154 = vmax.f32 %v4918, 0.0
    %v5155 = vmax.f32 %v4921, 0.0
    %v5156 = vmax.f32 %v4926, 0.0
    %v5157 = vmax.f32 %v4929, 0.0
    %v5158 = vmax.f32 %v4934, 0.0
    %v5159 = vmax.f32 %v4937, 0.0
    %v5160 = vmax.f32 %v4942, 0.0
    %v5161 = vmax.f32 %v4945, 0.0
    %v5162 = vmax.f32 %v4950, 0.0
    %v5163 = vmax.f32 %v4953, 0.0
    %v5164 = vmax.f32 %v4958, 0.0
    %v5165 = vmax.f32 %v4961, 0.0
    %v5166 = vmax.f32 %v4966, 0.0
    %v5167 = vmax.f32 %v4969, 0.0
    %v5168 = vmax.f32 %v4974, 0.0
    %v5169 = vmax.f32 %v4977, 0.0
    %v5170 = vmax.f32 %v4982, 0.0
    %v5171 = vmax.f32 %v4985, 0.0
    %v5172 = vmax.f32 %v4990, 0.0
    %v5173 = vmax.f32 %v4993, 0.0
    %v5174 = vmax.f32 %v4998, 0.0
    %v5175 = vmax.f32 %v5001, 0.0
    %v5176 = vmax.f32 %v5006, 0.0
    %v5177 = vmax.f32 %v5009, 0.0
    %v5178 = vmax.f32 %v5014, 0.0
    %v5179 = vmax.f32 %v5017, 0.0
    %v5180 = vmax.f32 %v5022, 0.0
    %v5181 = vmax.f32 %v5025, 0.0
    %v5182 = vmax.f32 %v5030, 0.0
    %v5183 = vmax.f32 %v5033, 0.0
    %v5184 = vmax.f32 %v5038, 0.0
    %v5185 = vmax.f32 %v5041, 0.0
    %v5186 = vmax.f32 %v5046, 0.0
    %v5187 = vmax.f32 %v5049, 0.0
    %v5188 = vmax.f32 %v5054, 0.0
    %v5189 = vmax.f32 %v5057, 0.0
    %v5190 = vmax.f32 %v5062, 0.0
    %v5191 = vmax.f32 %v5065, 0.0
    %v5192 = vmax.f32 %v5070, 0.0
    %v5193 = vmax.f32 %v5073, 0.0
    %v5194 = vmax.f32 %v5078, 0.0
    %v5195 = vmax.f32 %v5081, 0.0
    %v5196 = vmax.f32 %v5086, 0.0
    %v5197 = vmax.f32 %v5089, 0.0
    %v5198 = vmax.f32 %v5094, 0.0
    %v5199 = vmax.f32 %v5097, 0.0
    %v5200 = vmax.f32 %v5102, 0.0
    %v5201 = vmax.f32 %v5105, 0.0
    %v5202 = vmax.f32 %v5110, 0.0
    %v5203 = vmax.f32 %v5113, 0.0
    %v5204 = vmax.f32 %v5118, 0.0
    %v5205 = vmax.f32 %v5121, 0.0
    %v5206 = vmax.f32 %v5126, 0.0
    %v5207 = vmax.f32 %v5129, 0.0
    %v5208 = vmax.f32 %v5134, 0.0
    %v5209 = vmax.f32 %v5137, 0.0
    %v5210 = vmax.f32 %v5142, 0.0
    %v5211 = vmax.f32 %v5145, 0.0
    %vm5212 = vcmask 523264
    %v5213 = vsel %vm5212, %v5148, 0.0
    %v5214 = vsel %vm5212, %v5149, 0.0
    %v5215 = vadd.f32 %v5213, %v5214
    %v5216 = vsel %vm5212, %v5150, 0.0
    %v5217 = vadd.f32 %v5215, %v5216
    %v5218 = vsel %vm5212, %v5151, 0.0
    %v5219 = vadd.f32 %v5217, %v5218
    %v5220 = vsel %vm5212, %v5152, 0.0
    %v5221 = vadd.f32 %v5219, %v5220
    %v5222 = vsel %vm5212, %v5153, 0.0
    %v5223 = vadd.f32 %v5221, %v5222
    %v5224 = vsel %vm5212, %v5154, 0.0
    %v5225 = vadd.f32 %v5223, %v5224
    %v5226 = vsel %vm5212, %v5155, 0.0
    %v5227 = vadd.f32 %v5225, %v5226
    %v5228 = vsel %vm5212, %v5156, 0.0
    %v5229 = vadd.f32 %v5227, %v5228
    %v5230 = vsel %vm5212, %v5157, 0.0
    %v5231 = vadd.f32 %v5229, %v5230
    %v5232 = vsel %vm5212, %v5158, 0.0
    %v5233 = vadd.f32 %v5231, %v5232
    %v5234 = vsel %vm5212, %v5159, 0.0
    %v5235 = vadd.f32 %v5233, %v5234
    %v5236 = vsel %vm5212, %v5160, 0.0
    %v5237 = vadd.f32 %v5235, %v5236
    %v5238 = vsel %vm5212, %v5161, 0.0
    %v5239 = vadd.f32 %v5237, %v5238
    %v5240 = vsel %vm5212, %v5162, 0.0
    %v5241 = vadd.f32 %v5239, %v5240
    %v5242 = vsel %vm5212, %v5163, 0.0
    %v5243 = vadd.f32 %v5241, %v5242
    %v5244 = vsel %vm5212, %v5164, 0.0
    %v5245 = vadd.f32 %v5243, %v5244
    %v5246 = vsel %vm5212, %v5165, 0.0
    %v5247 = vadd.f32 %v5245, %v5246
    %v5248 = vsel %vm5212, %v5166, 0.0
    %v5249 = vadd.f32 %v5247, %v5248
    %v5250 = vsel %vm5212, %v5167, 0.0
    %v5251 = vadd.f32 %v5249, %v5250
    %v5252 = vsel %vm5212, %v5168, 0.0
    %v5253 = vadd.f32 %v5251, %v5252
    %v5254 = vsel %vm5212, %v5169, 0.0
    %v5255 = vadd.f32 %v5253, %v5254
    %v5256 = vsel %vm5212, %v5170, 0.0
    %v5257 = vadd.f32 %v5255, %v5256
    %v5258 = vsel %vm5212, %v5171, 0.0
    %v5259 = vadd.f32 %v5257, %v5258
    %v5260 = vsel %vm5212, %v5172, 0.0
    %v5261 = vadd.f32 %v5259, %v5260
    %v5262 = vsel %vm5212, %v5173, 0.0
    %v5263 = vadd.f32 %v5261, %v5262
    %v5264 = vsel %vm5212, %v5174, 0.0
    %v5265 = vadd.f32 %v5263, %v5264
    %v5266 = vsel %vm5212, %v5175, 0.0
    %v5267 = vadd.f32 %v5265, %v5266
    %v5268 = vsel %vm5212, %v5176, 0.0
    %v5269 = vadd.f32 %v5267, %v5268
    %v5270 = vsel %vm5212, %v5177, 0.0
    %v5271 = vadd.f32 %v5269, %v5270
    %v5272 = vsel %vm5212, %v5178, 0.0
    %v5273 = vadd.f32 %v5271, %v5272
    %v5274 = vsel %vm5212, %v5179, 0.0
    %v5275 = vadd.f32 %v5273, %v5274
    %v5276 = vrot.slane %v5275, 4
    %v5277 = vadd.f32 %v5275, %v5276
    %v5278 = vrot.slane %v5277, 2
    %v5279 = vadd.f32 %v5277, %v5278
    %v5280 = vrot.slane %v5279, 1
    %v5281 = vadd.f32 %v5279, %v5280
    %v5282 = vmul.f32 %v5281, 0.00390625
    %vm5283 = vcmask 516096
    %5284 = vst.msk [vmem:[#allocation4] sm:$0x1] %vm5283, %v5282
    %v5285 = vsel %vm5212, %v5180, 0.0
    %v5286 = vsel %vm5212, %v5181, 0.0
    %v5287 = vadd.f32 %v5285, %v5286
    %v5288 = vsel %vm5212, %v5182, 0.0
    %v5289 = vadd.f32 %v5287, %v5288
    %v5290 = vsel %vm5212, %v5183, 0.0
    %v5291 = vadd.f32 %v5289, %v5290
    %v5292 = vsel %vm5212, %v5184, 0.0
    %v5293 = vadd.f32 %v5291, %v5292
    %v5294 = vsel %vm5212, %v5185, 0.0
    %v5295 = vadd.f32 %v5293, %v5294
    %v5296 = vsel %vm5212, %v5186, 0.0
    %v5297 = vadd.f32 %v5295, %v5296
    %v5298 = vsel %vm5212, %v5187, 0.0
    %v5299 = vadd.f32 %v5297, %v5298
    %v5300 = vsel %vm5212, %v5188, 0.0
    %v5301 = vadd.f32 %v5299, %v5300
    %v5302 = vsel %vm5212, %v5189, 0.0
    %v5303 = vadd.f32 %v5301, %v5302
    %v5304 = vsel %vm5212, %v5190, 0.0
    %v5305 = vadd.f32 %v5303, %v5304
    %v5306 = vsel %vm5212, %v5191, 0.0
    %v5307 = vadd.f32 %v5305, %v5306
    %v5308 = vsel %vm5212, %v5192, 0.0
    %v5309 = vadd.f32 %v5307, %v5308
    %v5310 = vsel %vm5212, %v5193, 0.0
    %v5311 = vadd.f32 %v5309, %v5310
    %v5312 = vsel %vm5212, %v5194, 0.0
    %v5313 = vadd.f32 %v5311, %v5312
    %v5314 = vsel %vm5212, %v5195, 0.0
    %v5315 = vadd.f32 %v5313, %v5314
    %v5316 = vsel %vm5212, %v5196, 0.0
    %v5317 = vadd.f32 %v5315, %v5316
    %v5318 = vsel %vm5212, %v5197, 0.0
    %v5319 = vadd.f32 %v5317, %v5318
    %v5320 = vsel %vm5212, %v5198, 0.0
    %v5321 = vadd.f32 %v5319, %v5320
    %v5322 = vsel %vm5212, %v5199, 0.0
    %v5323 = vadd.f32 %v5321, %v5322
    %v5324 = vsel %vm5212, %v5200, 0.0
    %v5325 = vadd.f32 %v5323, %v5324
    %v5326 = vsel %vm5212, %v5201, 0.0
    %v5327 = vadd.f32 %v5325, %v5326
    %v5328 = vsel %vm5212, %v5202, 0.0
    %v5329 = vadd.f32 %v5327, %v5328
    %v5330 = vsel %vm5212, %v5203, 0.0
    %v5331 = vadd.f32 %v5329, %v5330
    %v5332 = vsel %vm5212, %v5204, 0.0
    %v5333 = vadd.f32 %v5331, %v5332
    %v5334 = vsel %vm5212, %v5205, 0.0
    %v5335 = vadd.f32 %v5333, %v5334
    %v5336 = vsel %vm5212, %v5206, 0.0
    %v5337 = vadd.f32 %v5335, %v5336
    %v5338 = vsel %vm5212, %v5207, 0.0
    %v5339 = vadd.f32 %v5337, %v5338
    %v5340 = vsel %vm5212, %v5208, 0.0
    %v5341 = vadd.f32 %v5339, %v5340
    %v5342 = vsel %vm5212, %v5209, 0.0
    %v5343 = vadd.f32 %v5341, %v5342
    %v5344 = vsel %vm5212, %v5210, 0.0
    %v5345 = vadd.f32 %v5343, %v5344
    %v5346 = vsel %vm5212, %v5211, 0.0
    %v5347 = vadd.f32 %v5345, %v5346
    %v5348 = vrot.slane %v5347, 4
    %v5349 = vadd.f32 %v5347, %v5348
    %v5350 = vrot.slane %v5349, 2
    %v5351 = vadd.f32 %v5349, %v5350
    %v5352 = vrot.slane %v5351, 1
    %v5353 = vadd.f32 %v5351, %v5352
    %v5354 = vmul.f32 %v5353, 0.00390625
    %5355 = vst.msk [vmem:[#allocation4 + $0x1] sm:$0x1] %vm5283, %v5354
    %v5356 = vld [vmem:[%s1] sm:$0x3]
    %5358 = vrot.lane.b32.xlu0 %v5356, 64
    %v5359 = vpop.permute.xlu0 %5358
    %vm5361 = vcmask 583168
    %5362 = vst.msk [vmem:[#allocation4] sm:$0x3] %vm5361, %v5359
    %v5363 = vld [vmem:[#allocation5 + $0xb8] sm:$0xf]
    %v5364 = vld [vmem:[#allocation5 + $0xbc] sm:$0xf]
    %v5365 = vld [vmem:[#allocation5 + $0xc0] sm:$0xf]
    %v5366 = vld [vmem:[#allocation5 + $0xc4] sm:$0xf]
    %v5367 = vld [vmem:[#allocation5 + $0xc8] sm:$0xf]
    %v5368 = vld [vmem:[#allocation5 + $0xcc] sm:$0xf]
    %v5369 = vld [vmem:[#allocation5 + $0xd0] sm:$0xf]
    %v5370 = vld [vmem:[#allocation5 + $0xd4] sm:$0xf]
    %v5371 = vld [vmem:[#allocation5 + $0xd8] sm:$0xf]
    %v5372 = vld [vmem:[#allocation5 + $0xe0] sm:$0x1]
    %v5373 = vld [vmem:[#allocation4] sm:$0x3]
    %v5374 = vpack.c.bf16 %v5373, %v5373
    %v5375 = vunpack.c.l.bf16 %v5372
    %v5376 = vlaneseq
    %v5377 = vshrl.u32 %v5376, 7
    %v5378 = vsub.s32 0, %v5377
    %v5379 = vrot.slane %v5375, %v5378
    %v5389 = vunpack.c.l.b16 %v5363
    %v5390 = vunpack.c.l.b16 %v5364
    %v5391 = vunpack.c.l.b16 %v5365
    %v5392 = vunpack.c.l.b16 %v5366
    %v5393 = vunpack.c.l.b16 %v5367
    %v5394 = vunpack.c.l.b16 %v5368
    %v5395 = vunpack.c.l.b16 %v5369
    %v5396 = vunpack.c.l.b16 %v5370
    %v5397 = vunpack.c.l.b16 %v5371
    %v5398 = vpack.c.b16 %v5390, %v5389
    %v5399 = vpack.c.b16 %v5392, %v5391
    %v5400 = vpack.c.b16 %v5394, %v5393
    %v5401 = vpack.c.b16 %v5396, %v5395
    %v5402 = vpack.c.b16 %v5397, %v5397
    %vm5407 = vcmask 588800
    %v5409 = vsel %vm5407, %v5374, 0
    %vm5411 = vcmask 1043456
    %v5413 = vsel %vm5411, %v5402, 0
    %5415 = vmatprep.subr.bf16.mxu0 0
    %5416 = vmatpush1.bf16.msra.mxu0 %v5398
    %5417 = vmatprep.subr.bf16.mxu0 0
    %5418 = vmatpush1.bf16.msra.mxu0 %v5399
    %5419 = vmatprep.subr.bf16.mxu0 0
    %5420 = vmatpush1.bf16.msra.mxu0 %v5400
    %5421 = vmatprep.subr.bf16.mxu0 0
    %5422 = vmatpush1.bf16.msra.mxu0 %v5401
    %5423 = vmatprep.subr.bf16.mxu0 0
    %5424 = vmatpush1.bf16.msra.mxu0 %v5413
    %5425 = vmatprep.subr.bf16.mxu0 0
    %5426 = vmatpush1.bf16.msra.mxu0 0
    %5427 = vmatprep.subr.bf16.mxu0 0
    %5428 = vmatpush1.bf16.msra.mxu0 0
    %5429 = vmatprep.subr.bf16.mxu0 0
    %5430 = vmatpush1.bf16.msra.mxu0 0
    %5431 = vmatprep.subr.bf16.mxu0 0
    %5432 = vmatpush1.bf16.msra.mxu0 0
    %5433 = vmatprep.subr.bf16.mxu0 0
    %5434 = vmatpush1.bf16.msra.mxu0 0
    %5435 = vmatprep.subr.bf16.mxu0 0
    %5436 = vmatpush1.bf16.msra.mxu0 0
    %5437 = vmatprep.subr.bf16.mxu0 0
    %5438 = vmatpush1.bf16.msra.mxu0 0
    %5439 = vmatprep.subr.bf16.mxu0 0
    %5440 = vmatpush1.bf16.msra.mxu0 0
    %5441 = vmatprep.subr.bf16.mxu0 0
    %5442 = vmatpush1.bf16.msra.mxu0 0
    %5443 = vmatprep.subr.bf16.mxu0 0
    %5444 = vmatpush1.bf16.msra.mxu0 0
    %5445 = vmatprep.subr.bf16.mxu0 0
    %5446 = vmatpush1.bf16.msra.mxu0 0
    %5447 = vmatprep.mubr.bf16.mxu0 0
    %5448 = vmatmul.mubr.bf16.gmra.mrb[0].mxu0 %v5409
    %v5449 = vpop.f32.mrb[0].mxu0
    %v5450 = vadd.f32 %v5379, %v5449
    %v5451 = vpop.f32.mrb[0].mxu0
    %v5452 = vpop.f32.mrb[0].mxu0
    %v5453 = vpop.f32.mrb[0].mxu0
    %5454 = vdwg.mxu0
    %v5455 = vmax.f32 %v5450, 0.0
    %v5456 = vld [vmem:[#allocation5 + $0xe8] sm:$0xf]
    %v5457 = vld [vmem:[#allocation5 + $0xec] sm:$0xf]
    %v5458 = vld [vmem:[#allocation5 + $0xf0] sm:$0xf]
    %v5459 = vld [vmem:[#allocation5 + $0xf4] sm:$0xf]
    %v5460 = vld [vmem:[#allocation5 + $0xf8] sm:$0xf]
    %v5461 = vld [vmem:[#allocation5 + $0xfc] sm:$0xf]
    %v5462 = vld [vmem:[#allocation5 + $0x100] sm:$0xf]
    %v5463 = vld [vmem:[#allocation5 + $0x104] sm:$0xf]
    %v5464 = vld [vmem:[#allocation5 + $0x108] sm:$0xf]
    %v5465 = vld [vmem:[#allocation5 + $0x10c] sm:$0xf]
    %v5466 = vld [vmem:[#allocation5 + $0x110] sm:$0xf]
    %v5467 = vld [vmem:[#allocation5 + $0x114] sm:$0xf]
    %v5468 = vld [vmem:[#allocation5 + $0x118] sm:$0xf]
    %v5469 = vld [vmem:[#allocation5 + $0x11c] sm:$0xf]
    %v5470 = vld [vmem:[#allocation5 + $0x120] sm:$0xf]
    %v5471 = vld [vmem:[#allocation5 + $0x124] sm:$0xf]
    %v5472 = vld [vmem:[#allocation5 + $0x128] sm:$0x1]
    %v5473 = vpack.c.bf16 %v5455, %v5455
    %v5474 = vunpack.c.l.bf16 %v5472
    %v5475 = vlaneseq
    %v5476 = vshrl.u32 %v5475, 7
    %v5477 = vsub.s32 0, %v5476
    %v5478 = vrot.slane %v5474, %v5477
    %v5495 = vunpack.c.l.b16 %v5456
    %v5496 = vunpack.c.l.b16 %v5457
    %v5497 = vunpack.c.l.b16 %v5458
    %v5498 = vunpack.c.l.b16 %v5459
    %v5499 = vunpack.c.l.b16 %v5460
    %v5500 = vunpack.c.l.b16 %v5461
    %v5501 = vunpack.c.l.b16 %v5462
    %v5502 = vunpack.c.l.b16 %v5463
    %v5503 = vunpack.c.l.b16 %v5464
    %v5504 = vunpack.c.l.b16 %v5465
    %v5505 = vunpack.c.l.b16 %v5466
    %v5506 = vunpack.c.l.b16 %v5467
    %v5507 = vunpack.c.l.b16 %v5468
    %v5508 = vunpack.c.l.b16 %v5469
    %v5509 = vunpack.c.l.b16 %v5470
    %v5510 = vunpack.c.l.b16 %v5471
    %v5511 = vpack.c.b16 %v5496, %v5495
    %v5512 = vpack.c.b16 %v5498, %v5497
    %v5513 = vpack.c.b16 %v5500, %v5499
    %v5514 = vpack.c.b16 %v5502, %v5501
    %v5515 = vpack.c.b16 %v5504, %v5503
    %v5516 = vpack.c.b16 %v5506, %v5505
    %v5517 = vpack.c.b16 %v5508, %v5507
    %v5518 = vpack.c.b16 %v5510, %v5509
    %5527 = vmatprep.subr.bf16.mxu0 0
    %5528 = vmatpush1.bf16.msra.mxu0 %v5511
    %5529 = vmatprep.subr.bf16.mxu0 0
    %5530 = vmatpush1.bf16.msra.mxu0 %v5512
    %5531 = vmatprep.subr.bf16.mxu0 0
    %5532 = vmatpush1.bf16.msra.mxu0 %v5513
    %5533 = vmatprep.subr.bf16.mxu0 0
    %5534 = vmatpush1.bf16.msra.mxu0 %v5514
    %5535 = vmatprep.subr.bf16.mxu0 0
    %5536 = vmatpush1.bf16.msra.mxu0 %v5515
    %5537 = vmatprep.subr.bf16.mxu0 0
    %5538 = vmatpush1.bf16.msra.mxu0 %v5516
    %5539 = vmatprep.subr.bf16.mxu0 0
    %5540 = vmatpush1.bf16.msra.mxu0 %v5517
    %5541 = vmatprep.subr.bf16.mxu0 0
    %5542 = vmatpush1.bf16.msra.mxu0 %v5518
    %5543 = vmatprep.subr.bf16.mxu0 0
    %5544 = vmatpush1.bf16.msra.mxu0 0
    %5545 = vmatprep.subr.bf16.mxu0 0
    %5546 = vmatpush1.bf16.msra.mxu0 0
    %5547 = vmatprep.subr.bf16.mxu0 0
    %5548 = vmatpush1.bf16.msra.mxu0 0
    %5549 = vmatprep.subr.bf16.mxu0 0
    %5550 = vmatpush1.bf16.msra.mxu0 0
    %5551 = vmatprep.subr.bf16.mxu0 0
    %5552 = vmatpush1.bf16.msra.mxu0 0
    %5553 = vmatprep.subr.bf16.mxu0 0
    %5554 = vmatpush1.bf16.msra.mxu0 0
    %5555 = vmatprep.subr.bf16.mxu0 0
    %5556 = vmatpush1.bf16.msra.mxu0 0
    %5557 = vmatprep.subr.bf16.mxu0 0
    %5558 = vmatpush1.bf16.msra.mxu0 0
    %5559 = vmatprep.mubr.bf16.mxu0 0
    %5560 = vmatmul.mubr.bf16.gmra.mrb[0].mxu0 %v5473
    %v5561 = vpop.f32.mrb[0].mxu0
    %v5562 = vadd.f32 %v5478, %v5561
    %v5563 = vpop.f32.mrb[0].mxu0
    %v5564 = vpop.f32.mrb[0].mxu0
    %v5565 = vpop.f32.mrb[0].mxu0
    %5566 = vdwg.mxu0
    %v5567 = vmax.f32 %v5562, 0.0
    %v5568 = vld [vmem:[#allocation5 + $0x130] sm:$0xf]
    %v5569 = vld [vmem:[#allocation5 + $0x134] sm:$0xf]
    %v5570 = vld [vmem:[#allocation5 + $0x138] sm:$0xf]
    %v5571 = vld [vmem:[#allocation5 + $0x13c] sm:$0xf]
    %v5572 = vld [vmem:[#allocation5 + $0x140] sm:$0xf]
    %v5573 = vld [vmem:[#allocation5 + $0x144] sm:$0xf]
    %v5574 = vld [vmem:[#allocation5 + $0x148] sm:$0xf]
    %v5575 = vld [vmem:[#allocation5 + $0x14c] sm:$0xf]
    %v5576 = vld [vmem:[#allocation5 + $0x150] sm:$0x1]
    %v5577 = vpack.c.bf16 %v5567, %v5567
    %v5578 = vunpack.c.l.bf16 %v5576
    %v5579 = vlaneseq
    %v5580 = vshrl.u32 %v5579, 7
    %v5581 = vsub.s32 0, %v5580
    %v5582 = vrot.slane %v5578, %v5581
    %v5591 = vunpack.c.l.b16 %v5568
    %v5592 = vunpack.c.l.b16 %v5569
    %v5593 = vunpack.c.l.b16 %v5570
    %v5594 = vunpack.c.l.b16 %v5571
    %v5595 = vunpack.c.l.b16 %v5572
    %v5596 = vunpack.c.l.b16 %v5573
    %v5597 = vunpack.c.l.b16 %v5574
    %v5598 = vunpack.c.l.b16 %v5575
    %v5599 = vpack.c.b16 %v5592, %v5591
    %v5600 = vpack.c.b16 %v5594, %v5593
    %v5601 = vpack.c.b16 %v5596, %v5595
    %v5602 = vpack.c.b16 %v5598, %v5597
    %v5608 = vsel %vm5212, %v5577, 0
    %5610 = vmatprep.subr.bf16.mxu0 0
    %5611 = vmatpush1.bf16.msra.mxu0 %v5599
    %5612 = vmatprep.subr.bf16.mxu0 0
    %5613 = vmatpush1.bf16.msra.mxu0 %v5600
    %5614 = vmatprep.subr.bf16.mxu0 0
    %5615 = vmatpush1.bf16.msra.mxu0 %v5601
    %5616 = vmatprep.subr.bf16.mxu0 0
    %5617 = vmatpush1.bf16.msra.mxu0 %v5602
    %5618 = vmatprep.subr.bf16.mxu0 0
    %5619 = vmatpush1.bf16.msra.mxu0 0
    %5620 = vmatprep.subr.bf16.mxu0 0
    %5621 = vmatpush1.bf16.msra.mxu0 0
    %5622 = vmatprep.subr.bf16.mxu0 0
    %5623 = vmatpush1.bf16.msra.mxu0 0
    %5624 = vmatprep.subr.bf16.mxu0 0
    %5625 = vmatpush1.bf16.msra.mxu0 0
    %5626 = vmatprep.subr.bf16.mxu0 0
    %5627 = vmatpush1.bf16.msra.mxu0 0
    %5628 = vmatprep.subr.bf16.mxu0 0
    %5629 = vmatpush1.bf16.msra.mxu0 0
    %5630 = vmatprep.subr.bf16.mxu0 0
    %5631 = vmatpush1.bf16.msra.mxu0 0
    %5632 = vmatprep.subr.bf16.mxu0 0
    %5633 = vmatpush1.bf16.msra.mxu0 0
    %5634 = vmatprep.subr.bf16.mxu0 0
    %5635 = vmatpush1.bf16.msra.mxu0 0
    %5636 = vmatprep.subr.bf16.mxu0 0
    %5637 = vmatpush1.bf16.msra.mxu0 0
    %5638 = vmatprep.subr.bf16.mxu0 0
    %5639 = vmatpush1.bf16.msra.mxu0 0
    %5640 = vmatprep.subr.bf16.mxu0 0
    %5641 = vmatpush1.bf16.msra.mxu0 0
    %5642 = vmatprep.mubr.bf16.mxu0 0
    %5643 = vmatmul.mubr.bf16.gmra.mrb[0].mxu0 %v5608
    %v5644 = vpop.f32.mrb[0].mxu0
    %v5645 = vadd.f32 %v5582, %v5644
    %v5646 = vpop.f32.mrb[0].mxu0
    %v5647 = vpop.f32.mrb[0].mxu0
    %v5648 = vpop.f32.mrb[0].mxu0
    %5649 = vdwg.mxu0
    %vm5650 = vcmask 58368
    %5651 = vst.msk [vmem:[#allocation8] sm:$0x3] %vm5650, %v5645
    // Predicated region
    $region18: #{tpu_custom_call.1} parent=1 // pred_check
      _
    $region19: #{tpu_custom_call.1} parent=1 // pred_check_branch
      %5653 = sbr.rel (0) target = $region21
    $region20: #{tpu_custom_call.1} parent=1 // pred_region
      %s5655 = ssub.s32 32, 32
      %5656 = vsyncadd [#allocation7], %s5655
      %s5658 = sshll.u32 [#allocation8], 4
      %s5659 = int_to_ptr.vmem [resolvable:$true] %s5658
      %5661 = dma.vmem_to_hbm [thread:$0]  %s5659, 32, %s3, [#allocation7]
    $region21: #{tpu_custom_call.1} parent=1 // pred_fallthru
      _
    // Predicated region
    $region22: #{tpu_custom_call.1} parent=1 // pred_check
      _
    $region23: #{tpu_custom_call.1} parent=1 // pred_check_branch
      %5663 = sbr.rel (0) target = $region25
    $region24: #{tpu_custom_call.1} parent=1 // pred_region
      %5664 = dma.done [#allocation7], 32
    $region25: #{tpu_custom_call.1} parent=1 // pred_fallthru
      _
    %5665 = vsyncpa [#allocation6], 1
    %5666 = vsyncpa [#allocation7], 1

</llo_original>
